<compile_context>
chip_gen: v6e
topology: v6e:2x2x1
jax: 0.10.0
libtpu: 0.0.40
codegen_flags: <defaults>
</compile_context>

<pallas_src>
import functools
import math

import jax
import jax.numpy as jnp
from jax.experimental import pallas as pl
from jax.experimental.pallas import tpu as pltpu


def _choose_block_batch(B, K):
    """Batch-block size: aim for >=128 rows per MXU call, preferring >=2 grid
    steps (v7x has 2 TensorCores) whenever both are achievable."""
    divisors = [d for d in range(1, B + 1) if B % d == 0]
    for d in divisors:                       # >=128 rows AND >=2 steps
        if d * K >= 128 and B // d >= 2:
            return d
    for d in divisors:                       # >=128 rows, single step
        if d * K >= 128:
            return d
    # Tiny problem: give v7x two steps if B is even, else one step.
    return B // 2 if (B >= 2 and B % 2 == 0) else B


def encoder_kernel(x_ref,
                   wqkv_ref, bqkv_ref,
                   wo_ref, bo_ref,
                   ln1w_ref, ln1b_ref,
                   w1_ref, b1_ref, w2_ref, b2_ref,
                   ln2w_ref, ln2b_ref,
                   o_ref,
                   *, n_heads, q_dim, v_dim, seq_len, eps, matmul_dtype):
    tb, k, d = x_ref.shape
    rows = tb * k
    dq_total = n_heads * q_dim
    dv_total = n_heads * v_dim

    x_rows = x_ref[...].reshape(rows, d)             # (rows, D) f32
    xm = x_rows.astype(matmul_dtype)

    # ---------------- Multi Head Attention ----------------
    # Fused QKV projection: one matmul instead of three.
    qkv = jnp.dot(xm, wqkv_ref[...], preferred_element_type=jnp.float32)
    qkv = qkv + bqkv_ref[0]                          # (rows, 2*dq+dv) f32
    qkv = qkv.reshape(tb, k, 2 * dq_total + dv_total)

    q_all = qkv[..., :dq_total]
    k_all = qkv[..., dq_total:2 * dq_total]
    v_all = qkv[..., 2 * dq_total:]

    # tst quirk reproduced exactly: scale by 1/sqrt(K) (sequence length),
    # NOT 1/sqrt(q). seq_len is static, independent of any tiling.
    scale = 1.0 / math.sqrt(seq_len)

    wo = wo_ref[...]                                 # (h, v, D), matmul_dtype

    # Per-head attention, batched over the batch block; the output projection
    # is fused into the head loop (accumulate into `att`), so there is no
    # concatenate and no explicit transpose anywhere.
    att = jnp.zeros((rows, d), jnp.float32)
    for hh in range(n_heads):                        # static unroll, h is small
        qh = q_all[..., hh * q_dim:(hh + 1) * q_dim].astype(matmul_dtype)
        kh = k_all[..., hh * q_dim:(hh + 1) * q_dim].astype(matmul_dtype)
        vh = v_all[..., hh * v_dim:(hh + 1) * v_dim].astype(matmul_dtype)

        # scores: contract last-dim/last-dim (no .T), batch over batch block.
        s = jnp.einsum("bkc,bmc->bkm", qh, kh,
                       preferred_element_type=jnp.float32) * scale
        s = s - jnp.max(s, axis=-1, keepdims=True)
        p = jnp.exp(s)                               # EUP
        p = p / jnp.sum(p, axis=-1, keepdims=True)   # softmax(dim=-1), f32

        ctx = jnp.einsum("bkm,bmv->bkv", p.astype(matmul_dtype), vh,
                         preferred_element_type=jnp.float32)      # (tb, k, v)
        att = att + jnp.dot(ctx.reshape(rows, v_dim).astype(matmul_dtype),
                            wo[hh], preferred_element_type=jnp.float32)
    att = att + bo_ref[0]

    # TODO(synk): nn.Dropout(p=0.3) is identity here (inference semantics).

    def layer_norm(y, w, b):
        mu = jnp.mean(y, axis=-1, keepdims=True)
        var = jnp.mean(jnp.square(y - mu), axis=-1, keepdims=True)
        return (y - mu) * jax.lax.rsqrt(var + eps) * w + b

    # Residual + LayerNorm1
    x1 = layer_norm(att + x_rows, ln1w_ref[0], ln1b_ref[0])       # (rows, D) f32

    # ---------------- Position-wise Feed Forward ----------------
    hid = jnp.dot(x1.astype(matmul_dtype), w1_ref[...],
                  preferred_element_type=jnp.float32) + b1_ref[0]
    hid = jnp.maximum(hid, 0.0)                                    # ReLU
    ff = jnp.dot(hid.astype(matmul_dtype), w2_ref[...],
                 preferred_element_type=jnp.float32) + b2_ref[0]

    # Residual + LayerNorm2
    y = layer_norm(ff + x1, ln2w_ref[0], ln2b_ref[0])
    o_ref[...] = y.reshape(tb, k, d)


def encoder_forward(x, params, *, n_heads, q_dim, v_dim, eps=1e-5,
                    matmul_dtype=jnp.float32, block_batch=None):
    B, K, D = x.shape
    dq = n_heads * q_dim
    dv = n_heads * v_dim
    d_ff = params["w1"].shape[1]

    TB = block_batch if block_batch is not None else _choose_block_batch(B, K)
    assert B % TB == 0, "block_batch must divide the batch size"

    # Host-side weight packing (free, one-time): fused QKV weight/bias,
    # head-major W_o.  Only matmul operands get cast to matmul_dtype;
    # biases / LN params stay f32.
    wqkv = jnp.concatenate([params["wq"], params["wk"], params["wv"]],
                           axis=1).astype(matmul_dtype)            # (D, 2dq+dv)
    bqkv = jnp.concatenate([params["bq"], params["bk"], params["bv"]],
                           axis=1)                                 # (1, 2dq+dv)
    wo_h = params["wo"].reshape(n_heads, v_dim, D).astype(matmul_dtype)
    w1 = params["w1"].astype(matmul_dtype)
    w2 = params["w2"].astype(matmul_dtype)

    kernel = functools.partial(
        encoder_kernel, n_heads=n_heads, q_dim=q_dim, v_dim=v_dim,
        seq_len=K, eps=eps, matmul_dtype=matmul_dtype)

    def full_spec(a):
        """Whole-array block with a constant index_map -> fetched once,
        VMEM-resident across grid steps."""
        shp = tuple(a.shape)
        return pl.BlockSpec(shp, lambda b, _n=len(shp): (0,) * _n)

    # Advisory cost estimate (FLOPs dominated by the two FFN matmuls, bytes by
    # W1/W2 + x/out).
    rows_total = B * K
    flops = 2 * rows_total * D * (2 * dq + dv)                 # fused QKV
    flops += 2 * B * n_heads * K * K * (q_dim + v_dim)         # scores + PV
    flops += 2 * rows_total * dv * D                           # output proj
    flops += 2 * rows_total * D * d_ff * 2                     # FFN
    transcendentals = B * n_heads * K * K + 4 * rows_total     # exp + rsqrt
    weight_list = (wqkv, bqkv, wo_h, params["bo"], params["ln1_w"],
                   params["ln1_b"], w1, params["b1"], w2, params["b2"],
                   params["ln2_w"], params["ln2_b"])
    bytes_accessed = (x.size * x.dtype.itemsize + rows_total * D * 4
                      + sum(int(a.size) * a.dtype.itemsize for a in weight_list))
    cost = pl.CostEstimate(flops=int(flops),
                           transcendentals=int(transcendentals),
                           bytes_accessed=int(bytes_accessed))

    out = pl.pallas_call(
        kernel,
        out_shape=jax.ShapeDtypeStruct((B, K, D), jnp.float32),
        grid=(B // TB,),
        in_specs=[
            pl.BlockSpec((TB, K, D), lambda b: (b, 0, 0)),     # x
            full_spec(wqkv), full_spec(bqkv),                  # fused QKV
            full_spec(wo_h), full_spec(params["bo"]),          # W_o (head-major), b_o
            full_spec(params["ln1_w"]), full_spec(params["ln1_b"]),
            full_spec(w1), full_spec(params["b1"]),            # FFN linear1
            full_spec(w2), full_spec(params["b2"]),            # FFN linear2
            full_spec(params["ln2_w"]), full_spec(params["ln2_b"]),
        ],
        out_specs=pl.BlockSpec((TB, K, D), lambda b: (b, 0, 0)),
        compiler_params=pltpu.CompilerParams(
            dimension_semantics=("parallel",)),
        cost_estimate=cost,
    )(x, wqkv, bqkv, wo_h, params["bo"],
      params["ln1_w"], params["ln1_b"],
      w1, params["b1"], w2, params["b2"],
      params["ln2_w"], params["ln2_b"])
    # Encoder.forward returns (x, ffn_indicators); ffn_indicators is None when Unified=False.
    return out, None


def reference_forward(x, p, *, n_heads, q_dim, v_dim, eps=1e-5):
    """Pure-JAX reference reproducing the PyTorch semantics, for validation."""
    B, K, D = x.shape
    q_all = x @ p["wq"] + p["bq"][0]
    k_all = x @ p["wk"] + p["bk"][0]
    v_all = x @ p["wv"] + p["bv"][0]
    scale = 1.0 / math.sqrt(K)
    heads = []
    for hh in range(n_heads):
        qh_ = q_all[..., hh * q_dim:(hh + 1) * q_dim]
        kh_ = k_all[..., hh * q_dim:(hh + 1) * q_dim]
        vh_ = v_all[..., hh * v_dim:(hh + 1) * v_dim]
        s = jnp.einsum("bkq,bmq->bkm", qh_, kh_) * scale
        s = jax.nn.softmax(s, axis=-1)
        heads.append(jnp.einsum("bkm,bmv->bkv", s, vh_))
    att = jnp.concatenate(heads, axis=-1) @ p["wo"] + p["bo"][0]

    def ln(y, w, b):
        mu = jnp.mean(y, -1, keepdims=True)
        var = jnp.mean((y - mu) ** 2, -1, keepdims=True)
        return (y - mu) / jnp.sqrt(var + eps) * w[0] + b[0]

    x1 = ln(att + x, p["ln1_w"], p["ln1_b"])
    ff = jnp.maximum(x1 @ p["w1"] + p["b1"][0], 0.0) @ p["w2"] + p["b2"][0]
    return ln(ff + x1, p["ln2_w"], p["ln2_b"])


def init_params(key, d_model, q, v, h, d_ff):
    """Deterministic init matching the nn.Linear / nn.LayerNorm shapes."""
    ks = jax.random.split(key, 12)

    def lin(kw, kb, fan_in, fan_out):
        bound = 1.0 / math.sqrt(fan_in)
        w = jax.random.uniform(kw, (fan_in, fan_out), jnp.float32, -bound, bound)
        b = jax.random.uniform(kb, (1, fan_out), jnp.float32, -bound, bound)
        return w, b

    wq, bq = lin(ks[0], ks[1], d_model, q * h)
    wk, bk = lin(ks[2], ks[3], d_model, q * h)
    wv, bv = lin(ks[4], ks[5], d_model, v * h)
    wo, bo = lin(ks[6], ks[7], v * h, d_model)
    w1, b1 = lin(ks[8], ks[9], d_model, d_ff)
    w2, b2 = lin(ks[10], ks[11], d_ff, d_model)
    return dict(
        wq=wq, bq=bq, wk=wk, bk=bk, wv=wv, bv=bv, wo=wo, bo=bo,
        w1=w1, b1=b1, w2=w2, b2=b2,
        ln1_w=jnp.ones((1, d_model), jnp.float32),
        ln1_b=jnp.zeros((1, d_model), jnp.float32),
        ln2_w=jnp.ones((1, d_model), jnp.float32),
        ln2_b=jnp.zeros((1, d_model), jnp.float32),
    )


if __name__ == "__main__":
    # Small shapes: Encoder(d_model=32, q=8, v=8, h=4), x: (batch=2, K=8, d_model=32)
    B, K, d_model, q, v, h = 2, 8, 32, 8, 8, 4
    d_ff = 2048  # PositionwiseFeedForward default hidden size

    root = jax.random.PRNGKey(0)
    kx, kp = jax.random.split(root)
    x = jax.random.normal(kx, (B, K, d_model), jnp.float32)
    params = init_params(kp, d_model, q, v, h, d_ff)

    ref = reference_forward(x, params, n_heads=h, q_dim=q, v_dim=v)

    # Exact (f32 matmul) path.
    out, ffn_indicators = encoder_forward(x, params, n_heads=h, q_dim=q, v_dim=v)
    out = jax.block_until_ready(out)
    assert out.shape == (B, K, d_model)
    assert ffn_indicators is None
    assert jnp.allclose(out, ref, atol=1e-4, rtol=1e-4), "f32 mismatch vs reference"

    # bf16 matmul-operand path (v6e/v7x MXU throughput, half the weight DMA);
    # softmax / LayerNorm elementwise math stays f32. Looser tolerance expected.
    out_bf16, _ = encoder_forward(x, params, n_heads=h, q_dim=q, v_dim=v,
                                  matmul_dtype=jnp.bfloat16)
    out_bf16 = jax.block_until_ready(out_bf16)
    assert out_bf16.shape == (B, K, d_model)
    assert float(jnp.max(jnp.abs(out_bf16 - ref))) < 0.5, "bf16 path diverged"

    print("KERNEL_OK")
</pallas_src>

<mosaic_0001>
module attributes {stable_mosaic.version = 11 : i64} {
  func.func @encoder_kernel(%arg0: i32, %arg1: memref<1x8x32xf32, #tpu.memory_space<vmem>>, %arg2: memref<32x96xf32, #tpu.memory_space<vmem>>, %arg3: memref<1x96xf32, #tpu.memory_space<vmem>>, %arg4: memref<4x8x32xf32, #tpu.memory_space<vmem>>, %arg5: memref<1x32xf32, #tpu.memory_space<vmem>>, %arg6: memref<1x32xf32, #tpu.memory_space<vmem>>, %arg7: memref<1x32xf32, #tpu.memory_space<vmem>>, %arg8: memref<32x2048xf32, #tpu.memory_space<vmem>>, %arg9: memref<1x2048xf32, #tpu.memory_space<vmem>>, %arg10: memref<2048x32xf32, #tpu.memory_space<vmem>>, %arg11: memref<1x32xf32, #tpu.memory_space<vmem>>, %arg12: memref<1x32xf32, #tpu.memory_space<vmem>>, %arg13: memref<1x32xf32, #tpu.memory_space<vmem>>, %arg14: memref<1x8x32xf32, #tpu.memory_space<vmem>>) attributes {dimension_semantics = [#tpu.dimension_semantics<parallel>], iteration_bounds = array<i64: 2>, scalar_prefetch = 0 : i64, scratch_operands = 0 : i64, tpu.core_type = #tpu.core_type<tc>, window_params = [{transform_indices = @transform_0, window_bounds = array<i64: 1, 8, 32>}, {pipeline_mode = #tpu.pipeline_mode<synchronous>, transform_indices = @transform_1, window_bounds = array<i64: 32, 96>}, {pipeline_mode = #tpu.pipeline_mode<synchronous>, transform_indices = @transform_2, window_bounds = array<i64: 1, 96>}, {pipeline_mode = #tpu.pipeline_mode<synchronous>, transform_indices = @transform_3, window_bounds = array<i64: 4, 8, 32>}, {pipeline_mode = #tpu.pipeline_mode<synchronous>, transform_indices = @transform_4, window_bounds = array<i64: 1, 32>}, {pipeline_mode = #tpu.pipeline_mode<synchronous>, transform_indices = @transform_5, window_bounds = array<i64: 1, 32>}, {pipeline_mode = #tpu.pipeline_mode<synchronous>, transform_indices = @transform_6, window_bounds = array<i64: 1, 32>}, {pipeline_mode = #tpu.pipeline_mode<synchronous>, transform_indices = @transform_7, window_bounds = array<i64: 32, 2048>}, {pipeline_mode = #tpu.pipeline_mode<synchronous>, transform_indices = @transform_8, window_bounds = array<i64: 1, 2048>}, {pipeline_mode = #tpu.pipeline_mode<synchronous>, transform_indices = @transform_9, window_bounds = array<i64: 2048, 32>}, {pipeline_mode = #tpu.pipeline_mode<synchronous>, transform_indices = @transform_10, window_bounds = array<i64: 1, 32>}, {pipeline_mode = #tpu.pipeline_mode<synchronous>, transform_indices = @transform_11, window_bounds = array<i64: 1, 32>}, {pipeline_mode = #tpu.pipeline_mode<synchronous>, transform_indices = @transform_12, window_bounds = array<i64: 1, 32>}, {transform_indices = @transform_13, window_bounds = array<i64: 1, 8, 32>}]} {
    %c0 = arith.constant 0 : index
    %c0_0 = arith.constant 0 : index
    %c0_1 = arith.constant 0 : index
    %0 = vector.load %arg1[%c0, %c0_0, %c0_1] : memref<1x8x32xf32, #tpu.memory_space<vmem>>, vector<1x8x32xf32>
    %1 = vector.shape_cast %0 : vector<1x8x32xf32> to vector<8x32xf32>
    %c0_2 = arith.constant 0 : index
    %c0_3 = arith.constant 0 : index
    %2 = vector.load %arg2[%c0_2, %c0_3] : memref<32x96xf32, #tpu.memory_space<vmem>>, vector<32x96xf32>
    %cst = arith.constant dense<0.000000e+00> : vector<8x96xf32>
    %3 = tpu.matmul %1, %2, %cst {dimension_numbers = #tpu.dot_dimension_numbers<[1], [0], [0], [1], [0, 0, 1, 1], [], []>} : vector<8x32xf32>, vector<32x96xf32>, vector<8x96xf32> -> vector<8x96xf32>
    %c0_4 = arith.constant 0 : index
    %c0_5 = arith.constant 0 : index
    %4 = vector.load %arg3[%c0_4, %c0_5] : memref<1x96xf32, #tpu.memory_space<vmem>>, vector<1x96xf32>
    %5 = vector.shape_cast %4 : vector<1x96xf32> to vector<96xf32>
    %6 = vector.shape_cast %5 : vector<96xf32> to vector<1x96xf32>
    %7 = vector.broadcast %6 : vector<1x96xf32> to vector<8x96xf32>
    %8 = arith.addf %3, %7 : vector<8x96xf32>
    %9 = vector.shape_cast %8 : vector<8x96xf32> to vector<1x8x96xf32>
    %10 = vector.extract_strided_slice %9 {offsets = [0, 0, 0], sizes = [1, 8, 32], strides = [1, 1, 1]} : vector<1x8x96xf32> to vector<1x8x32xf32>
    %11 = vector.extract_strided_slice %9 {offsets = [0, 0, 32], sizes = [1, 8, 32], strides = [1, 1, 1]} : vector<1x8x96xf32> to vector<1x8x32xf32>
    %12 = vector.extract_strided_slice %9 {offsets = [0, 0, 64], sizes = [1, 8, 32], strides = [1, 1, 1]} : vector<1x8x96xf32> to vector<1x8x32xf32>
    %c0_6 = arith.constant 0 : index
    %c0_7 = arith.constant 0 : index
    %c0_8 = arith.constant 0 : index
    %13 = vector.load %arg4[%c0_6, %c0_7, %c0_8] : memref<4x8x32xf32, #tpu.memory_space<vmem>>, vector<4x8x32xf32>
    %cst_9 = arith.constant 0.000000e+00 : f32
    %14 = vector.broadcast %cst_9 : f32 to vector<8x32xf32>
    %15 = vector.extract_strided_slice %10 {offsets = [0, 0, 0], sizes = [1, 8, 8], strides = [1, 1, 1]} : vector<1x8x32xf32> to vector<1x8x8xf32>
    %16 = vector.extract_strided_slice %11 {offsets = [0, 0, 0], sizes = [1, 8, 8], strides = [1, 1, 1]} : vector<1x8x32xf32> to vector<1x8x8xf32>
    %17 = vector.extract_strided_slice %12 {offsets = [0, 0, 0], sizes = [1, 8, 8], strides = [1, 1, 1]} : vector<1x8x32xf32> to vector<1x8x8xf32>
    "tpu.trace_start"() <{level = 10 : i32, message = "bkc,bmc->bkm"}> : () -> ()
    %cst_10 = arith.constant dense<0.000000e+00> : vector<1x8x8xf32>
    %18 = tpu.matmul %15, %16, %cst_10 {dimension_numbers = #tpu.dot_dimension_numbers<[2], [2], [1], [1], [0, 0, 0, 1, 1, 1], [0], [0]>} : vector<1x8x8xf32>, vector<1x8x8xf32>, vector<1x8x8xf32> -> vector<1x8x8xf32>
    "tpu.trace_stop"() : () -> ()
    %cst_11 = arith.constant 0.353553385 : f32
    %19 = vector.broadcast %cst_11 : f32 to vector<1x8x8xf32>
    %20 = arith.mulf %18, %19 : vector<1x8x8xf32>
    %cst_12 = arith.constant dense<0xFF800000> : vector<1x8xf32>
    %21 = vector.multi_reduction <maximumf>, %20, %cst_12 [2] : vector<1x8x8xf32> to vector<1x8xf32>
    %22 = vector.shape_cast %21 : vector<1x8xf32> to vector<1x8x1xf32>
    %23 = vector.broadcast %22 : vector<1x8x1xf32> to vector<1x8x8xf32>
    %24 = arith.subf %20, %23 : vector<1x8x8xf32>
    %25 = math.exp %24 : vector<1x8x8xf32>
    %cst_13 = arith.constant dense<0.000000e+00> : vector<1x8xf32>
    %26 = vector.multi_reduction <add>, %25, %cst_13 [2] : vector<1x8x8xf32> to vector<1x8xf32>
    %27 = vector.shape_cast %26 : vector<1x8xf32> to vector<1x8x1xf32>
    %28 = vector.broadcast %27 : vector<1x8x1xf32> to vector<1x8x8xf32>
    %29 = arith.divf %25, %28 : vector<1x8x8xf32>
    "tpu.trace_start"() <{level = 10 : i32, message = "bkm,bmv->bkv"}> : () -> ()
    %cst_14 = arith.constant dense<0.000000e+00> : vector<1x8x8xf32>
    %30 = tpu.matmul %29, %17, %cst_14 {dimension_numbers = #tpu.dot_dimension_numbers<[2], [1], [1], [2], [0, 0, 0, 1, 1, 2], [0], [0]>} : vector<1x8x8xf32>, vector<1x8x8xf32>, vector<1x8x8xf32> -> vector<1x8x8xf32>
    "tpu.trace_stop"() : () -> ()
    %31 = vector.shape_cast %30 : vector<1x8x8xf32> to vector<8x8xf32>
    %32 = vector.extract_strided_slice %13 {offsets = [0, 0, 0], sizes = [1, 8, 32], strides = [1, 1, 1]} : vector<4x8x32xf32> to vector<1x8x32xf32>
    %33 = vector.shape_cast %32 : vector<1x8x32xf32> to vector<8x32xf32>
    %cst_15 = arith.constant dense<0.000000e+00> : vector<8x32xf32>
    %34 = tpu.matmul %31, %33, %cst_15 {dimension_numbers = #tpu.dot_dimension_numbers<[1], [0], [0], [1], [0, 0, 1, 1], [], []>} : vector<8x8xf32>, vector<8x32xf32>, vector<8x32xf32> -> vector<8x32xf32>
    %35 = arith.addf %14, %34 : vector<8x32xf32>
    %36 = vector.extract_strided_slice %10 {offsets = [0, 0, 8], sizes = [1, 8, 8], strides = [1, 1, 1]} : vector<1x8x32xf32> to vector<1x8x8xf32>
    %37 = vector.extract_strided_slice %11 {offsets = [0, 0, 8], sizes = [1, 8, 8], strides = [1, 1, 1]} : vector<1x8x32xf32> to vector<1x8x8xf32>
    %38 = vector.extract_strided_slice %12 {offsets = [0, 0, 8], sizes = [1, 8, 8], strides = [1, 1, 1]} : vector<1x8x32xf32> to vector<1x8x8xf32>
    "tpu.trace_start"() <{level = 10 : i32, message = "bkc,bmc->bkm"}> : () -> ()
    %cst_16 = arith.constant dense<0.000000e+00> : vector<1x8x8xf32>
    %39 = tpu.matmul %36, %37, %cst_16 {dimension_numbers = #tpu.dot_dimension_numbers<[2], [2], [1], [1], [0, 0, 0, 1, 1, 1], [0], [0]>} : vector<1x8x8xf32>, vector<1x8x8xf32>, vector<1x8x8xf32> -> vector<1x8x8xf32>
    "tpu.trace_stop"() : () -> ()
    %cst_17 = arith.constant 0.353553385 : f32
    %40 = vector.broadcast %cst_17 : f32 to vector<1x8x8xf32>
    %41 = arith.mulf %39, %40 : vector<1x8x8xf32>
    %cst_18 = arith.constant dense<0xFF800000> : vector<1x8xf32>
    %42 = vector.multi_reduction <maximumf>, %41, %cst_18 [2] : vector<1x8x8xf32> to vector<1x8xf32>
    %43 = vector.shape_cast %42 : vector<1x8xf32> to vector<1x8x1xf32>
    %44 = vector.broadcast %43 : vector<1x8x1xf32> to vector<1x8x8xf32>
    %45 = arith.subf %41, %44 : vector<1x8x8xf32>
    %46 = math.exp %45 : vector<1x8x8xf32>
    %cst_19 = arith.constant dense<0.000000e+00> : vector<1x8xf32>
    %47 = vector.multi_reduction <add>, %46, %cst_19 [2] : vector<1x8x8xf32> to vector<1x8xf32>
    %48 = vector.shape_cast %47 : vector<1x8xf32> to vector<1x8x1xf32>
    %49 = vector.broadcast %48 : vector<1x8x1xf32> to vector<1x8x8xf32>
    %50 = arith.divf %46, %49 : vector<1x8x8xf32>
    "tpu.trace_start"() <{level = 10 : i32, message = "bkm,bmv->bkv"}> : () -> ()
    %cst_20 = arith.constant dense<0.000000e+00> : vector<1x8x8xf32>
    %51 = tpu.matmul %50, %38, %cst_20 {dimension_numbers = #tpu.dot_dimension_numbers<[2], [1], [1], [2], [0, 0, 0, 1, 1, 2], [0], [0]>} : vector<1x8x8xf32>, vector<1x8x8xf32>, vector<1x8x8xf32> -> vector<1x8x8xf32>
    "tpu.trace_stop"() : () -> ()
    %52 = vector.shape_cast %51 : vector<1x8x8xf32> to vector<8x8xf32>
    %53 = vector.extract_strided_slice %13 {offsets = [1, 0, 0], sizes = [1, 8, 32], strides = [1, 1, 1]} : vector<4x8x32xf32> to vector<1x8x32xf32>
    %54 = vector.shape_cast %53 : vector<1x8x32xf32> to vector<8x32xf32>
    %cst_21 = arith.constant dense<0.000000e+00> : vector<8x32xf32>
    %55 = tpu.matmul %52, %54, %cst_21 {dimension_numbers = #tpu.dot_dimension_numbers<[1], [0], [0], [1], [0, 0, 1, 1], [], []>} : vector<8x8xf32>, vector<8x32xf32>, vector<8x32xf32> -> vector<8x32xf32>
    %56 = arith.addf %35, %55 : vector<8x32xf32>
    %57 = vector.extract_strided_slice %10 {offsets = [0, 0, 16], sizes = [1, 8, 8], strides = [1, 1, 1]} : vector<1x8x32xf32> to vector<1x8x8xf32>
    %58 = vector.extract_strided_slice %11 {offsets = [0, 0, 16], sizes = [1, 8, 8], strides = [1, 1, 1]} : vector<1x8x32xf32> to vector<1x8x8xf32>
    %59 = vector.extract_strided_slice %12 {offsets = [0, 0, 16], sizes = [1, 8, 8], strides = [1, 1, 1]} : vector<1x8x32xf32> to vector<1x8x8xf32>
    "tpu.trace_start"() <{level = 10 : i32, message = "bkc,bmc->bkm"}> : () -> ()
    %cst_22 = arith.constant dense<0.000000e+00> : vector<1x8x8xf32>
    %60 = tpu.matmul %57, %58, %cst_22 {dimension_numbers = #tpu.dot_dimension_numbers<[2], [2], [1], [1], [0, 0, 0, 1, 1, 1], [0], [0]>} : vector<1x8x8xf32>, vector<1x8x8xf32>, vector<1x8x8xf32> -> vector<1x8x8xf32>
    "tpu.trace_stop"() : () -> ()
    %cst_23 = arith.constant 0.353553385 : f32
    %61 = vector.broadcast %cst_23 : f32 to vector<1x8x8xf32>
    %62 = arith.mulf %60, %61 : vector<1x8x8xf32>
    %cst_24 = arith.constant dense<0xFF800000> : vector<1x8xf32>
    %63 = vector.multi_reduction <maximumf>, %62, %cst_24 [2] : vector<1x8x8xf32> to vector<1x8xf32>
    %64 = vector.shape_cast %63 : vector<1x8xf32> to vector<1x8x1xf32>
    %65 = vector.broadcast %64 : vector<1x8x1xf32> to vector<1x8x8xf32>
    %66 = arith.subf %62, %65 : vector<1x8x8xf32>
    %67 = math.exp %66 : vector<1x8x8xf32>
    %cst_25 = arith.constant dense<0.000000e+00> : vector<1x8xf32>
    %68 = vector.multi_reduction <add>, %67, %cst_25 [2] : vector<1x8x8xf32> to vector<1x8xf32>
    %69 = vector.shape_cast %68 : vector<1x8xf32> to vector<1x8x1xf32>
    %70 = vector.broadcast %69 : vector<1x8x1xf32> to vector<1x8x8xf32>
    %71 = arith.divf %67, %70 : vector<1x8x8xf32>
    "tpu.trace_start"() <{level = 10 : i32, message = "bkm,bmv->bkv"}> : () -> ()
    %cst_26 = arith.constant dense<0.000000e+00> : vector<1x8x8xf32>
    %72 = tpu.matmul %71, %59, %cst_26 {dimension_numbers = #tpu.dot_dimension_numbers<[2], [1], [1], [2], [0, 0, 0, 1, 1, 2], [0], [0]>} : vector<1x8x8xf32>, vector<1x8x8xf32>, vector<1x8x8xf32> -> vector<1x8x8xf32>
    "tpu.trace_stop"() : () -> ()
    %73 = vector.shape_cast %72 : vector<1x8x8xf32> to vector<8x8xf32>
    %74 = vector.extract_strided_slice %13 {offsets = [2, 0, 0], sizes = [1, 8, 32], strides = [1, 1, 1]} : vector<4x8x32xf32> to vector<1x8x32xf32>
    %75 = vector.shape_cast %74 : vector<1x8x32xf32> to vector<8x32xf32>
    %cst_27 = arith.constant dense<0.000000e+00> : vector<8x32xf32>
    %76 = tpu.matmul %73, %75, %cst_27 {dimension_numbers = #tpu.dot_dimension_numbers<[1], [0], [0], [1], [0, 0, 1, 1], [], []>} : vector<8x8xf32>, vector<8x32xf32>, vector<8x32xf32> -> vector<8x32xf32>
    %77 = arith.addf %56, %76 : vector<8x32xf32>
    %78 = vector.extract_strided_slice %10 {offsets = [0, 0, 24], sizes = [1, 8, 8], strides = [1, 1, 1]} : vector<1x8x32xf32> to vector<1x8x8xf32>
    %79 = vector.extract_strided_slice %11 {offsets = [0, 0, 24], sizes = [1, 8, 8], strides = [1, 1, 1]} : vector<1x8x32xf32> to vector<1x8x8xf32>
    %80 = vector.extract_strided_slice %12 {offsets = [0, 0, 24], sizes = [1, 8, 8], strides = [1, 1, 1]} : vector<1x8x32xf32> to vector<1x8x8xf32>
    "tpu.trace_start"() <{level = 10 : i32, message = "bkc,bmc->bkm"}> : () -> ()
    %cst_28 = arith.constant dense<0.000000e+00> : vector<1x8x8xf32>
    %81 = tpu.matmul %78, %79, %cst_28 {dimension_numbers = #tpu.dot_dimension_numbers<[2], [2], [1], [1], [0, 0, 0, 1, 1, 1], [0], [0]>} : vector<1x8x8xf32>, vector<1x8x8xf32>, vector<1x8x8xf32> -> vector<1x8x8xf32>
    "tpu.trace_stop"() : () -> ()
    %cst_29 = arith.constant 0.353553385 : f32
    %82 = vector.broadcast %cst_29 : f32 to vector<1x8x8xf32>
    %83 = arith.mulf %81, %82 : vector<1x8x8xf32>
    %cst_30 = arith.constant dense<0xFF800000> : vector<1x8xf32>
    %84 = vector.multi_reduction <maximumf>, %83, %cst_30 [2] : vector<1x8x8xf32> to vector<1x8xf32>
    %85 = vector.shape_cast %84 : vector<1x8xf32> to vector<1x8x1xf32>
    %86 = vector.broadcast %85 : vector<1x8x1xf32> to vector<1x8x8xf32>
    %87 = arith.subf %83, %86 : vector<1x8x8xf32>
    %88 = math.exp %87 : vector<1x8x8xf32>
    %cst_31 = arith.constant dense<0.000000e+00> : vector<1x8xf32>
    %89 = vector.multi_reduction <add>, %88, %cst_31 [2] : vector<1x8x8xf32> to vector<1x8xf32>
    %90 = vector.shape_cast %89 : vector<1x8xf32> to vector<1x8x1xf32>
    %91 = vector.broadcast %90 : vector<1x8x1xf32> to vector<1x8x8xf32>
    %92 = arith.divf %88, %91 : vector<1x8x8xf32>
    "tpu.trace_start"() <{level = 10 : i32, message = "bkm,bmv->bkv"}> : () -> ()
    %cst_32 = arith.constant dense<0.000000e+00> : vector<1x8x8xf32>
    %93 = tpu.matmul %92, %80, %cst_32 {dimension_numbers = #tpu.dot_dimension_numbers<[2], [1], [1], [2], [0, 0, 0, 1, 1, 2], [0], [0]>} : vector<1x8x8xf32>, vector<1x8x8xf32>, vector<1x8x8xf32> -> vector<1x8x8xf32>
    "tpu.trace_stop"() : () -> ()
    %94 = vector.shape_cast %93 : vector<1x8x8xf32> to vector<8x8xf32>
    %95 = vector.extract_strided_slice %13 {offsets = [3, 0, 0], sizes = [1, 8, 32], strides = [1, 1, 1]} : vector<4x8x32xf32> to vector<1x8x32xf32>
    %96 = vector.shape_cast %95 : vector<1x8x32xf32> to vector<8x32xf32>
    %cst_33 = arith.constant dense<0.000000e+00> : vector<8x32xf32>
    %97 = tpu.matmul %94, %96, %cst_33 {dimension_numbers = #tpu.dot_dimension_numbers<[1], [0], [0], [1], [0, 0, 1, 1], [], []>} : vector<8x8xf32>, vector<8x32xf32>, vector<8x32xf32> -> vector<8x32xf32>
    %98 = arith.addf %77, %97 : vector<8x32xf32>
    %c0_34 = arith.constant 0 : index
    %c0_35 = arith.constant 0 : index
    %99 = vector.load %arg5[%c0_34, %c0_35] : memref<1x32xf32, #tpu.memory_space<vmem>>, vector<1x32xf32>
    %100 = vector.shape_cast %99 : vector<1x32xf32> to vector<32xf32>
    %101 = vector.shape_cast %100 : vector<32xf32> to vector<1x32xf32>
    %102 = vector.broadcast %101 : vector<1x32xf32> to vector<8x32xf32>
    %103 = arith.addf %98, %102 : vector<8x32xf32>
    %104 = arith.addf %103, %1 : vector<8x32xf32>
    %c0_36 = arith.constant 0 : index
    %c0_37 = arith.constant 0 : index
    %105 = vector.load %arg6[%c0_36, %c0_37] : memref<1x32xf32, #tpu.memory_space<vmem>>, vector<1x32xf32>
    %106 = vector.shape_cast %105 : vector<1x32xf32> to vector<32xf32>
    %c0_38 = arith.constant 0 : index
    %c0_39 = arith.constant 0 : index
    %107 = vector.load %arg7[%c0_38, %c0_39] : memref<1x32xf32, #tpu.memory_space<vmem>>, vector<1x32xf32>
    %108 = vector.shape_cast %107 : vector<1x32xf32> to vector<32xf32>
    %cst_40 = arith.constant dense<0.000000e+00> : vector<8xf32>
    %109 = vector.multi_reduction <add>, %104, %cst_40 [1] : vector<8x32xf32> to vector<8xf32>
    %110 = vector.shape_cast %109 : vector<8xf32> to vector<8x1xf32>
    %cst_41 = arith.constant 3.200000e+01 : f32
    %111 = vector.broadcast %cst_41 : f32 to vector<8x1xf32>
    %112 = arith.divf %110, %111 : vector<8x1xf32>
    %113 = vector.broadcast %112 : vector<8x1xf32> to vector<8x32xf32>
    %114 = arith.subf %104, %113 : vector<8x32xf32>
    %115 = arith.mulf %114, %114 : vector<8x32xf32>
    %cst_42 = arith.constant dense<0.000000e+00> : vector<8xf32>
    %116 = vector.multi_reduction <add>, %115, %cst_42 [1] : vector<8x32xf32> to vector<8xf32>
    %117 = vector.shape_cast %116 : vector<8xf32> to vector<8x1xf32>
    %cst_43 = arith.constant 3.200000e+01 : f32
    %118 = vector.broadcast %cst_43 : f32 to vector<8x1xf32>
    %119 = arith.divf %117, %118 : vector<8x1xf32>
    %120 = vector.broadcast %112 : vector<8x1xf32> to vector<8x32xf32>
    %121 = arith.subf %104, %120 : vector<8x32xf32>
    %cst_44 = arith.constant 9.99999974E-6 : f32
    %122 = vector.broadcast %cst_44 : f32 to vector<8x1xf32>
    %123 = arith.addf %119, %122 : vector<8x1xf32>
    %124 = math.rsqrt %123 : vector<8x1xf32>
    %125 = vector.broadcast %124 : vector<8x1xf32> to vector<8x32xf32>
    %126 = arith.mulf %121, %125 : vector<8x32xf32>
    %127 = vector.shape_cast %106 : vector<32xf32> to vector<1x32xf32>
    %128 = vector.broadcast %127 : vector<1x32xf32> to vector<8x32xf32>
    %129 = arith.mulf %126, %128 : vector<8x32xf32>
    %130 = vector.shape_cast %108 : vector<32xf32> to vector<1x32xf32>
    %131 = vector.broadcast %130 : vector<1x32xf32> to vector<8x32xf32>
    %132 = arith.addf %129, %131 : vector<8x32xf32>
    %c0_45 = arith.constant 0 : index
    %c0_46 = arith.constant 0 : index
    %133 = vector.load %arg8[%c0_45, %c0_46] : memref<32x2048xf32, #tpu.memory_space<vmem>>, vector<32x2048xf32>
    %cst_47 = arith.constant dense<0.000000e+00> : vector<8x2048xf32>
    %134 = tpu.matmul %132, %133, %cst_47 {dimension_numbers = #tpu.dot_dimension_numbers<[1], [0], [0], [1], [0, 0, 1, 1], [], []>} : vector<8x32xf32>, vector<32x2048xf32>, vector<8x2048xf32> -> vector<8x2048xf32>
    %c0_48 = arith.constant 0 : index
    %c0_49 = arith.constant 0 : index
    %135 = vector.load %arg9[%c0_48, %c0_49] : memref<1x2048xf32, #tpu.memory_space<vmem>>, vector<1x2048xf32>
    %136 = vector.shape_cast %135 : vector<1x2048xf32> to vector<2048xf32>
    %137 = vector.shape_cast %136 : vector<2048xf32> to vector<1x2048xf32>
    %138 = vector.broadcast %137 : vector<1x2048xf32> to vector<8x2048xf32>
    %139 = arith.addf %134, %138 : vector<8x2048xf32>
    %cst_50 = arith.constant 0.000000e+00 : f32
    %140 = vector.broadcast %cst_50 : f32 to vector<8x2048xf32>
    %141 = arith.maximumf %139, %140 : vector<8x2048xf32>
    %c0_51 = arith.constant 0 : index
    %c0_52 = arith.constant 0 : index
    %142 = vector.load %arg10[%c0_51, %c0_52] : memref<2048x32xf32, #tpu.memory_space<vmem>>, vector<2048x32xf32>
    %cst_53 = arith.constant dense<0.000000e+00> : vector<8x32xf32>
    %143 = tpu.matmul %141, %142, %cst_53 {dimension_numbers = #tpu.dot_dimension_numbers<[1], [0], [0], [1], [0, 0, 1, 1], [], []>} : vector<8x2048xf32>, vector<2048x32xf32>, vector<8x32xf32> -> vector<8x32xf32>
    %c0_54 = arith.constant 0 : index
    %c0_55 = arith.constant 0 : index
    %144 = vector.load %arg11[%c0_54, %c0_55] : memref<1x32xf32, #tpu.memory_space<vmem>>, vector<1x32xf32>
    %145 = vector.shape_cast %144 : vector<1x32xf32> to vector<32xf32>
    %146 = vector.shape_cast %145 : vector<32xf32> to vector<1x32xf32>
    %147 = vector.broadcast %146 : vector<1x32xf32> to vector<8x32xf32>
    %148 = arith.addf %143, %147 : vector<8x32xf32>
    %149 = arith.addf %148, %132 : vector<8x32xf32>
    %c0_56 = arith.constant 0 : index
    %c0_57 = arith.constant 0 : index
    %150 = vector.load %arg12[%c0_56, %c0_57] : memref<1x32xf32, #tpu.memory_space<vmem>>, vector<1x32xf32>
    %151 = vector.shape_cast %150 : vector<1x32xf32> to vector<32xf32>
    %c0_58 = arith.constant 0 : index
    %c0_59 = arith.constant 0 : index
    %152 = vector.load %arg13[%c0_58, %c0_59] : memref<1x32xf32, #tpu.memory_space<vmem>>, vector<1x32xf32>
    %153 = vector.shape_cast %152 : vector<1x32xf32> to vector<32xf32>
    %cst_60 = arith.constant dense<0.000000e+00> : vector<8xf32>
    %154 = vector.multi_reduction <add>, %149, %cst_60 [1] : vector<8x32xf32> to vector<8xf32>
    %155 = vector.shape_cast %154 : vector<8xf32> to vector<8x1xf32>
    %cst_61 = arith.constant 3.200000e+01 : f32
    %156 = vector.broadcast %cst_61 : f32 to vector<8x1xf32>
    %157 = arith.divf %155, %156 : vector<8x1xf32>
    %158 = vector.broadcast %157 : vector<8x1xf32> to vector<8x32xf32>
    %159 = arith.subf %149, %158 : vector<8x32xf32>
    %160 = arith.mulf %159, %159 : vector<8x32xf32>
    %cst_62 = arith.constant dense<0.000000e+00> : vector<8xf32>
    %161 = vector.multi_reduction <add>, %160, %cst_62 [1] : vector<8x32xf32> to vector<8xf32>
    %162 = vector.shape_cast %161 : vector<8xf32> to vector<8x1xf32>
    %cst_63 = arith.constant 3.200000e+01 : f32
    %163 = vector.broadcast %cst_63 : f32 to vector<8x1xf32>
    %164 = arith.divf %162, %163 : vector<8x1xf32>
    %165 = vector.broadcast %157 : vector<8x1xf32> to vector<8x32xf32>
    %166 = arith.subf %149, %165 : vector<8x32xf32>
    %cst_64 = arith.constant 9.99999974E-6 : f32
    %167 = vector.broadcast %cst_64 : f32 to vector<8x1xf32>
    %168 = arith.addf %164, %167 : vector<8x1xf32>
    %169 = math.rsqrt %168 : vector<8x1xf32>
    %170 = vector.broadcast %169 : vector<8x1xf32> to vector<8x32xf32>
    %171 = arith.mulf %166, %170 : vector<8x32xf32>
    %172 = vector.shape_cast %151 : vector<32xf32> to vector<1x32xf32>
    %173 = vector.broadcast %172 : vector<1x32xf32> to vector<8x32xf32>
    %174 = arith.mulf %171, %173 : vector<8x32xf32>
    %175 = vector.shape_cast %153 : vector<32xf32> to vector<1x32xf32>
    %176 = vector.broadcast %175 : vector<1x32xf32> to vector<8x32xf32>
    %177 = arith.addf %174, %176 : vector<8x32xf32>
    %178 = vector.shape_cast %177 : vector<8x32xf32> to vector<1x8x32xf32>
    %c0_65 = arith.constant 0 : index
    %c0_66 = arith.constant 0 : index
    %c0_67 = arith.constant 0 : index
    %179 = vector.load %arg14[%c0_65, %c0_66, %c0_67] : memref<1x8x32xf32, #tpu.memory_space<vmem>>, vector<1x8x32xf32>
    tpu.vector_store %arg14[%c0_65, %c0_66, %c0_67], %178 {strides = array<i32>} : memref<1x8x32xf32, #tpu.memory_space<vmem>>, vector<1x8x32xf32>,
    return
  }
  func.func @transform_0(%arg0: i32) -> (i32, i32, i32) {
    %c0_i32 = arith.constant 0 : i32
    %c0_i32_0 = arith.constant 0 : i32
    %c0_i32_1 = arith.constant 0 : i32
    return %arg0, %c0_i32, %c0_i32_0 : i32, i32, i32
  }
  func.func @transform_1(%arg0: i32) -> (i32, i32) {
    %c0_i32 = arith.constant 0 : i32
    %c0_i32_0 = arith.constant 0 : i32
    %c0_i32_1 = arith.constant 0 : i32
    return %c0_i32, %c0_i32_0 : i32, i32
  }
  func.func @transform_2(%arg0: i32) -> (i32, i32) {
    %c0_i32 = arith.constant 0 : i32
    %c0_i32_0 = arith.constant 0 : i32
    %c0_i32_1 = arith.constant 0 : i32
    return %c0_i32, %c0_i32_0 : i32, i32
  }
  func.func @transform_3(%arg0: i32) -> (i32, i32, i32) {
    %c0_i32 = arith.constant 0 : i32
    %c0_i32_0 = arith.constant 0 : i32
    %c0_i32_1 = arith.constant 0 : i32
    %c0_i32_2 = arith.constant 0 : i32
    return %c0_i32, %c0_i32_0, %c0_i32_1 : i32, i32, i32
  }
  func.func @transform_4(%arg0: i32) -> (i32, i32) {
    %c0_i32 = arith.constant 0 : i32
    %c0_i32_0 = arith.constant 0 : i32
    %c0_i32_1 = arith.constant 0 : i32
    return %c0_i32, %c0_i32_0 : i32, i32
  }
  func.func @transform_5(%arg0: i32) -> (i32, i32) {
    %c0_i32 = arith.constant 0 : i32
    %c0_i32_0 = arith.constant 0 : i32
    %c0_i32_1 = arith.constant 0 : i32
    return %c0_i32, %c0_i32_0 : i32, i32
  }
  func.func @transform_6(%arg0: i32) -> (i32, i32) {
    %c0_i32 = arith.constant 0 : i32
    %c0_i32_0 = arith.constant 0 : i32
    %c0_i32_1 = arith.constant 0 : i32
    return %c0_i32, %c0_i32_0 : i32, i32
  }
  func.func @transform_7(%arg0: i32) -> (i32, i32) {
    %c0_i32 = arith.constant 0 : i32
    %c0_i32_0 = arith.constant 0 : i32
    %c0_i32_1 = arith.constant 0 : i32
    return %c0_i32, %c0_i32_0 : i32, i32
  }
  func.func @transform_8(%arg0: i32) -> (i32, i32) {
    %c0_i32 = arith.constant 0 : i32
    %c0_i32_0 = arith.constant 0 : i32
    %c0_i32_1 = arith.constant 0 : i32
    return %c0_i32, %c0_i32_0 : i32, i32
  }
  func.func @transform_9(%arg0: i32) -> (i32, i32) {
    %c0_i32 = arith.constant 0 : i32
    %c0_i32_0 = arith.constant 0 : i32
    %c0_i32_1 = arith.constant 0 : i32
    return %c0_i32, %c0_i32_0 : i32, i32
  }
  func.func @transform_10(%arg0: i32) -> (i32, i32) {
    %c0_i32 = arith.constant 0 : i32
    %c0_i32_0 = arith.constant 0 : i32
    %c0_i32_1 = arith.constant 0 : i32
    return %c0_i32, %c0_i32_0 : i32, i32
  }
  func.func @transform_11(%arg0: i32) -> (i32, i32) {
    %c0_i32 = arith.constant 0 : i32
    %c0_i32_0 = arith.constant 0 : i32
    %c0_i32_1 = arith.constant 0 : i32
    return %c0_i32, %c0_i32_0 : i32, i32
  }
  func.func @transform_12(%arg0: i32) -> (i32, i32) {
    %c0_i32 = arith.constant 0 : i32
    %c0_i32_0 = arith.constant 0 : i32
    %c0_i32_1 = arith.constant 0 : i32
    return %c0_i32, %c0_i32_0 : i32, i32
  }
  func.func @transform_13(%arg0: i32) -> (i32, i32, i32) {
    %c0_i32 = arith.constant 0 : i32
    %c0_i32_0 = arith.constant 0 : i32
    %c0_i32_1 = arith.constant 0 : i32
    return %arg0, %c0_i32, %c0_i32_0 : i32, i32, i32
  }
}

</mosaic_0001>

<llo_original>
// kernel: tpu_custom_call.1
$region0: #{tpu_custom_call.1}
  #allocation0 [shape = 'u32[]', space=smem, size = 0x4, offset = 0x4, fixed_abs, tag = 'smem constant byte address 0x4 - core index']
  #allocation1 [shape = 'u32[144,128]{1,0:T(1,128)}', space=vmem, size = 0x12000, scoped, tag = 'internal scratch']
  %s0 = inlined_call_operand.vmem [shape: f32[2,8,32], index: 0, kind: input, shape index: {}]
  %s1 = inlined_call_operand.vmem [shape: f32[32,96], index: 1, kind: input, shape index: {}]
  %s2 = inlined_call_operand.vmem [shape: f32[1,96], index: 2, kind: input, shape index: {}]
  %s3 = inlined_call_operand.vmem [shape: f32[4,8,32], index: 3, kind: input, shape index: {}]
  %s4 = inlined_call_operand.vmem [shape: f32[1,32], index: 4, kind: input, shape index: {}]
  %s5 = inlined_call_operand.vmem [shape: f32[1,32], index: 5, kind: input, shape index: {}]
  %s6 = inlined_call_operand.vmem [shape: f32[1,32], index: 6, kind: input, shape index: {}]
  %s7 = inlined_call_operand.vmem [shape: f32[32,2048], index: 7, kind: input, shape index: {}]
  %s8 = inlined_call_operand.vmem [shape: f32[1,2048], index: 8, kind: input, shape index: {}]
  %s9 = inlined_call_operand.vmem [shape: f32[2048,32], index: 9, kind: input, shape index: {}]
  %s10 = inlined_call_operand.vmem [shape: f32[1,32], index: 10, kind: input, shape index: {}]
  %s11 = inlined_call_operand.vmem [shape: f32[1,32], index: 11, kind: input, shape index: {}]
  %s12 = inlined_call_operand.vmem [shape: f32[1,32], index: 12, kind: input, shape index: {}]
  %s13 = inlined_call_operand.hbm [shape: f32[2,8,32], index: 13, kind: output, shape index: {}]
  %s14 = sld [smem:[#allocation0]]
  $region85: #{tpu_custom_call.1} parent=0
    _
  %s16 = ssub.s32 1, %s14
  %s17 = scalar_select 0, %s16, %s14
  $region1: #{tpu_custom_call.1} parent=0
    #allocation2 [shape = 'u8[8192]{0}', space=vmem, size = 0x2000, scoped, tag = 'output window, operand 0']
    #allocation3 [shape = 's32[2]{0}', space=sflag, size = 0x8, scoped, tag = 'scoped memory for tpu_custom_call.1']
    %18 = vsyncpa [#allocation3], 0
    %s19 = scalar_lea.sflag [#allocation3], 1
    %20 = vsyncpa %s19, 0
    loop: start=0, step=1, limit=4
    $region2: #{tpu_custom_call.1} parent=1 // loop_pre_header
      _
    $region3: #{tpu_custom_call.1} parent=1 // loop_header
      %s22 = sphi 0, %s26
      %p23 = scmp.ge.s32.totalorder %s22, 4
      %s32 = sphi 0, %s34
      %s35 = sphi 0, %s32
      %s36 = sphi 0, %s35
      %s52 = sphi 0, %s36
      %s56 = sphi 0, %s56
      %s58 = sphi 0, %s56
      %s59 = sphi 0, %s58
      %s73 = sphi 0, %s59
      %s77 = sphi 0, %s77
      %s79 = sphi 0, %s77
      %s80 = sphi 0, %s79
      %s94 = sphi 0, %s80
      %s98 = sphi 0, %s98
      %s100 = sphi 0, %s98
      %s101 = sphi 0, %s100
      %s115 = sphi 0, %s101
      %s119 = sphi 0, %s119
      %s121 = sphi 0, %s119
      %s122 = sphi 0, %s121
      %s136 = sphi 0, %s122
      %s140 = sphi 0, %s140
      %s142 = sphi 0, %s140
      %s143 = sphi 0, %s142
      %s157 = sphi 0, %s143
      %s161 = sphi 0, %s161
      %s163 = sphi 0, %s161
      %s164 = sphi 0, %s163
      %s178 = sphi 0, %s164
      %s182 = sphi 0, %s182
      %s184 = sphi 0, %s182
      %s185 = sphi 0, %s184
      %s199 = sphi 0, %s185
      %s203 = sphi 0, %s203
      %s205 = sphi 0, %s203
      %s206 = sphi 0, %s205
      %s220 = sphi 0, %s206
      %s224 = sphi 0, %s224
      %s226 = sphi 0, %s224
      %s227 = sphi 0, %s226
      %s241 = sphi 0, %s227
      %s245 = sphi 0, %s245
      %s247 = sphi 0, %s245
      %s248 = sphi 0, %s247
      %s262 = sphi 0, %s248
      %s266 = sphi 0, %s266
      %s268 = sphi 0, %s266
      %s269 = sphi 0, %s268
      %s283 = sphi 0, %s269
      %s287 = sphi 0, %s287
      %s289 = sphi 0, %s287
      %s290 = sphi 0, %s289
      %s304 = sphi 0, %s290
      %s310 = sphi 0, %s312
      %s313 = sphi 0, %s310
      %s314 = sphi 0, %s313
      %s330 = sphi 0, %s314
    $region4: #{tpu_custom_call.1} parent=1 // loop_header_branch
      %25 = sbr.rel (%p23) target = $region8
    $region5: #{tpu_custom_call.1} parent=1 // loop_body
      %s27 = ssub.s32 %s22, 1
      %s28 = ssub.s32 %s22, 2
      %s29 = sadd.s32 %s22, 1
      %s30 = ssub.s32 %s22, %s29
      %p31 = scmp.eq.s32.totalorder %s30, 0
      %s33 = sadd.s32 %s32, 1
      %s34 = scalar_select %p31, %s32, %s33
      %p37 = pneg %p31
      %p38 = scmp.eq.s32.totalorder %s22, 1
      %p39 = por %p37, %p38
      %p40 = scmp.ne.s32.totalorder %s32, %s35
      %p41 = scmp.eq.s32.totalorder %s22, 0
      %p42 = por %p40, %p41
      %p43 = scmp.ne.s32.totalorder %s32, %s35
      %p44 = scmp.eq.s32.totalorder %s27, 1
      %p45 = por %p43, %p44
      %p46 = scmp.ne.s32.totalorder %s35, %s36
      %p47 = scmp.eq.s32.totalorder %s27, 0
      %p48 = por %p46, %p47
      %p49 = scmp.ne.s32.totalorder %s35, %s36
      %p50 = scmp.eq.s32.totalorder %s28, 1
      %p51 = por %p49, %p50
      %p53 = scmp.ne.s32.totalorder %s36, %s52
      %p54 = scmp.eq.s32.totalorder %s28, 0
      %p55 = por %p53, %p54
      %s57 = sadd.s32 %s56, 1
      %p60 = scmp.eq.s32.totalorder %s22, 1
      %p61 = scmp.ne.s32.totalorder %s56, %s58
      %p62 = scmp.eq.s32.totalorder %s22, 0
      %p63 = por %p61, %p62
      %p64 = scmp.ne.s32.totalorder %s56, %s58
      %p65 = scmp.eq.s32.totalorder %s27, 1
      %p66 = por %p64, %p65
      %p67 = scmp.ne.s32.totalorder %s58, %s59
      %p68 = scmp.eq.s32.totalorder %s27, 0
      %p69 = por %p67, %p68
      %p70 = scmp.ne.s32.totalorder %s58, %s59
      %p71 = scmp.eq.s32.totalorder %s28, 1
      %p72 = por %p70, %p71
      %p74 = scmp.ne.s32.totalorder %s59, %s73
      %p75 = scmp.eq.s32.totalorder %s28, 0
      %p76 = por %p74, %p75
      %s78 = sadd.s32 %s77, 1
      %p81 = scmp.eq.s32.totalorder %s22, 1
      %p82 = scmp.ne.s32.totalorder %s77, %s79
      %p83 = scmp.eq.s32.totalorder %s22, 0
      %p84 = por %p82, %p83
      %p85 = scmp.ne.s32.totalorder %s77, %s79
      %p86 = scmp.eq.s32.totalorder %s27, 1
      %p87 = por %p85, %p86
      %p88 = scmp.ne.s32.totalorder %s79, %s80
      %p89 = scmp.eq.s32.totalorder %s27, 0
      %p90 = por %p88, %p89
      %p91 = scmp.ne.s32.totalorder %s79, %s80
      %p92 = scmp.eq.s32.totalorder %s28, 1
      %p93 = por %p91, %p92
      %p95 = scmp.ne.s32.totalorder %s80, %s94
      %p96 = scmp.eq.s32.totalorder %s28, 0
      %p97 = por %p95, %p96
      %s99 = sadd.s32 %s98, 1
      %p102 = scmp.eq.s32.totalorder %s22, 1
      %p103 = scmp.ne.s32.totalorder %s98, %s100
      %p104 = scmp.eq.s32.totalorder %s22, 0
      %p105 = por %p103, %p104
      %p106 = scmp.ne.s32.totalorder %s98, %s100
      %p107 = scmp.eq.s32.totalorder %s27, 1
      %p108 = por %p106, %p107
      %p109 = scmp.ne.s32.totalorder %s100, %s101
      %p110 = scmp.eq.s32.totalorder %s27, 0
      %p111 = por %p109, %p110
      %p112 = scmp.ne.s32.totalorder %s100, %s101
      %p113 = scmp.eq.s32.totalorder %s28, 1
      %p114 = por %p112, %p113
      %p116 = scmp.ne.s32.totalorder %s101, %s115
      %p117 = scmp.eq.s32.totalorder %s28, 0
      %p118 = por %p116, %p117
      %s120 = sadd.s32 %s119, 1
      %p123 = scmp.eq.s32.totalorder %s22, 1
      %p124 = scmp.ne.s32.totalorder %s119, %s121
      %p125 = scmp.eq.s32.totalorder %s22, 0
      %p126 = por %p124, %p125
      %p127 = scmp.ne.s32.totalorder %s119, %s121
      %p128 = scmp.eq.s32.totalorder %s27, 1
      %p129 = por %p127, %p128
      %p130 = scmp.ne.s32.totalorder %s121, %s122
      %p131 = scmp.eq.s32.totalorder %s27, 0
      %p132 = por %p130, %p131
      %p133 = scmp.ne.s32.totalorder %s121, %s122
      %p134 = scmp.eq.s32.totalorder %s28, 1
      %p135 = por %p133, %p134
      %p137 = scmp.ne.s32.totalorder %s122, %s136
      %p138 = scmp.eq.s32.totalorder %s28, 0
      %p139 = por %p137, %p138
      %s141 = sadd.s32 %s140, 1
      %p144 = scmp.eq.s32.totalorder %s22, 1
      %p145 = scmp.ne.s32.totalorder %s140, %s142
      %p146 = scmp.eq.s32.totalorder %s22, 0
      %p147 = por %p145, %p146
      %p148 = scmp.ne.s32.totalorder %s140, %s142
      %p149 = scmp.eq.s32.totalorder %s27, 1
      %p150 = por %p148, %p149
      %p151 = scmp.ne.s32.totalorder %s142, %s143
      %p152 = scmp.eq.s32.totalorder %s27, 0
      %p153 = por %p151, %p152
      %p154 = scmp.ne.s32.totalorder %s142, %s143
      %p155 = scmp.eq.s32.totalorder %s28, 1
      %p156 = por %p154, %p155
      %p158 = scmp.ne.s32.totalorder %s143, %s157
      %p159 = scmp.eq.s32.totalorder %s28, 0
      %p160 = por %p158, %p159
      %s162 = sadd.s32 %s161, 1
      %p165 = scmp.eq.s32.totalorder %s22, 1
      %p166 = scmp.ne.s32.totalorder %s161, %s163
      %p167 = scmp.eq.s32.totalorder %s22, 0
      %p168 = por %p166, %p167
      %p169 = scmp.ne.s32.totalorder %s161, %s163
      %p170 = scmp.eq.s32.totalorder %s27, 1
      %p171 = por %p169, %p170
      %p172 = scmp.ne.s32.totalorder %s163, %s164
      %p173 = scmp.eq.s32.totalorder %s27, 0
      %p174 = por %p172, %p173
      %p175 = scmp.ne.s32.totalorder %s163, %s164
      %p176 = scmp.eq.s32.totalorder %s28, 1
      %p177 = por %p175, %p176
      %p179 = scmp.ne.s32.totalorder %s164, %s178
      %p180 = scmp.eq.s32.totalorder %s28, 0
      %p181 = por %p179, %p180
      %s183 = sadd.s32 %s182, 1
      %p186 = scmp.eq.s32.totalorder %s22, 1
      %p187 = scmp.ne.s32.totalorder %s182, %s184
      %p188 = scmp.eq.s32.totalorder %s22, 0
      %p189 = por %p187, %p188
      %p190 = scmp.ne.s32.totalorder %s182, %s184
      %p191 = scmp.eq.s32.totalorder %s27, 1
      %p192 = por %p190, %p191
      %p193 = scmp.ne.s32.totalorder %s184, %s185
      %p194 = scmp.eq.s32.totalorder %s27, 0
      %p195 = por %p193, %p194
      %p196 = scmp.ne.s32.totalorder %s184, %s185
      %p197 = scmp.eq.s32.totalorder %s28, 1
      %p198 = por %p196, %p197
      %p200 = scmp.ne.s32.totalorder %s185, %s199
      %p201 = scmp.eq.s32.totalorder %s28, 0
      %p202 = por %p200, %p201
      %s204 = sadd.s32 %s203, 1
      %p207 = scmp.eq.s32.totalorder %s22, 1
      %p208 = scmp.ne.s32.totalorder %s203, %s205
      %p209 = scmp.eq.s32.totalorder %s22, 0
      %p210 = por %p208, %p209
      %p211 = scmp.ne.s32.totalorder %s203, %s205
      %p212 = scmp.eq.s32.totalorder %s27, 1
      %p213 = por %p211, %p212
      %p214 = scmp.ne.s32.totalorder %s205, %s206
      %p215 = scmp.eq.s32.totalorder %s27, 0
      %p216 = por %p214, %p215
      %p217 = scmp.ne.s32.totalorder %s205, %s206
      %p218 = scmp.eq.s32.totalorder %s28, 1
      %p219 = por %p217, %p218
      %p221 = scmp.ne.s32.totalorder %s206, %s220
      %p222 = scmp.eq.s32.totalorder %s28, 0
      %p223 = por %p221, %p222
      %s225 = sadd.s32 %s224, 1
      %p228 = scmp.eq.s32.totalorder %s22, 1
      %p229 = scmp.ne.s32.totalorder %s224, %s226
      %p230 = scmp.eq.s32.totalorder %s22, 0
      %p231 = por %p229, %p230
      %p232 = scmp.ne.s32.totalorder %s224, %s226
      %p233 = scmp.eq.s32.totalorder %s27, 1
      %p234 = por %p232, %p233
      %p235 = scmp.ne.s32.totalorder %s226, %s227
      %p236 = scmp.eq.s32.totalorder %s27, 0
      %p237 = por %p235, %p236
      %p238 = scmp.ne.s32.totalorder %s226, %s227
      %p239 = scmp.eq.s32.totalorder %s28, 1
      %p240 = por %p238, %p239
      %p242 = scmp.ne.s32.totalorder %s227, %s241
      %p243 = scmp.eq.s32.totalorder %s28, 0
      %p244 = por %p242, %p243
      %s246 = sadd.s32 %s245, 1
      %p249 = scmp.eq.s32.totalorder %s22, 1
      %p250 = scmp.ne.s32.totalorder %s245, %s247
      %p251 = scmp.eq.s32.totalorder %s22, 0
      %p252 = por %p250, %p251
      %p253 = scmp.ne.s32.totalorder %s245, %s247
      %p254 = scmp.eq.s32.totalorder %s27, 1
      %p255 = por %p253, %p254
      %p256 = scmp.ne.s32.totalorder %s247, %s248
      %p257 = scmp.eq.s32.totalorder %s27, 0
      %p258 = por %p256, %p257
      %p259 = scmp.ne.s32.totalorder %s247, %s248
      %p260 = scmp.eq.s32.totalorder %s28, 1
      %p261 = por %p259, %p260
      %p263 = scmp.ne.s32.totalorder %s248, %s262
      %p264 = scmp.eq.s32.totalorder %s28, 0
      %p265 = por %p263, %p264
      %s267 = sadd.s32 %s266, 1
      %p270 = scmp.eq.s32.totalorder %s22, 1
      %p271 = scmp.ne.s32.totalorder %s266, %s268
      %p272 = scmp.eq.s32.totalorder %s22, 0
      %p273 = por %p271, %p272
      %p274 = scmp.ne.s32.totalorder %s266, %s268
      %p275 = scmp.eq.s32.totalorder %s27, 1
      %p276 = por %p274, %p275
      %p277 = scmp.ne.s32.totalorder %s268, %s269
      %p278 = scmp.eq.s32.totalorder %s27, 0
      %p279 = por %p277, %p278
      %p280 = scmp.ne.s32.totalorder %s268, %s269
      %p281 = scmp.eq.s32.totalorder %s28, 1
      %p282 = por %p280, %p281
      %p284 = scmp.ne.s32.totalorder %s269, %s283
      %p285 = scmp.eq.s32.totalorder %s28, 0
      %p286 = por %p284, %p285
      %s288 = sadd.s32 %s287, 1
      %p291 = scmp.eq.s32.totalorder %s22, 1
      %p292 = scmp.ne.s32.totalorder %s287, %s289
      %p293 = scmp.eq.s32.totalorder %s22, 0
      %p294 = por %p292, %p293
      %p295 = scmp.ne.s32.totalorder %s287, %s289
      %p296 = scmp.eq.s32.totalorder %s27, 1
      %p297 = por %p295, %p296
      %p298 = scmp.ne.s32.totalorder %s289, %s290
      %p299 = scmp.eq.s32.totalorder %s27, 0
      %p300 = por %p298, %p299
      %p301 = scmp.ne.s32.totalorder %s289, %s290
      %p302 = scmp.eq.s32.totalorder %s28, 1
      %p303 = por %p301, %p302
      %p305 = scmp.ne.s32.totalorder %s290, %s304
      %p306 = scmp.eq.s32.totalorder %s28, 0
      %p307 = por %p305, %p306
      %s308 = ssub.s32 %s22, %s29
      %p309 = scmp.eq.s32.totalorder %s308, 0
      %s311 = sadd.s32 %s310, 1
      %s312 = scalar_select %p309, %s310, %s311
      %p315 = pneg %p309
      %p316 = scmp.eq.s32.totalorder %s22, 1
      %p317 = por %p315, %p316
      %p318 = scmp.ne.s32.totalorder %s310, %s313
      %p319 = scmp.eq.s32.totalorder %s22, 0
      %p320 = por %p318, %p319
      %p321 = scmp.ne.s32.totalorder %s310, %s313
      %p322 = scmp.eq.s32.totalorder %s27, 1
      %p323 = por %p321, %p322
      %p324 = scmp.ne.s32.totalorder %s313, %s314
      %p325 = scmp.eq.s32.totalorder %s27, 0
      %p326 = por %p324, %p325
      %p327 = scmp.ne.s32.totalorder %s313, %s314
      %p328 = scmp.eq.s32.totalorder %s28, 1
      %p329 = por %p327, %p328
      %p331 = scmp.ne.s32.totalorder %s314, %s330
      %p332 = scmp.eq.s32.totalorder %s28, 0
      %p333 = por %p331, %p332
      %p334 = scmp.le.s32.totalorder 1, %s22
      %p335 = scmp.lt.s32.totalorder %s22, 3
      %p336 = pnand %p334, %p335
      %p337 = pneg %p336
      // Predicated region
      $region9: #{tpu_custom_call.1} parent=5 // pred_check
        _
      $region10: #{tpu_custom_call.1} parent=5 // pred_check_branch
        %339 = sbr.rel (%p336) target = $region12
      $region11: #{tpu_custom_call.1} parent=5 // pred_region
        %s340 = ssub.s32 %s22, 1
        // Predicated region
        $region13: #{tpu_custom_call.1} parent=11 // pred_check
          %p341 = pneg %p69
        $region14: #{tpu_custom_call.1} parent=11 // pred_check_branch
          %343 = sbr.rel (%p341) target = $region16
        $region15: #{tpu_custom_call.1} parent=11 // pred_region
          _
        $region16: #{tpu_custom_call.1} parent=11 // pred_fallthru
          _
        // Predicated region
        $region17: #{tpu_custom_call.1} parent=11 // pred_check
          %p344 = pneg %p90
        $region18: #{tpu_custom_call.1} parent=11 // pred_check_branch
          %346 = sbr.rel (%p344) target = $region20
        $region19: #{tpu_custom_call.1} parent=11 // pred_region
          _
        $region20: #{tpu_custom_call.1} parent=11 // pred_fallthru
          _
        // Predicated region
        $region21: #{tpu_custom_call.1} parent=11 // pred_check
          %p347 = pneg %p111
        $region22: #{tpu_custom_call.1} parent=11 // pred_check_branch
          %349 = sbr.rel (%p347) target = $region24
        $region23: #{tpu_custom_call.1} parent=11 // pred_region
          _
        $region24: #{tpu_custom_call.1} parent=11 // pred_fallthru
          _
        // Predicated region
        $region25: #{tpu_custom_call.1} parent=11 // pred_check
          %p350 = pneg %p132
        $region26: #{tpu_custom_call.1} parent=11 // pred_check_branch
          %352 = sbr.rel (%p350) target = $region28
        $region27: #{tpu_custom_call.1} parent=11 // pred_region
          _
        $region28: #{tpu_custom_call.1} parent=11 // pred_fallthru
          _
        // Predicated region
        $region29: #{tpu_custom_call.1} parent=11 // pred_check
          %p353 = pneg %p153
        $region30: #{tpu_custom_call.1} parent=11 // pred_check_branch
          %355 = sbr.rel (%p353) target = $region32
        $region31: #{tpu_custom_call.1} parent=11 // pred_region
          _
        $region32: #{tpu_custom_call.1} parent=11 // pred_fallthru
          _
        // Predicated region
        $region33: #{tpu_custom_call.1} parent=11 // pred_check
          %p356 = pneg %p174
        $region34: #{tpu_custom_call.1} parent=11 // pred_check_branch
          %358 = sbr.rel (%p356) target = $region36
        $region35: #{tpu_custom_call.1} parent=11 // pred_region
          _
        $region36: #{tpu_custom_call.1} parent=11 // pred_fallthru
          _
        // Predicated region
        $region37: #{tpu_custom_call.1} parent=11 // pred_check
          %p359 = pneg %p195
        $region38: #{tpu_custom_call.1} parent=11 // pred_check_branch
          %361 = sbr.rel (%p359) target = $region40
        $region39: #{tpu_custom_call.1} parent=11 // pred_region
          _
        $region40: #{tpu_custom_call.1} parent=11 // pred_fallthru
          _
        // Predicated region
        $region41: #{tpu_custom_call.1} parent=11 // pred_check
          %p362 = pneg %p216
        $region42: #{tpu_custom_call.1} parent=11 // pred_check_branch
          %364 = sbr.rel (%p362) target = $region44
        $region43: #{tpu_custom_call.1} parent=11 // pred_region
          _
        $region44: #{tpu_custom_call.1} parent=11 // pred_fallthru
          _
        // Predicated region
        $region45: #{tpu_custom_call.1} parent=11 // pred_check
          %p365 = pneg %p237
        $region46: #{tpu_custom_call.1} parent=11 // pred_check_branch
          %367 = sbr.rel (%p365) target = $region48
        $region47: #{tpu_custom_call.1} parent=11 // pred_region
          _
        $region48: #{tpu_custom_call.1} parent=11 // pred_fallthru
          _
        // Predicated region
        $region49: #{tpu_custom_call.1} parent=11 // pred_check
          %p368 = pneg %p258
        $region50: #{tpu_custom_call.1} parent=11 // pred_check_branch
          %370 = sbr.rel (%p368) target = $region52
        $region51: #{tpu_custom_call.1} parent=11 // pred_region
          _
        $region52: #{tpu_custom_call.1} parent=11 // pred_fallthru
          _
        // Predicated region
        $region53: #{tpu_custom_call.1} parent=11 // pred_check
          %p371 = pneg %p279
        $region54: #{tpu_custom_call.1} parent=11 // pred_check_branch
          %373 = sbr.rel (%p371) target = $region56
        $region55: #{tpu_custom_call.1} parent=11 // pred_region
          _
        $region56: #{tpu_custom_call.1} parent=11 // pred_fallthru
          _
        // Predicated region
        $region57: #{tpu_custom_call.1} parent=11 // pred_check
          %p374 = pneg %p300
        $region58: #{tpu_custom_call.1} parent=11 // pred_check_branch
          %376 = sbr.rel (%p374) target = $region60
        $region59: #{tpu_custom_call.1} parent=11 // pred_region
          _
        $region60: #{tpu_custom_call.1} parent=11 // pred_fallthru
          _
      $region12: #{tpu_custom_call.1} parent=5 // pred_fallthru
        _
      %p377 = scmp.lt.s32.totalorder %s22, 2
      // Predicated region
      $region61: #{tpu_custom_call.1} parent=5 // pred_check
        %p378 = pneg %p377
      $region62: #{tpu_custom_call.1} parent=5 // pred_check_branch
        %380 = sbr.rel (%p378) target = $region64
      $region63: #{tpu_custom_call.1} parent=5 // pred_region
        // Predicated region
        $region65: #{tpu_custom_call.1} parent=63 // pred_check
          %p381 = pneg %p42
        $region66: #{tpu_custom_call.1} parent=63 // pred_check_branch
          %383 = sbr.rel (%p381) target = $region68
        $region67: #{tpu_custom_call.1} parent=63 // pred_region
          %p384 = scmp.lt.s32.totalorder %s22, 1
          %s385 = scalar_select %p384, %s22, 1
          %s386 = smul.addr %s385, 8
          %s387 = scalar_lea.vmem %s0, %s386
        $region68: #{tpu_custom_call.1} parent=63 // pred_fallthru
          _
      $region64: #{tpu_custom_call.1} parent=5 // pred_fallthru
        _
      %p388 = scmp.le.s32.totalorder 1, %s22
      %p389 = scmp.lt.s32.totalorder %s22, 3
      %p390 = pnand %p388, %p389
      %p391 = pneg %p390
      // Predicated region
      $region69: #{tpu_custom_call.1} parent=5 // pred_check
        _
      $region70: #{tpu_custom_call.1} parent=5 // pred_check_branch
        %393 = sbr.rel (%p390) target = $region72
      $region71: #{tpu_custom_call.1} parent=5 // pred_region
        %s394 = ssub.s32 %s22, 1
        %p395 = scmp.lt.s32.totalorder %s27, 1
        %s396 = scalar_select %p395, %s27, 1
        %s397 = smul.addr %s396, 8
        %s398 = scalar_lea.vmem %s0, %s397
        %p399 = pneg %p48
        %p400 = pneg %p45
        %p401 = pneg %p69
        %p402 = pneg %p66
        %p403 = pneg %p90
        %p404 = pneg %p87
        %p405 = pneg %p111
        %p406 = pneg %p108
        %p407 = pneg %p132
        %p408 = pneg %p129
        %p409 = pneg %p153
        %p410 = pneg %p150
        %p411 = pneg %p174
        %p412 = pneg %p171
        %p413 = pneg %p195
        %p414 = pneg %p192
        %p415 = pneg %p216
        %p416 = pneg %p213
        %p417 = pneg %p237
        %p418 = pneg %p234
        %p419 = pneg %p258
        %p420 = pneg %p255
        %p421 = pneg %p279
        %p422 = pneg %p276
        %p423 = pneg %p300
        %p424 = pneg %p297
        %p425 = pneg %p326
        %p426 = pneg %p323
        %s427 = sand.u32 %s313, 1
        %s428 = scalar_lea.sflag [#allocation3], %s427
        %s429 = sand.u32 %s313, 1
        %s430 = smul.addr %s429, 8
        %s431 = scalar_lea.vmem [#allocation2], %s430
        %p432 = scmp.lt.s32.totalorder %s27, 1
        %s433 = scalar_select %p432, %s27, 1
        %s434 = smul.addr %s433, 8
        %s435 = scalar_lea.vmem %s0, %s434
        %v436 = vld [vmem:[%s435] sm:$0xff]
        %v437 = vld [vmem:[%s1] sm:$0xff]
        %v438 = vld [vmem:[%s1 + $0x8] sm:$0xff]
        %v439 = vld [vmem:[%s1 + $0x10] sm:$0xff]
        %v440 = vld [vmem:[%s1 + $0x18] sm:$0xff]
        %v441 = vld [vmem:[%s2] sm:$0x1]
        %v443 = vlaneseq
        %v444 = vshrl.u32 %v443, 7
        %v445 = vsub.s32 0, %v444
        %v446 = vrot.slane %v441, %v445
        %vm448 = vcmask 261120
        %v450 = vsel %vm448, %v436, 0
        %452 = vmatprep.subr.mxu0 0.0
        %453 = vmatpush1.msra.mxu0 0.0
        %454 = vmatprep.subr.mxu0 0.0
        %455 = vmatpush1.msra.mxu0 0.0
        %456 = vmatprep.subr.mxu0 0.0
        %457 = vmatpush1.msra.mxu0 0.0
        %458 = vmatprep.subr.mxu0 0.0
        %459 = vmatpush1.msra.mxu0 0.0
        %460 = vmatprep.subr.mxu0 0.0
        %461 = vmatpush1.msra.mxu0 0.0
        %462 = vmatprep.subr.mxu0 0.0
        %463 = vmatpush1.msra.mxu0 0.0
        %464 = vmatprep.subr.mxu0 0.0
        %465 = vmatpush1.msra.mxu0 0.0
        %466 = vmatprep.subr.mxu0 0.0
        %467 = vmatpush1.msra.mxu0 0.0
        %468 = vmatprep.subr.mxu0 0.0
        %469 = vmatpush1.msra.mxu0 0.0
        %470 = vmatprep.subr.mxu0 0.0
        %471 = vmatpush1.msra.mxu0 0.0
        %472 = vmatprep.subr.mxu0 0.0
        %473 = vmatpush1.msra.mxu0 0.0
        %474 = vmatprep.subr.mxu0 0.0
        %475 = vmatpush1.msra.mxu0 0.0
        %476 = vmatprep.subr.mxu0 0.0
        %477 = vmatpush1.msra.mxu0 %v440
        %478 = vmatprep.subr.mxu0 0.0
        %479 = vmatpush1.msra.mxu0 %v439
        %480 = vmatprep.subr.mxu0 0.0
        %481 = vmatpush1.msra.mxu0 %v438
        %482 = vmatprep.subr.mxu0 0.0
        %483 = vmatpush1.msra.mxu0 %v437
        %484 = vmatprep.subr.mxu0 0.0
        %485 = vmatpush2.msra.mxu0 0.0
        %486 = vmatprep.subr.mxu0 0.0
        %487 = vmatpush2.msra.mxu0 0.0
        %488 = vmatprep.subr.mxu0 0.0
        %489 = vmatpush2.msra.mxu0 0.0
        %490 = vmatprep.subr.mxu0 0.0
        %491 = vmatpush2.msra.mxu0 0.0
        %492 = vmatprep.subr.mxu0 0.0
        %493 = vmatpush2.msra.mxu0 0.0
        %494 = vmatprep.subr.mxu0 0.0
        %495 = vmatpush2.msra.mxu0 0.0
        %496 = vmatprep.subr.mxu0 0.0
        %497 = vmatpush2.msra.mxu0 0.0
        %498 = vmatprep.subr.mxu0 0.0
        %499 = vmatpush2.msra.mxu0 0.0
        %500 = vmatprep.subr.mxu0 0.0
        %501 = vmatpush2.msra.mxu0 0.0
        %502 = vmatprep.subr.mxu0 0.0
        %503 = vmatpush2.msra.mxu0 0.0
        %504 = vmatprep.subr.mxu0 0.0
        %505 = vmatpush2.msra.mxu0 0.0
        %506 = vmatprep.subr.mxu0 0.0
        %507 = vmatpush2.msra.mxu0 0.0
        %508 = vmatprep.subr.mxu0 0.0
        %509 = vmatpush2.msra.mxu0 0.0
        %510 = vmatprep.subr.mxu0 0.0
        %511 = vmatpush2.msra.mxu0 0.0
        %512 = vmatprep.subr.mxu0 0.0
        %513 = vmatpush2.msra.mxu0 0.0
        %514 = vmatprep.subr.mxu0 0.0
        %515 = vmatpush2.msra.mxu0 0.0
        %516 = vmatprep.mubr.f32.mxu0 0.0
        %517 = vmatmul.mubr.f32.gmra.mxu0 %v450
        %v518 = vpop.f32.mrf.mxu0
        %v519 = vadd.f32 %v446, %v518
        %v520 = vpop.f32.mrf.mxu0
        %521 = vdwg.mxu0
        %v522 = vld [vmem:[%s3] sm:$0xff]
        %v523 = vld [vmem:[%s3 + $0x8] sm:$0xff]
        %v524 = vld [vmem:[%s3 + $0x10] sm:$0xff]
        %v525 = vld [vmem:[%s3 + $0x18] sm:$0xff]
        %527 = vrot.lane.b32.xlu0 %v519, 96
        %v528 = vpop.permute.xlu0 %527
        %vm529 = vcmask 64512
        %v530 = vsel %vm529, %v519, 0
        %v532 = vsel %vm529, %v528, 0
        %534 = vmatprep.subr.mxu0 0.0
        %535 = vmatpush1.xpose.msra.mxu0 0.0
        %536 = vmatprep.subr.mxu0 0.0
        %537 = vmatpush1.xpose.msra.mxu0 0.0
        %538 = vmatprep.subr.mxu0 0.0
        %539 = vmatpush1.xpose.msra.mxu0 0.0
        %540 = vmatprep.subr.mxu0 0.0
        %541 = vmatpush1.xpose.msra.mxu0 0.0
        %542 = vmatprep.subr.mxu0 0.0
        %543 = vmatpush1.xpose.msra.mxu0 0.0
        %544 = vmatprep.subr.mxu0 0.0
        %545 = vmatpush1.xpose.msra.mxu0 0.0
        %546 = vmatprep.subr.mxu0 0.0
        %547 = vmatpush1.xpose.msra.mxu0 0.0
        %548 = vmatprep.subr.mxu0 0.0
        %549 = vmatpush1.xpose.msra.mxu0 0.0
        %550 = vmatprep.subr.mxu0 0.0
        %551 = vmatpush1.xpose.msra.mxu0 0.0
        %552 = vmatprep.subr.mxu0 0.0
        %553 = vmatpush1.xpose.msra.mxu0 0.0
        %554 = vmatprep.subr.mxu0 0.0
        %555 = vmatpush1.xpose.msra.mxu0 0.0
        %556 = vmatprep.subr.mxu0 0.0
        %557 = vmatpush1.xpose.msra.mxu0 0.0
        %558 = vmatprep.subr.mxu0 0.0
        %559 = vmatpush1.xpose.msra.mxu0 0.0
        %560 = vmatprep.subr.mxu0 0.0
        %561 = vmatpush1.xpose.msra.mxu0 0.0
        %562 = vmatprep.subr.mxu0 0.0
        %563 = vmatpush1.xpose.msra.mxu0 0.0
        %564 = vmatprep.subr.mxu0 0.0
        %565 = vmatpush1.xpose.msra.mxu0 %v532
        %566 = vmatprep.subr.mxu0 0.0
        %567 = vmatpush2.xpose.msra.mxu0 0.0
        %568 = vmatprep.subr.mxu0 0.0
        %569 = vmatpush2.xpose.msra.mxu0 0.0
        %570 = vmatprep.subr.mxu0 0.0
        %571 = vmatpush2.xpose.msra.mxu0 0.0
        %572 = vmatprep.subr.mxu0 0.0
        %573 = vmatpush2.xpose.msra.mxu0 0.0
        %574 = vmatprep.subr.mxu0 0.0
        %575 = vmatpush2.xpose.msra.mxu0 0.0
        %576 = vmatprep.subr.mxu0 0.0
        %577 = vmatpush2.xpose.msra.mxu0 0.0
        %578 = vmatprep.subr.mxu0 0.0
        %579 = vmatpush2.xpose.msra.mxu0 0.0
        %580 = vmatprep.subr.mxu0 0.0
        %581 = vmatpush2.xpose.msra.mxu0 0.0
        %582 = vmatprep.subr.mxu0 0.0
        %583 = vmatpush2.xpose.msra.mxu0 0.0
        %584 = vmatprep.subr.mxu0 0.0
        %585 = vmatpush2.xpose.msra.mxu0 0.0
        %586 = vmatprep.subr.mxu0 0.0
        %587 = vmatpush2.xpose.msra.mxu0 0.0
        %588 = vmatprep.subr.mxu0 0.0
        %589 = vmatpush2.xpose.msra.mxu0 0.0
        %590 = vmatprep.subr.mxu0 0.0
        %591 = vmatpush2.xpose.msra.mxu0 0.0
        %592 = vmatprep.subr.mxu0 0.0
        %593 = vmatpush2.xpose.msra.mxu0 0.0
        %594 = vmatprep.subr.mxu0 0.0
        %595 = vmatpush2.xpose.msra.mxu0 0.0
        %596 = vmatprep.subr.mxu0 0.0
        %597 = vmatpush2.xpose.msra.mxu0 0.0
        %598 = vmatprep.mubr.f32.mxu0 0.0
        %599 = vmatmul.mubr.f32.gmra.mxu0 %v530
        %v600 = vpop.f32.mrf.mxu0
        %v601 = vadd.f32 0.0, %v600
        %v602 = vpop.f32.mrf.mxu0
        %603 = vdwg.mxu0
        %v604 = vmul.f32 %v601, 0.35355338
        %v605 = vsel %vm529, %v604, -inf
        %606 = vmax.xlane.f32.xlu0 %v605
        %v607 = vpop.xlane.xlu0 %606
        %v608 = vsub.f32 %v604, %v607
        %v609 = vmul.f32 %v608, 1.442695
        %v610 = vpow.pop %v609
        %v611 = vsel %vm529, %v610, 0.0
        %612 = vadd.xlane.f32.xlu0 %v611
        %v613 = vpop.xlane.xlu0 %612
        %v614 = vrcp.pop %v613
        %v615 = vmul.f32 %v610, %v614
        %616 = vrot.lane.b32.xlu0 %v519, 64
        %v617 = vpop.permute.xlu0 %616
        %v620 = vsel %vm529, %v615, 0
        %622 = vmatprep.subr.mxu0 0.0
        %623 = vmatpush1.msra.mxu0 0.0
        %624 = vmatprep.subr.mxu0 0.0
        %625 = vmatpush1.msra.mxu0 0.0
        %626 = vmatprep.subr.mxu0 0.0
        %627 = vmatpush1.msra.mxu0 0.0
        %628 = vmatprep.subr.mxu0 0.0
        %629 = vmatpush1.msra.mxu0 0.0
        %630 = vmatprep.subr.mxu0 0.0
        %631 = vmatpush1.msra.mxu0 0.0
        %632 = vmatprep.subr.mxu0 0.0
        %633 = vmatpush1.msra.mxu0 0.0
        %634 = vmatprep.subr.mxu0 0.0
        %635 = vmatpush1.msra.mxu0 0.0
        %636 = vmatprep.subr.mxu0 0.0
        %637 = vmatpush1.msra.mxu0 0.0
        %638 = vmatprep.subr.mxu0 0.0
        %639 = vmatpush1.msra.mxu0 0.0
        %640 = vmatprep.subr.mxu0 0.0
        %641 = vmatpush1.msra.mxu0 0.0
        %642 = vmatprep.subr.mxu0 0.0
        %643 = vmatpush1.msra.mxu0 0.0
        %644 = vmatprep.subr.mxu0 0.0
        %645 = vmatpush1.msra.mxu0 0.0
        %646 = vmatprep.subr.mxu0 0.0
        %647 = vmatpush1.msra.mxu0 0.0
        %648 = vmatprep.subr.mxu0 0.0
        %649 = vmatpush1.msra.mxu0 0.0
        %650 = vmatprep.subr.mxu0 0.0
        %651 = vmatpush1.msra.mxu0 0.0
        %652 = vmatprep.subr.mxu0 0.0
        %653 = vmatpush1.msra.mxu0 %v617
        %654 = vmatprep.subr.mxu0 0.0
        %655 = vmatpush2.msra.mxu0 0.0
        %656 = vmatprep.subr.mxu0 0.0
        %657 = vmatpush2.msra.mxu0 0.0
        %658 = vmatprep.subr.mxu0 0.0
        %659 = vmatpush2.msra.mxu0 0.0
        %660 = vmatprep.subr.mxu0 0.0
        %661 = vmatpush2.msra.mxu0 0.0
        %662 = vmatprep.subr.mxu0 0.0
        %663 = vmatpush2.msra.mxu0 0.0
        %664 = vmatprep.subr.mxu0 0.0
        %665 = vmatpush2.msra.mxu0 0.0
        %666 = vmatprep.subr.mxu0 0.0
        %667 = vmatpush2.msra.mxu0 0.0
        %668 = vmatprep.subr.mxu0 0.0
        %669 = vmatpush2.msra.mxu0 0.0
        %670 = vmatprep.subr.mxu0 0.0
        %671 = vmatpush2.msra.mxu0 0.0
        %672 = vmatprep.subr.mxu0 0.0
        %673 = vmatpush2.msra.mxu0 0.0
        %674 = vmatprep.subr.mxu0 0.0
        %675 = vmatpush2.msra.mxu0 0.0
        %676 = vmatprep.subr.mxu0 0.0
        %677 = vmatpush2.msra.mxu0 0.0
        %678 = vmatprep.subr.mxu0 0.0
        %679 = vmatpush2.msra.mxu0 0.0
        %680 = vmatprep.subr.mxu0 0.0
        %681 = vmatpush2.msra.mxu0 0.0
        %682 = vmatprep.subr.mxu0 0.0
        %683 = vmatpush2.msra.mxu0 0.0
        %684 = vmatprep.subr.mxu0 0.0
        %685 = vmatpush2.msra.mxu0 0.0
        %686 = vmatprep.mubr.f32.mxu0 0.0
        %687 = vmatmul.mubr.f32.gmra.mxu0 %v620
        %v688 = vpop.f32.mrf.mxu0
        %v689 = vadd.f32 0.0, %v688
        %v690 = vpop.f32.mrf.mxu0
        %691 = vdwg.mxu0
        %692 = vrot.lane.b32.xlu0 %v519, 120
        %v693 = vpop.permute.xlu0 %692
        %694 = vrot.lane.b32.xlu0 %v519, 88
        %v695 = vpop.permute.xlu0 %694
        %v696 = vsel %vm529, %v693, 0
        %v698 = vsel %vm529, %v695, 0
        %700 = vmatprep.subr.mxu0 0.0
        %701 = vmatpush1.xpose.msra.mxu0 0.0
        %702 = vmatprep.subr.mxu0 0.0
        %703 = vmatpush1.xpose.msra.mxu0 0.0
        %704 = vmatprep.subr.mxu0 0.0
        %705 = vmatpush1.xpose.msra.mxu0 0.0
        %706 = vmatprep.subr.mxu0 0.0
        %707 = vmatpush1.xpose.msra.mxu0 0.0
        %708 = vmatprep.subr.mxu0 0.0
        %709 = vmatpush1.xpose.msra.mxu0 0.0
        %710 = vmatprep.subr.mxu0 0.0
        %711 = vmatpush1.xpose.msra.mxu0 0.0
        %712 = vmatprep.subr.mxu0 0.0
        %713 = vmatpush1.xpose.msra.mxu0 0.0
        %714 = vmatprep.subr.mxu0 0.0
        %715 = vmatpush1.xpose.msra.mxu0 0.0
        %716 = vmatprep.subr.mxu0 0.0
        %717 = vmatpush1.xpose.msra.mxu0 0.0
        %718 = vmatprep.subr.mxu0 0.0
        %719 = vmatpush1.xpose.msra.mxu0 0.0
        %720 = vmatprep.subr.mxu0 0.0
        %721 = vmatpush1.xpose.msra.mxu0 0.0
        %722 = vmatprep.subr.mxu0 0.0
        %723 = vmatpush1.xpose.msra.mxu0 0.0
        %724 = vmatprep.subr.mxu0 0.0
        %725 = vmatpush1.xpose.msra.mxu0 0.0
        %726 = vmatprep.subr.mxu0 0.0
        %727 = vmatpush1.xpose.msra.mxu0 0.0
        %728 = vmatprep.subr.mxu0 0.0
        %729 = vmatpush1.xpose.msra.mxu0 0.0
        %730 = vmatprep.subr.mxu0 0.0
        %731 = vmatpush1.xpose.msra.mxu0 %v698
        %732 = vmatprep.subr.mxu0 0.0
        %733 = vmatpush2.xpose.msra.mxu0 0.0
        %734 = vmatprep.subr.mxu0 0.0
        %735 = vmatpush2.xpose.msra.mxu0 0.0
        %736 = vmatprep.subr.mxu0 0.0
        %737 = vmatpush2.xpose.msra.mxu0 0.0
        %738 = vmatprep.subr.mxu0 0.0
        %739 = vmatpush2.xpose.msra.mxu0 0.0
        %740 = vmatprep.subr.mxu0 0.0
        %741 = vmatpush2.xpose.msra.mxu0 0.0
        %742 = vmatprep.subr.mxu0 0.0
        %743 = vmatpush2.xpose.msra.mxu0 0.0
        %744 = vmatprep.subr.mxu0 0.0
        %745 = vmatpush2.xpose.msra.mxu0 0.0
        %746 = vmatprep.subr.mxu0 0.0
        %747 = vmatpush2.xpose.msra.mxu0 0.0
        %748 = vmatprep.subr.mxu0 0.0
        %749 = vmatpush2.xpose.msra.mxu0 0.0
        %750 = vmatprep.subr.mxu0 0.0
        %751 = vmatpush2.xpose.msra.mxu0 0.0
        %752 = vmatprep.subr.mxu0 0.0
        %753 = vmatpush2.xpose.msra.mxu0 0.0
        %754 = vmatprep.subr.mxu0 0.0
        %755 = vmatpush2.xpose.msra.mxu0 0.0
        %756 = vmatprep.subr.mxu0 0.0
        %757 = vmatpush2.xpose.msra.mxu0 0.0
        %758 = vmatprep.subr.mxu0 0.0
        %759 = vmatpush2.xpose.msra.mxu0 0.0
        %760 = vmatprep.subr.mxu0 0.0
        %761 = vmatpush2.xpose.msra.mxu0 0.0
        %762 = vmatprep.subr.mxu0 0.0
        %763 = vmatpush2.xpose.msra.mxu0 0.0
        %764 = vmatprep.mubr.f32.mxu0 0.0
        %765 = vmatmul.mubr.f32.gmra.mxu0 %v696
        %v766 = vpop.f32.mrf.mxu0
        %v767 = vadd.f32 0.0, %v766
        %v768 = vpop.f32.mrf.mxu0
        %769 = vdwg.mxu0
        %v770 = vmul.f32 %v767, 0.35355338
        %v771 = vsel %vm529, %v770, -inf
        %772 = vmax.xlane.f32.xlu0 %v771
        %v773 = vpop.xlane.xlu0 %772
        %v774 = vsub.f32 %v770, %v773
        %v775 = vmul.f32 %v774, 1.442695
        %v776 = vpow.pop %v775
        %v777 = vsel %vm529, %v776, 0.0
        %778 = vadd.xlane.f32.xlu0 %v777
        %v779 = vpop.xlane.xlu0 %778
        %v780 = vrcp.pop %v779
        %v781 = vmul.f32 %v776, %v780
        %782 = vrot.lane.b32.xlu0 %v519, 56
        %v783 = vpop.permute.xlu0 %782
        %v786 = vsel %vm529, %v781, 0
        %788 = vmatprep.subr.mxu0 0.0
        %789 = vmatpush1.msra.mxu0 0.0
        %790 = vmatprep.subr.mxu0 0.0
        %791 = vmatpush1.msra.mxu0 0.0
        %792 = vmatprep.subr.mxu0 0.0
        %793 = vmatpush1.msra.mxu0 0.0
        %794 = vmatprep.subr.mxu0 0.0
        %795 = vmatpush1.msra.mxu0 0.0
        %796 = vmatprep.subr.mxu0 0.0
        %797 = vmatpush1.msra.mxu0 0.0
        %798 = vmatprep.subr.mxu0 0.0
        %799 = vmatpush1.msra.mxu0 0.0
        %800 = vmatprep.subr.mxu0 0.0
        %801 = vmatpush1.msra.mxu0 0.0
        %802 = vmatprep.subr.mxu0 0.0
        %803 = vmatpush1.msra.mxu0 0.0
        %804 = vmatprep.subr.mxu0 0.0
        %805 = vmatpush1.msra.mxu0 0.0
        %806 = vmatprep.subr.mxu0 0.0
        %807 = vmatpush1.msra.mxu0 0.0
        %808 = vmatprep.subr.mxu0 0.0
        %809 = vmatpush1.msra.mxu0 0.0
        %810 = vmatprep.subr.mxu0 0.0
        %811 = vmatpush1.msra.mxu0 0.0
        %812 = vmatprep.subr.mxu0 0.0
        %813 = vmatpush1.msra.mxu0 0.0
        %814 = vmatprep.subr.mxu0 0.0
        %815 = vmatpush1.msra.mxu0 0.0
        %816 = vmatprep.subr.mxu0 0.0
        %817 = vmatpush1.msra.mxu0 0.0
        %818 = vmatprep.subr.mxu0 0.0
        %819 = vmatpush1.msra.mxu0 %v783
        %820 = vmatprep.subr.mxu0 0.0
        %821 = vmatpush2.msra.mxu0 0.0
        %822 = vmatprep.subr.mxu0 0.0
        %823 = vmatpush2.msra.mxu0 0.0
        %824 = vmatprep.subr.mxu0 0.0
        %825 = vmatpush2.msra.mxu0 0.0
        %826 = vmatprep.subr.mxu0 0.0
        %827 = vmatpush2.msra.mxu0 0.0
        %828 = vmatprep.subr.mxu0 0.0
        %829 = vmatpush2.msra.mxu0 0.0
        %830 = vmatprep.subr.mxu0 0.0
        %831 = vmatpush2.msra.mxu0 0.0
        %832 = vmatprep.subr.mxu0 0.0
        %833 = vmatpush2.msra.mxu0 0.0
        %834 = vmatprep.subr.mxu0 0.0
        %835 = vmatpush2.msra.mxu0 0.0
        %836 = vmatprep.subr.mxu0 0.0
        %837 = vmatpush2.msra.mxu0 0.0
        %838 = vmatprep.subr.mxu0 0.0
        %839 = vmatpush2.msra.mxu0 0.0
        %840 = vmatprep.subr.mxu0 0.0
        %841 = vmatpush2.msra.mxu0 0.0
        %842 = vmatprep.subr.mxu0 0.0
        %843 = vmatpush2.msra.mxu0 0.0
        %844 = vmatprep.subr.mxu0 0.0
        %845 = vmatpush2.msra.mxu0 0.0
        %846 = vmatprep.subr.mxu0 0.0
        %847 = vmatpush2.msra.mxu0 0.0
        %848 = vmatprep.subr.mxu0 0.0
        %849 = vmatpush2.msra.mxu0 0.0
        %850 = vmatprep.subr.mxu0 0.0
        %851 = vmatpush2.msra.mxu0 0.0
        %852 = vmatprep.mubr.f32.mxu0 0.0
        %853 = vmatmul.mubr.f32.gmra.mxu0 %v786
        %v854 = vpop.f32.mrf.mxu0
        %v855 = vadd.f32 0.0, %v854
        %v856 = vpop.f32.mrf.mxu0
        %857 = vdwg.mxu0
        %v859 = vsel %vm529, %v855, 0
        %861 = vmatprep.subr.mxu0 0.0
        %862 = vmatpush1.msra.mxu0 0.0
        %863 = vmatprep.subr.mxu0 0.0
        %864 = vmatpush1.msra.mxu0 0.0
        %865 = vmatprep.subr.mxu0 0.0
        %866 = vmatpush1.msra.mxu0 0.0
        %867 = vmatprep.subr.mxu0 0.0
        %868 = vmatpush1.msra.mxu0 0.0
        %869 = vmatprep.subr.mxu0 0.0
        %870 = vmatpush1.msra.mxu0 0.0
        %871 = vmatprep.subr.mxu0 0.0
        %872 = vmatpush1.msra.mxu0 0.0
        %873 = vmatprep.subr.mxu0 0.0
        %874 = vmatpush1.msra.mxu0 0.0
        %875 = vmatprep.subr.mxu0 0.0
        %876 = vmatpush1.msra.mxu0 0.0
        %877 = vmatprep.subr.mxu0 0.0
        %878 = vmatpush1.msra.mxu0 0.0
        %879 = vmatprep.subr.mxu0 0.0
        %880 = vmatpush1.msra.mxu0 0.0
        %881 = vmatprep.subr.mxu0 0.0
        %882 = vmatpush1.msra.mxu0 0.0
        %883 = vmatprep.subr.mxu0 0.0
        %884 = vmatpush1.msra.mxu0 0.0
        %885 = vmatprep.subr.mxu0 0.0
        %886 = vmatpush1.msra.mxu0 0.0
        %887 = vmatprep.subr.mxu0 0.0
        %888 = vmatpush1.msra.mxu0 0.0
        %889 = vmatprep.subr.mxu0 0.0
        %890 = vmatpush1.msra.mxu0 0.0
        %891 = vmatprep.subr.mxu0 0.0
        %892 = vmatpush1.msra.mxu0 %v523
        %893 = vmatprep.subr.mxu0 0.0
        %894 = vmatpush2.msra.mxu0 0.0
        %895 = vmatprep.subr.mxu0 0.0
        %896 = vmatpush2.msra.mxu0 0.0
        %897 = vmatprep.subr.mxu0 0.0
        %898 = vmatpush2.msra.mxu0 0.0
        %899 = vmatprep.subr.mxu0 0.0
        %900 = vmatpush2.msra.mxu0 0.0
        %901 = vmatprep.subr.mxu0 0.0
        %902 = vmatpush2.msra.mxu0 0.0
        %903 = vmatprep.subr.mxu0 0.0
        %904 = vmatpush2.msra.mxu0 0.0
        %905 = vmatprep.subr.mxu0 0.0
        %906 = vmatpush2.msra.mxu0 0.0
        %907 = vmatprep.subr.mxu0 0.0
        %908 = vmatpush2.msra.mxu0 0.0
        %909 = vmatprep.subr.mxu0 0.0
        %910 = vmatpush2.msra.mxu0 0.0
        %911 = vmatprep.subr.mxu0 0.0
        %912 = vmatpush2.msra.mxu0 0.0
        %913 = vmatprep.subr.mxu0 0.0
        %914 = vmatpush2.msra.mxu0 0.0
        %915 = vmatprep.subr.mxu0 0.0
        %916 = vmatpush2.msra.mxu0 0.0
        %917 = vmatprep.subr.mxu0 0.0
        %918 = vmatpush2.msra.mxu0 0.0
        %919 = vmatprep.subr.mxu0 0.0
        %920 = vmatpush2.msra.mxu0 0.0
        %921 = vmatprep.subr.mxu0 0.0
        %922 = vmatpush2.msra.mxu0 0.0
        %923 = vmatprep.subr.mxu0 0.0
        %924 = vmatpush2.msra.mxu0 0.0
        %925 = vmatprep.mubr.f32.mxu0 0.0
        %926 = vmatmul.mubr.f32.gmra.mxu0 %v859
        %v927 = vpop.f32.mrf.mxu0
        %v928 = vadd.f32 0.0, %v927
        %v929 = vpop.f32.mrf.mxu0
        %930 = vdwg.mxu0
        %v932 = vsel %vm529, %v689, 0
        %934 = vmatprep.subr.mxu0 0.0
        %935 = vmatpush1.msra.mxu0 0.0
        %936 = vmatprep.subr.mxu0 0.0
        %937 = vmatpush1.msra.mxu0 0.0
        %938 = vmatprep.subr.mxu0 0.0
        %939 = vmatpush1.msra.mxu0 0.0
        %940 = vmatprep.subr.mxu0 0.0
        %941 = vmatpush1.msra.mxu0 0.0
        %942 = vmatprep.subr.mxu0 0.0
        %943 = vmatpush1.msra.mxu0 0.0
        %944 = vmatprep.subr.mxu0 0.0
        %945 = vmatpush1.msra.mxu0 0.0
        %946 = vmatprep.subr.mxu0 0.0
        %947 = vmatpush1.msra.mxu0 0.0
        %948 = vmatprep.subr.mxu0 0.0
        %949 = vmatpush1.msra.mxu0 0.0
        %950 = vmatprep.subr.mxu0 0.0
        %951 = vmatpush1.msra.mxu0 0.0
        %952 = vmatprep.subr.mxu0 0.0
        %953 = vmatpush1.msra.mxu0 0.0
        %954 = vmatprep.subr.mxu0 0.0
        %955 = vmatpush1.msra.mxu0 0.0
        %956 = vmatprep.subr.mxu0 0.0
        %957 = vmatpush1.msra.mxu0 0.0
        %958 = vmatprep.subr.mxu0 0.0
        %959 = vmatpush1.msra.mxu0 0.0
        %960 = vmatprep.subr.mxu0 0.0
        %961 = vmatpush1.msra.mxu0 0.0
        %962 = vmatprep.subr.mxu0 0.0
        %963 = vmatpush1.msra.mxu0 0.0
        %964 = vmatprep.subr.mxu0 0.0
        %965 = vmatpush1.msra.mxu0 %v522
        %966 = vmatprep.subr.mxu0 0.0
        %967 = vmatpush2.msra.mxu0 0.0
        %968 = vmatprep.subr.mxu0 0.0
        %969 = vmatpush2.msra.mxu0 0.0
        %970 = vmatprep.subr.mxu0 0.0
        %971 = vmatpush2.msra.mxu0 0.0
        %972 = vmatprep.subr.mxu0 0.0
        %973 = vmatpush2.msra.mxu0 0.0
        %974 = vmatprep.subr.mxu0 0.0
        %975 = vmatpush2.msra.mxu0 0.0
        %976 = vmatprep.subr.mxu0 0.0
        %977 = vmatpush2.msra.mxu0 0.0
        %978 = vmatprep.subr.mxu0 0.0
        %979 = vmatpush2.msra.mxu0 0.0
        %980 = vmatprep.subr.mxu0 0.0
        %981 = vmatpush2.msra.mxu0 0.0
        %982 = vmatprep.subr.mxu0 0.0
        %983 = vmatpush2.msra.mxu0 0.0
        %984 = vmatprep.subr.mxu0 0.0
        %985 = vmatpush2.msra.mxu0 0.0
        %986 = vmatprep.subr.mxu0 0.0
        %987 = vmatpush2.msra.mxu0 0.0
        %988 = vmatprep.subr.mxu0 0.0
        %989 = vmatpush2.msra.mxu0 0.0
        %990 = vmatprep.subr.mxu0 0.0
        %991 = vmatpush2.msra.mxu0 0.0
        %992 = vmatprep.subr.mxu0 0.0
        %993 = vmatpush2.msra.mxu0 0.0
        %994 = vmatprep.subr.mxu0 0.0
        %995 = vmatpush2.msra.mxu0 0.0
        %996 = vmatprep.subr.mxu0 0.0
        %997 = vmatpush2.msra.mxu0 0.0
        %998 = vmatprep.mubr.f32.mxu0 0.0
        %999 = vmatmul.mubr.f32.gmra.mxu0 %v932
        %v1000 = vpop.f32.mrf.mxu0
        %v1001 = vadd.f32 %v928, %v1000
        %v1002 = vpop.f32.mrf.mxu0
        %1003 = vdwg.mxu0
        %1004 = vrot.lane.b32.xlu0 %v519, 112
        %v1005 = vpop.permute.xlu0 %1004
        %1006 = vrot.lane.b32.xlu0 %v519, 80
        %v1007 = vpop.permute.xlu0 %1006
        %v1008 = vsel %vm529, %v1005, 0
        %v1010 = vsel %vm529, %v1007, 0
        %1012 = vmatprep.subr.mxu0 0.0
        %1013 = vmatpush1.xpose.msra.mxu0 0.0
        %1014 = vmatprep.subr.mxu0 0.0
        %1015 = vmatpush1.xpose.msra.mxu0 0.0
        %1016 = vmatprep.subr.mxu0 0.0
        %1017 = vmatpush1.xpose.msra.mxu0 0.0
        %1018 = vmatprep.subr.mxu0 0.0
        %1019 = vmatpush1.xpose.msra.mxu0 0.0
        %1020 = vmatprep.subr.mxu0 0.0
        %1021 = vmatpush1.xpose.msra.mxu0 0.0
        %1022 = vmatprep.subr.mxu0 0.0
        %1023 = vmatpush1.xpose.msra.mxu0 0.0
        %1024 = vmatprep.subr.mxu0 0.0
        %1025 = vmatpush1.xpose.msra.mxu0 0.0
        %1026 = vmatprep.subr.mxu0 0.0
        %1027 = vmatpush1.xpose.msra.mxu0 0.0
        %1028 = vmatprep.subr.mxu0 0.0
        %1029 = vmatpush1.xpose.msra.mxu0 0.0
        %1030 = vmatprep.subr.mxu0 0.0
        %1031 = vmatpush1.xpose.msra.mxu0 0.0
        %1032 = vmatprep.subr.mxu0 0.0
        %1033 = vmatpush1.xpose.msra.mxu0 0.0
        %1034 = vmatprep.subr.mxu0 0.0
        %1035 = vmatpush1.xpose.msra.mxu0 0.0
        %1036 = vmatprep.subr.mxu0 0.0
        %1037 = vmatpush1.xpose.msra.mxu0 0.0
        %1038 = vmatprep.subr.mxu0 0.0
        %1039 = vmatpush1.xpose.msra.mxu0 0.0
        %1040 = vmatprep.subr.mxu0 0.0
        %1041 = vmatpush1.xpose.msra.mxu0 0.0
        %1042 = vmatprep.subr.mxu0 0.0
        %1043 = vmatpush1.xpose.msra.mxu0 %v1010
        %1044 = vmatprep.subr.mxu0 0.0
        %1045 = vmatpush2.xpose.msra.mxu0 0.0
        %1046 = vmatprep.subr.mxu0 0.0
        %1047 = vmatpush2.xpose.msra.mxu0 0.0
        %1048 = vmatprep.subr.mxu0 0.0
        %1049 = vmatpush2.xpose.msra.mxu0 0.0
        %1050 = vmatprep.subr.mxu0 0.0
        %1051 = vmatpush2.xpose.msra.mxu0 0.0
        %1052 = vmatprep.subr.mxu0 0.0
        %1053 = vmatpush2.xpose.msra.mxu0 0.0
        %1054 = vmatprep.subr.mxu0 0.0
        %1055 = vmatpush2.xpose.msra.mxu0 0.0
        %1056 = vmatprep.subr.mxu0 0.0
        %1057 = vmatpush2.xpose.msra.mxu0 0.0
        %1058 = vmatprep.subr.mxu0 0.0
        %1059 = vmatpush2.xpose.msra.mxu0 0.0
        %1060 = vmatprep.subr.mxu0 0.0
        %1061 = vmatpush2.xpose.msra.mxu0 0.0
        %1062 = vmatprep.subr.mxu0 0.0
        %1063 = vmatpush2.xpose.msra.mxu0 0.0
        %1064 = vmatprep.subr.mxu0 0.0
        %1065 = vmatpush2.xpose.msra.mxu0 0.0
        %1066 = vmatprep.subr.mxu0 0.0
        %1067 = vmatpush2.xpose.msra.mxu0 0.0
        %1068 = vmatprep.subr.mxu0 0.0
        %1069 = vmatpush2.xpose.msra.mxu0 0.0
        %1070 = vmatprep.subr.mxu0 0.0
        %1071 = vmatpush2.xpose.msra.mxu0 0.0
        %1072 = vmatprep.subr.mxu0 0.0
        %1073 = vmatpush2.xpose.msra.mxu0 0.0
        %1074 = vmatprep.subr.mxu0 0.0
        %1075 = vmatpush2.xpose.msra.mxu0 0.0
        %1076 = vmatprep.mubr.f32.mxu0 0.0
        %1077 = vmatmul.mubr.f32.gmra.mxu0 %v1008
        %v1078 = vpop.f32.mrf.mxu0
        %v1079 = vadd.f32 0.0, %v1078
        %v1080 = vpop.f32.mrf.mxu0
        %1081 = vdwg.mxu0
        %v1082 = vmul.f32 %v1079, 0.35355338
        %v1083 = vsel %vm529, %v1082, -inf
        %1084 = vmax.xlane.f32.xlu0 %v1083
        %v1085 = vpop.xlane.xlu0 %1084
        %v1086 = vsub.f32 %v1082, %v1085
        %v1087 = vmul.f32 %v1086, 1.442695
        %v1088 = vpow.pop %v1087
        %v1089 = vsel %vm529, %v1088, 0.0
        %1090 = vadd.xlane.f32.xlu0 %v1089
        %v1091 = vpop.xlane.xlu0 %1090
        %v1092 = vrcp.pop %v1091
        %v1093 = vmul.f32 %v1088, %v1092
        %1094 = vrot.lane.b32.xlu0 %v519, 48
        %v1095 = vpop.permute.xlu0 %1094
        %v1098 = vsel %vm529, %v1093, 0
        %1100 = vmatprep.subr.mxu0 0.0
        %1101 = vmatpush1.msra.mxu0 0.0
        %1102 = vmatprep.subr.mxu0 0.0
        %1103 = vmatpush1.msra.mxu0 0.0
        %1104 = vmatprep.subr.mxu0 0.0
        %1105 = vmatpush1.msra.mxu0 0.0
        %1106 = vmatprep.subr.mxu0 0.0
        %1107 = vmatpush1.msra.mxu0 0.0
        %1108 = vmatprep.subr.mxu0 0.0
        %1109 = vmatpush1.msra.mxu0 0.0
        %1110 = vmatprep.subr.mxu0 0.0
        %1111 = vmatpush1.msra.mxu0 0.0
        %1112 = vmatprep.subr.mxu0 0.0
        %1113 = vmatpush1.msra.mxu0 0.0
        %1114 = vmatprep.subr.mxu0 0.0
        %1115 = vmatpush1.msra.mxu0 0.0
        %1116 = vmatprep.subr.mxu0 0.0
        %1117 = vmatpush1.msra.mxu0 0.0
        %1118 = vmatprep.subr.mxu0 0.0
        %1119 = vmatpush1.msra.mxu0 0.0
        %1120 = vmatprep.subr.mxu0 0.0
        %1121 = vmatpush1.msra.mxu0 0.0
        %1122 = vmatprep.subr.mxu0 0.0
        %1123 = vmatpush1.msra.mxu0 0.0
        %1124 = vmatprep.subr.mxu0 0.0
        %1125 = vmatpush1.msra.mxu0 0.0
        %1126 = vmatprep.subr.mxu0 0.0
        %1127 = vmatpush1.msra.mxu0 0.0
        %1128 = vmatprep.subr.mxu0 0.0
        %1129 = vmatpush1.msra.mxu0 0.0
        %1130 = vmatprep.subr.mxu0 0.0
        %1131 = vmatpush1.msra.mxu0 %v1095
        %1132 = vmatprep.subr.mxu0 0.0
        %1133 = vmatpush2.msra.mxu0 0.0
        %1134 = vmatprep.subr.mxu0 0.0
        %1135 = vmatpush2.msra.mxu0 0.0
        %1136 = vmatprep.subr.mxu0 0.0
        %1137 = vmatpush2.msra.mxu0 0.0
        %1138 = vmatprep.subr.mxu0 0.0
        %1139 = vmatpush2.msra.mxu0 0.0
        %1140 = vmatprep.subr.mxu0 0.0
        %1141 = vmatpush2.msra.mxu0 0.0
        %1142 = vmatprep.subr.mxu0 0.0
        %1143 = vmatpush2.msra.mxu0 0.0
        %1144 = vmatprep.subr.mxu0 0.0
        %1145 = vmatpush2.msra.mxu0 0.0
        %1146 = vmatprep.subr.mxu0 0.0
        %1147 = vmatpush2.msra.mxu0 0.0
        %1148 = vmatprep.subr.mxu0 0.0
        %1149 = vmatpush2.msra.mxu0 0.0
        %1150 = vmatprep.subr.mxu0 0.0
        %1151 = vmatpush2.msra.mxu0 0.0
        %1152 = vmatprep.subr.mxu0 0.0
        %1153 = vmatpush2.msra.mxu0 0.0
        %1154 = vmatprep.subr.mxu0 0.0
        %1155 = vmatpush2.msra.mxu0 0.0
        %1156 = vmatprep.subr.mxu0 0.0
        %1157 = vmatpush2.msra.mxu0 0.0
        %1158 = vmatprep.subr.mxu0 0.0
        %1159 = vmatpush2.msra.mxu0 0.0
        %1160 = vmatprep.subr.mxu0 0.0
        %1161 = vmatpush2.msra.mxu0 0.0
        %1162 = vmatprep.subr.mxu0 0.0
        %1163 = vmatpush2.msra.mxu0 0.0
        %1164 = vmatprep.mubr.f32.mxu0 0.0
        %1165 = vmatmul.mubr.f32.gmra.mxu0 %v1098
        %v1166 = vpop.f32.mrf.mxu0
        %v1167 = vadd.f32 0.0, %v1166
        %v1168 = vpop.f32.mrf.mxu0
        %1169 = vdwg.mxu0
        %v1171 = vsel %vm529, %v1167, 0
        %1173 = vmatprep.subr.mxu0 0.0
        %1174 = vmatpush1.msra.mxu0 0.0
        %1175 = vmatprep.subr.mxu0 0.0
        %1176 = vmatpush1.msra.mxu0 0.0
        %1177 = vmatprep.subr.mxu0 0.0
        %1178 = vmatpush1.msra.mxu0 0.0
        %1179 = vmatprep.subr.mxu0 0.0
        %1180 = vmatpush1.msra.mxu0 0.0
        %1181 = vmatprep.subr.mxu0 0.0
        %1182 = vmatpush1.msra.mxu0 0.0
        %1183 = vmatprep.subr.mxu0 0.0
        %1184 = vmatpush1.msra.mxu0 0.0
        %1185 = vmatprep.subr.mxu0 0.0
        %1186 = vmatpush1.msra.mxu0 0.0
        %1187 = vmatprep.subr.mxu0 0.0
        %1188 = vmatpush1.msra.mxu0 0.0
        %1189 = vmatprep.subr.mxu0 0.0
        %1190 = vmatpush1.msra.mxu0 0.0
        %1191 = vmatprep.subr.mxu0 0.0
        %1192 = vmatpush1.msra.mxu0 0.0
        %1193 = vmatprep.subr.mxu0 0.0
        %1194 = vmatpush1.msra.mxu0 0.0
        %1195 = vmatprep.subr.mxu0 0.0
        %1196 = vmatpush1.msra.mxu0 0.0
        %1197 = vmatprep.subr.mxu0 0.0
        %1198 = vmatpush1.msra.mxu0 0.0
        %1199 = vmatprep.subr.mxu0 0.0
        %1200 = vmatpush1.msra.mxu0 0.0
        %1201 = vmatprep.subr.mxu0 0.0
        %1202 = vmatpush1.msra.mxu0 0.0
        %1203 = vmatprep.subr.mxu0 0.0
        %1204 = vmatpush1.msra.mxu0 %v524
        %1205 = vmatprep.subr.mxu0 0.0
        %1206 = vmatpush2.msra.mxu0 0.0
        %1207 = vmatprep.subr.mxu0 0.0
        %1208 = vmatpush2.msra.mxu0 0.0
        %1209 = vmatprep.subr.mxu0 0.0
        %1210 = vmatpush2.msra.mxu0 0.0
        %1211 = vmatprep.subr.mxu0 0.0
        %1212 = vmatpush2.msra.mxu0 0.0
        %1213 = vmatprep.subr.mxu0 0.0
        %1214 = vmatpush2.msra.mxu0 0.0
        %1215 = vmatprep.subr.mxu0 0.0
        %1216 = vmatpush2.msra.mxu0 0.0
        %1217 = vmatprep.subr.mxu0 0.0
        %1218 = vmatpush2.msra.mxu0 0.0
        %1219 = vmatprep.subr.mxu0 0.0
        %1220 = vmatpush2.msra.mxu0 0.0
        %1221 = vmatprep.subr.mxu0 0.0
        %1222 = vmatpush2.msra.mxu0 0.0
        %1223 = vmatprep.subr.mxu0 0.0
        %1224 = vmatpush2.msra.mxu0 0.0
        %1225 = vmatprep.subr.mxu0 0.0
        %1226 = vmatpush2.msra.mxu0 0.0
        %1227 = vmatprep.subr.mxu0 0.0
        %1228 = vmatpush2.msra.mxu0 0.0
        %1229 = vmatprep.subr.mxu0 0.0
        %1230 = vmatpush2.msra.mxu0 0.0
        %1231 = vmatprep.subr.mxu0 0.0
        %1232 = vmatpush2.msra.mxu0 0.0
        %1233 = vmatprep.subr.mxu0 0.0
        %1234 = vmatpush2.msra.mxu0 0.0
        %1235 = vmatprep.subr.mxu0 0.0
        %1236 = vmatpush2.msra.mxu0 0.0
        %1237 = vmatprep.mubr.f32.mxu0 0.0
        %1238 = vmatmul.mubr.f32.gmra.mxu0 %v1171
        %v1239 = vpop.f32.mrf.mxu0
        %v1240 = vadd.f32 0.0, %v1239
        %v1241 = vpop.f32.mrf.mxu0
        %1242 = vdwg.mxu0
        %v1243 = vadd.f32 %v1001, %v1240
        %1244 = vrot.lane.b32.xlu0 %v519, 104
        %v1245 = vpop.permute.xlu0 %1244
        %1246 = vrot.lane.b32.xlu0 %v519, 72
        %v1247 = vpop.permute.xlu0 %1246
        %v1248 = vsel %vm529, %v1245, 0
        %v1250 = vsel %vm529, %v1247, 0
        %1252 = vmatprep.subr.mxu0 0.0
        %1253 = vmatpush1.xpose.msra.mxu0 0.0
        %1254 = vmatprep.subr.mxu0 0.0
        %1255 = vmatpush1.xpose.msra.mxu0 0.0
        %1256 = vmatprep.subr.mxu0 0.0
        %1257 = vmatpush1.xpose.msra.mxu0 0.0
        %1258 = vmatprep.subr.mxu0 0.0
        %1259 = vmatpush1.xpose.msra.mxu0 0.0
        %1260 = vmatprep.subr.mxu0 0.0
        %1261 = vmatpush1.xpose.msra.mxu0 0.0
        %1262 = vmatprep.subr.mxu0 0.0
        %1263 = vmatpush1.xpose.msra.mxu0 0.0
        %1264 = vmatprep.subr.mxu0 0.0
        %1265 = vmatpush1.xpose.msra.mxu0 0.0
        %1266 = vmatprep.subr.mxu0 0.0
        %1267 = vmatpush1.xpose.msra.mxu0 0.0
        %1268 = vmatprep.subr.mxu0 0.0
        %1269 = vmatpush1.xpose.msra.mxu0 0.0
        %1270 = vmatprep.subr.mxu0 0.0
        %1271 = vmatpush1.xpose.msra.mxu0 0.0
        %1272 = vmatprep.subr.mxu0 0.0
        %1273 = vmatpush1.xpose.msra.mxu0 0.0
        %1274 = vmatprep.subr.mxu0 0.0
        %1275 = vmatpush1.xpose.msra.mxu0 0.0
        %1276 = vmatprep.subr.mxu0 0.0
        %1277 = vmatpush1.xpose.msra.mxu0 0.0
        %1278 = vmatprep.subr.mxu0 0.0
        %1279 = vmatpush1.xpose.msra.mxu0 0.0
        %1280 = vmatprep.subr.mxu0 0.0
        %1281 = vmatpush1.xpose.msra.mxu0 0.0
        %1282 = vmatprep.subr.mxu0 0.0
        %1283 = vmatpush1.xpose.msra.mxu0 %v1250
        %1284 = vmatprep.subr.mxu0 0.0
        %1285 = vmatpush2.xpose.msra.mxu0 0.0
        %1286 = vmatprep.subr.mxu0 0.0
        %1287 = vmatpush2.xpose.msra.mxu0 0.0
        %1288 = vmatprep.subr.mxu0 0.0
        %1289 = vmatpush2.xpose.msra.mxu0 0.0
        %1290 = vmatprep.subr.mxu0 0.0
        %1291 = vmatpush2.xpose.msra.mxu0 0.0
        %1292 = vmatprep.subr.mxu0 0.0
        %1293 = vmatpush2.xpose.msra.mxu0 0.0
        %1294 = vmatprep.subr.mxu0 0.0
        %1295 = vmatpush2.xpose.msra.mxu0 0.0
        %1296 = vmatprep.subr.mxu0 0.0
        %1297 = vmatpush2.xpose.msra.mxu0 0.0
        %1298 = vmatprep.subr.mxu0 0.0
        %1299 = vmatpush2.xpose.msra.mxu0 0.0
        %1300 = vmatprep.subr.mxu0 0.0
        %1301 = vmatpush2.xpose.msra.mxu0 0.0
        %1302 = vmatprep.subr.mxu0 0.0
        %1303 = vmatpush2.xpose.msra.mxu0 0.0
        %1304 = vmatprep.subr.mxu0 0.0
        %1305 = vmatpush2.xpose.msra.mxu0 0.0
        %1306 = vmatprep.subr.mxu0 0.0
        %1307 = vmatpush2.xpose.msra.mxu0 0.0
        %1308 = vmatprep.subr.mxu0 0.0
        %1309 = vmatpush2.xpose.msra.mxu0 0.0
        %1310 = vmatprep.subr.mxu0 0.0
        %1311 = vmatpush2.xpose.msra.mxu0 0.0
        %1312 = vmatprep.subr.mxu0 0.0
        %1313 = vmatpush2.xpose.msra.mxu0 0.0
        %1314 = vmatprep.subr.mxu0 0.0
        %1315 = vmatpush2.xpose.msra.mxu0 0.0
        %1316 = vmatprep.mubr.f32.mxu0 0.0
        %1317 = vmatmul.mubr.f32.gmra.mxu0 %v1248
        %v1318 = vpop.f32.mrf.mxu0
        %v1319 = vadd.f32 0.0, %v1318
        %v1320 = vpop.f32.mrf.mxu0
        %1321 = vdwg.mxu0
        %v1322 = vmul.f32 %v1319, 0.35355338
        %v1323 = vsel %vm529, %v1322, -inf
        %1324 = vmax.xlane.f32.xlu0 %v1323
        %v1325 = vpop.xlane.xlu0 %1324
        %v1326 = vsub.f32 %v1322, %v1325
        %v1327 = vmul.f32 %v1326, 1.442695
        %v1328 = vpow.pop %v1327
        %v1329 = vsel %vm529, %v1328, 0.0
        %1330 = vadd.xlane.f32.xlu0 %v1329
        %v1331 = vpop.xlane.xlu0 %1330
        %v1332 = vrcp.pop %v1331
        %v1333 = vmul.f32 %v1328, %v1332
        %1334 = vrot.lane.b32.xlu0 %v519, 40
        %v1335 = vpop.permute.xlu0 %1334
        %v1338 = vsel %vm529, %v1333, 0
        %1340 = vmatprep.subr.mxu0 0.0
        %1341 = vmatpush1.msra.mxu0 0.0
        %1342 = vmatprep.subr.mxu0 0.0
        %1343 = vmatpush1.msra.mxu0 0.0
        %1344 = vmatprep.subr.mxu0 0.0
        %1345 = vmatpush1.msra.mxu0 0.0
        %1346 = vmatprep.subr.mxu0 0.0
        %1347 = vmatpush1.msra.mxu0 0.0
        %1348 = vmatprep.subr.mxu0 0.0
        %1349 = vmatpush1.msra.mxu0 0.0
        %1350 = vmatprep.subr.mxu0 0.0
        %1351 = vmatpush1.msra.mxu0 0.0
        %1352 = vmatprep.subr.mxu0 0.0
        %1353 = vmatpush1.msra.mxu0 0.0
        %1354 = vmatprep.subr.mxu0 0.0
        %1355 = vmatpush1.msra.mxu0 0.0
        %1356 = vmatprep.subr.mxu0 0.0
        %1357 = vmatpush1.msra.mxu0 0.0
        %1358 = vmatprep.subr.mxu0 0.0
        %1359 = vmatpush1.msra.mxu0 0.0
        %1360 = vmatprep.subr.mxu0 0.0
        %1361 = vmatpush1.msra.mxu0 0.0
        %1362 = vmatprep.subr.mxu0 0.0
        %1363 = vmatpush1.msra.mxu0 0.0
        %1364 = vmatprep.subr.mxu0 0.0
        %1365 = vmatpush1.msra.mxu0 0.0
        %1366 = vmatprep.subr.mxu0 0.0
        %1367 = vmatpush1.msra.mxu0 0.0
        %1368 = vmatprep.subr.mxu0 0.0
        %1369 = vmatpush1.msra.mxu0 0.0
        %1370 = vmatprep.subr.mxu0 0.0
        %1371 = vmatpush1.msra.mxu0 %v1335
        %1372 = vmatprep.subr.mxu0 0.0
        %1373 = vmatpush2.msra.mxu0 0.0
        %1374 = vmatprep.subr.mxu0 0.0
        %1375 = vmatpush2.msra.mxu0 0.0
        %1376 = vmatprep.subr.mxu0 0.0
        %1377 = vmatpush2.msra.mxu0 0.0
        %1378 = vmatprep.subr.mxu0 0.0
        %1379 = vmatpush2.msra.mxu0 0.0
        %1380 = vmatprep.subr.mxu0 0.0
        %1381 = vmatpush2.msra.mxu0 0.0
        %1382 = vmatprep.subr.mxu0 0.0
        %1383 = vmatpush2.msra.mxu0 0.0
        %1384 = vmatprep.subr.mxu0 0.0
        %1385 = vmatpush2.msra.mxu0 0.0
        %1386 = vmatprep.subr.mxu0 0.0
        %1387 = vmatpush2.msra.mxu0 0.0
        %1388 = vmatprep.subr.mxu0 0.0
        %1389 = vmatpush2.msra.mxu0 0.0
        %1390 = vmatprep.subr.mxu0 0.0
        %1391 = vmatpush2.msra.mxu0 0.0
        %1392 = vmatprep.subr.mxu0 0.0
        %1393 = vmatpush2.msra.mxu0 0.0
        %1394 = vmatprep.subr.mxu0 0.0
        %1395 = vmatpush2.msra.mxu0 0.0
        %1396 = vmatprep.subr.mxu0 0.0
        %1397 = vmatpush2.msra.mxu0 0.0
        %1398 = vmatprep.subr.mxu0 0.0
        %1399 = vmatpush2.msra.mxu0 0.0
        %1400 = vmatprep.subr.mxu0 0.0
        %1401 = vmatpush2.msra.mxu0 0.0
        %1402 = vmatprep.subr.mxu0 0.0
        %1403 = vmatpush2.msra.mxu0 0.0
        %1404 = vmatprep.mubr.f32.mxu0 0.0
        %1405 = vmatmul.mubr.f32.gmra.mxu0 %v1338
        %v1406 = vpop.f32.mrf.mxu0
        %v1407 = vadd.f32 0.0, %v1406
        %v1408 = vpop.f32.mrf.mxu0
        %1409 = vdwg.mxu0
        %v1411 = vsel %vm529, %v1407, 0
        %1413 = vmatprep.subr.mxu0 0.0
        %1414 = vmatpush1.msra.mxu0 0.0
        %1415 = vmatprep.subr.mxu0 0.0
        %1416 = vmatpush1.msra.mxu0 0.0
        %1417 = vmatprep.subr.mxu0 0.0
        %1418 = vmatpush1.msra.mxu0 0.0
        %1419 = vmatprep.subr.mxu0 0.0
        %1420 = vmatpush1.msra.mxu0 0.0
        %1421 = vmatprep.subr.mxu0 0.0
        %1422 = vmatpush1.msra.mxu0 0.0
        %1423 = vmatprep.subr.mxu0 0.0
        %1424 = vmatpush1.msra.mxu0 0.0
        %1425 = vmatprep.subr.mxu0 0.0
        %1426 = vmatpush1.msra.mxu0 0.0
        %1427 = vmatprep.subr.mxu0 0.0
        %1428 = vmatpush1.msra.mxu0 0.0
        %1429 = vmatprep.subr.mxu0 0.0
        %1430 = vmatpush1.msra.mxu0 0.0
        %1431 = vmatprep.subr.mxu0 0.0
        %1432 = vmatpush1.msra.mxu0 0.0
        %1433 = vmatprep.subr.mxu0 0.0
        %1434 = vmatpush1.msra.mxu0 0.0
        %1435 = vmatprep.subr.mxu0 0.0
        %1436 = vmatpush1.msra.mxu0 0.0
        %1437 = vmatprep.subr.mxu0 0.0
        %1438 = vmatpush1.msra.mxu0 0.0
        %1439 = vmatprep.subr.mxu0 0.0
        %1440 = vmatpush1.msra.mxu0 0.0
        %1441 = vmatprep.subr.mxu0 0.0
        %1442 = vmatpush1.msra.mxu0 0.0
        %1443 = vmatprep.subr.mxu0 0.0
        %1444 = vmatpush1.msra.mxu0 %v525
        %1445 = vmatprep.subr.mxu0 0.0
        %1446 = vmatpush2.msra.mxu0 0.0
        %1447 = vmatprep.subr.mxu0 0.0
        %1448 = vmatpush2.msra.mxu0 0.0
        %1449 = vmatprep.subr.mxu0 0.0
        %1450 = vmatpush2.msra.mxu0 0.0
        %1451 = vmatprep.subr.mxu0 0.0
        %1452 = vmatpush2.msra.mxu0 0.0
        %1453 = vmatprep.subr.mxu0 0.0
        %1454 = vmatpush2.msra.mxu0 0.0
        %1455 = vmatprep.subr.mxu0 0.0
        %1456 = vmatpush2.msra.mxu0 0.0
        %1457 = vmatprep.subr.mxu0 0.0
        %1458 = vmatpush2.msra.mxu0 0.0
        %1459 = vmatprep.subr.mxu0 0.0
        %1460 = vmatpush2.msra.mxu0 0.0
        %1461 = vmatprep.subr.mxu0 0.0
        %1462 = vmatpush2.msra.mxu0 0.0
        %1463 = vmatprep.subr.mxu0 0.0
        %1464 = vmatpush2.msra.mxu0 0.0
        %1465 = vmatprep.subr.mxu0 0.0
        %1466 = vmatpush2.msra.mxu0 0.0
        %1467 = vmatprep.subr.mxu0 0.0
        %1468 = vmatpush2.msra.mxu0 0.0
        %1469 = vmatprep.subr.mxu0 0.0
        %1470 = vmatpush2.msra.mxu0 0.0
        %1471 = vmatprep.subr.mxu0 0.0
        %1472 = vmatpush2.msra.mxu0 0.0
        %1473 = vmatprep.subr.mxu0 0.0
        %1474 = vmatpush2.msra.mxu0 0.0
        %1475 = vmatprep.subr.mxu0 0.0
        %1476 = vmatpush2.msra.mxu0 0.0
        %1477 = vmatprep.mubr.f32.mxu0 0.0
        %1478 = vmatmul.mubr.f32.gmra.mxu0 %v1411
        %v1479 = vpop.f32.mrf.mxu0
        %v1480 = vadd.f32 0.0, %v1479
        %v1481 = vpop.f32.mrf.mxu0
        %1482 = vdwg.mxu0
        %v1483 = vadd.f32 %v1243, %v1480
        %v1484 = vld [vmem:[%s4] sm:$0x1]
        %v1486 = vlaneseq
        %v1487 = vshrl.u32 %v1486, 7
        %v1488 = vsub.s32 0, %v1487
        %v1489 = vrot.slane %v1484, %v1488
        %v1491 = vadd.f32 %v1483, %v1489
        %v1492 = vadd.f32 %v1491, %v436
        %v1493 = vld [vmem:[%s5] sm:$0x1]
        %v1494 = vld [vmem:[%s6] sm:$0x1]
        %v1495 = vsel %vm448, %v1492, 0.0
        %1496 = vadd.xlane.f32.xlu0 %v1495
        %v1497 = vpop.xlane.xlu0 %1496
        %v1498 = vrcp.pop 32.0
        %v1499 = vmul.f32 %v1497, %v1498
        %v1500 = vsub.f32 %v1492, %v1499
        %v1501 = vmul.f32 %v1500, %v1500
        %v1502 = vsel %vm448, %v1501, 0.0
        %1503 = vadd.xlane.f32.xlu0 %v1502
        %v1504 = vpop.xlane.xlu0 %1503
        %v1505 = vmul.f32 %v1504, %v1498
        %v1506 = vadd.f32 %v1505, 1e-05
        %v1507 = vrsqrt.pop %v1506
        %v1508 = vmul.f32 %v1500, %v1507
        %v1510 = vlaneseq
        %v1511 = vshrl.u32 %v1510, 7
        %v1512 = vsub.s32 0, %v1511
        %v1513 = vrot.slane %v1493, %v1512
        %v1515 = vmul.f32 %v1508, %v1513
        %v1517 = vlaneseq
        %v1518 = vshrl.u32 %v1517, 7
        %v1519 = vsub.s32 0, %v1518
        %v1520 = vrot.slane %v1494, %v1519
        %v1522 = vadd.f32 %v1515, %v1520
        %v1523 = vld [vmem:[%s7] sm:$0xff]
        %v1524 = vld [vmem:[%s7 + $0x8] sm:$0xff]
        %v1525 = vld [vmem:[%s7 + $0x10] sm:$0xff]
        %v1526 = vld [vmem:[%s7 + $0x18] sm:$0xff]
        %v1527 = vld [vmem:[%s7 + $0x20] sm:$0xff]
        %v1528 = vld [vmem:[%s7 + $0x28] sm:$0xff]
        %v1529 = vld [vmem:[%s7 + $0x30] sm:$0xff]
        %v1530 = vld [vmem:[%s7 + $0x38] sm:$0xff]
        %v1531 = vld [vmem:[%s7 + $0x40] sm:$0xff]
        %v1532 = vld [vmem:[%s7 + $0x48] sm:$0xff]
        %v1533 = vld [vmem:[%s7 + $0x50] sm:$0xff]
        %v1534 = vld [vmem:[%s7 + $0x58] sm:$0xff]
        %v1535 = vld [vmem:[%s7 + $0x60] sm:$0xff]
        %v1536 = vld [vmem:[%s7 + $0x68] sm:$0xff]
        %v1537 = vld [vmem:[%s7 + $0x70] sm:$0xff]
        %v1538 = vld [vmem:[%s7 + $0x78] sm:$0xff]
        %v1539 = vld [vmem:[%s7 + $0x80] sm:$0xff]
        %v1540 = vld [vmem:[%s7 + $0x88] sm:$0xff]
        %v1541 = vld [vmem:[%s7 + $0x90] sm:$0xff]
        %v1542 = vld [vmem:[%s7 + $0x98] sm:$0xff]
        %v1543 = vld [vmem:[%s7 + $0xa0] sm:$0xff]
        %v1544 = vld [vmem:[%s7 + $0xa8] sm:$0xff]
        %v1545 = vld [vmem:[%s7 + $0xb0] sm:$0xff]
        %v1546 = vld [vmem:[%s7 + $0xb8] sm:$0xff]
        %v1547 = vld [vmem:[%s7 + $0xc0] sm:$0xff]
        %v1548 = vld [vmem:[%s7 + $0xc8] sm:$0xff]
        %v1549 = vld [vmem:[%s7 + $0xd0] sm:$0xff]
        %v1550 = vld [vmem:[%s7 + $0xd8] sm:$0xff]
        %v1551 = vld [vmem:[%s7 + $0xe0] sm:$0xff]
        %v1552 = vld [vmem:[%s7 + $0xe8] sm:$0xff]
        %v1553 = vld [vmem:[%s7 + $0xf0] sm:$0xff]
        %v1554 = vld [vmem:[%s7 + $0xf8] sm:$0xff]
        %v1555 = vld [vmem:[%s7 + $0x100] sm:$0xff]
        %v1556 = vld [vmem:[%s7 + $0x108] sm:$0xff]
        %v1557 = vld [vmem:[%s7 + $0x110] sm:$0xff]
        %v1558 = vld [vmem:[%s7 + $0x118] sm:$0xff]
        %v1559 = vld [vmem:[%s7 + $0x120] sm:$0xff]
        %v1560 = vld [vmem:[%s7 + $0x128] sm:$0xff]
        %v1561 = vld [vmem:[%s7 + $0x130] sm:$0xff]
        %v1562 = vld [vmem:[%s7 + $0x138] sm:$0xff]
        %v1563 = vld [vmem:[%s7 + $0x140] sm:$0xff]
        %v1564 = vld [vmem:[%s7 + $0x148] sm:$0xff]
        %v1565 = vld [vmem:[%s7 + $0x150] sm:$0xff]
        %v1566 = vld [vmem:[%s7 + $0x158] sm:$0xff]
        %v1567 = vld [vmem:[%s7 + $0x160] sm:$0xff]
        %v1568 = vld [vmem:[%s7 + $0x168] sm:$0xff]
        %v1569 = vld [vmem:[%s7 + $0x170] sm:$0xff]
        %v1570 = vld [vmem:[%s7 + $0x178] sm:$0xff]
        %v1571 = vld [vmem:[%s7 + $0x180] sm:$0xff]
        %v1572 = vld [vmem:[%s7 + $0x188] sm:$0xff]
        %v1573 = vld [vmem:[%s7 + $0x190] sm:$0xff]
        %v1574 = vld [vmem:[%s7 + $0x198] sm:$0xff]
        %v1575 = vld [vmem:[%s7 + $0x1a0] sm:$0xff]
        %v1576 = vld [vmem:[%s7 + $0x1a8] sm:$0xff]
        %v1577 = vld [vmem:[%s7 + $0x1b0] sm:$0xff]
        %v1578 = vld [vmem:[%s7 + $0x1b8] sm:$0xff]
        %v1579 = vld [vmem:[%s7 + $0x1c0] sm:$0xff]
        %v1580 = vld [vmem:[%s7 + $0x1c8] sm:$0xff]
        %v1581 = vld [vmem:[%s7 + $0x1d0] sm:$0xff]
        %v1582 = vld [vmem:[%s7 + $0x1d8] sm:$0xff]
        %v1583 = vld [vmem:[%s7 + $0x1e0] sm:$0xff]
        %v1584 = vld [vmem:[%s7 + $0x1e8] sm:$0xff]
        %v1585 = vld [vmem:[%s7 + $0x1f0] sm:$0xff]
        %v1586 = vld [vmem:[%s7 + $0x1f8] sm:$0xff]
        %v1587 = vld [vmem:[%s8] sm:$0xff]
        %v1588 = vld [vmem:[%s8 + $0x8] sm:$0xff]
        %v1591 = vlaneseq
        %v1592 = vshrl.u32 %v1591, 7
        %v1593 = vsub.s32 0, %v1592
        %v1594 = vrot.slane %v1587, %v1593
        %v1595 = vlaneseq
        %v1596 = vshrl.u32 %v1595, 7
        %v1597 = vsub.s32 1, %v1596
        %v1598 = vrot.slane %v1587, %v1597
        %v1599 = vlaneseq
        %v1600 = vshrl.u32 %v1599, 7
        %v1601 = vsub.s32 2, %v1600
        %v1602 = vrot.slane %v1587, %v1601
        %v1603 = vlaneseq
        %v1604 = vshrl.u32 %v1603, 7
        %v1605 = vsub.s32 3, %v1604
        %v1606 = vrot.slane %v1587, %v1605
        %v1607 = vlaneseq
        %v1608 = vshrl.u32 %v1607, 7
        %v1609 = vsub.s32 4, %v1608
        %v1610 = vrot.slane %v1587, %v1609
        %v1611 = vlaneseq
        %v1612 = vshrl.u32 %v1611, 7
        %v1613 = vsub.s32 5, %v1612
        %v1614 = vrot.slane %v1587, %v1613
        %v1615 = vlaneseq
        %v1616 = vshrl.u32 %v1615, 7
        %v1617 = vsub.s32 6, %v1616
        %v1618 = vrot.slane %v1587, %v1617
        %v1619 = vlaneseq
        %v1620 = vshrl.u32 %v1619, 7
        %v1621 = vsub.s32 7, %v1620
        %v1622 = vrot.slane %v1587, %v1621
        %v1623 = vlaneseq
        %v1624 = vshrl.u32 %v1623, 7
        %v1625 = vsub.s32 0, %v1624
        %v1626 = vrot.slane %v1588, %v1625
        %v1627 = vlaneseq
        %v1628 = vshrl.u32 %v1627, 7
        %v1629 = vsub.s32 1, %v1628
        %v1630 = vrot.slane %v1588, %v1629
        %v1631 = vlaneseq
        %v1632 = vshrl.u32 %v1631, 7
        %v1633 = vsub.s32 2, %v1632
        %v1634 = vrot.slane %v1588, %v1633
        %v1635 = vlaneseq
        %v1636 = vshrl.u32 %v1635, 7
        %v1637 = vsub.s32 3, %v1636
        %v1638 = vrot.slane %v1588, %v1637
        %v1639 = vlaneseq
        %v1640 = vshrl.u32 %v1639, 7
        %v1641 = vsub.s32 4, %v1640
        %v1642 = vrot.slane %v1588, %v1641
        %v1643 = vlaneseq
        %v1644 = vshrl.u32 %v1643, 7
        %v1645 = vsub.s32 5, %v1644
        %v1646 = vrot.slane %v1588, %v1645
        %v1647 = vlaneseq
        %v1648 = vshrl.u32 %v1647, 7
        %v1649 = vsub.s32 6, %v1648
        %v1650 = vrot.slane %v1588, %v1649
        %v1651 = vlaneseq
        %v1652 = vshrl.u32 %v1651, 7
        %v1653 = vsub.s32 7, %v1652
        %v1654 = vrot.slane %v1588, %v1653
        %v1672 = vsel %vm448, %v1522, 0
        %1674 = vmatprep.subr.mxu0 0.0
        %1675 = vmatpush1.msra.mxu0 0.0
        %1676 = vmatprep.subr.mxu0 0.0
        %1677 = vmatpush1.msra.mxu0 0.0
        %1678 = vmatprep.subr.mxu0 0.0
        %1679 = vmatpush1.msra.mxu0 0.0
        %1680 = vmatprep.subr.mxu0 0.0
        %1681 = vmatpush1.msra.mxu0 0.0
        %1682 = vmatprep.subr.mxu0 0.0
        %1683 = vmatpush1.msra.mxu0 0.0
        %1684 = vmatprep.subr.mxu0 0.0
        %1685 = vmatpush1.msra.mxu0 0.0
        %1686 = vmatprep.subr.mxu0 0.0
        %1687 = vmatpush1.msra.mxu0 0.0
        %1688 = vmatprep.subr.mxu0 0.0
        %1689 = vmatpush1.msra.mxu0 0.0
        %1690 = vmatprep.subr.mxu0 0.0
        %1691 = vmatpush1.msra.mxu0 0.0
        %1692 = vmatprep.subr.mxu0 0.0
        %1693 = vmatpush1.msra.mxu0 0.0
        %1694 = vmatprep.subr.mxu0 0.0
        %1695 = vmatpush1.msra.mxu0 0.0
        %1696 = vmatprep.subr.mxu0 0.0
        %1697 = vmatpush1.msra.mxu0 0.0
        %1698 = vmatprep.subr.mxu0 %v1572
        %1699 = vmatpush1.msra.mxu0 %v1571
        %1700 = vmatprep.subr.mxu0 %v1556
        %1701 = vmatpush1.msra.mxu0 %v1555
        %1702 = vmatprep.subr.mxu0 %v1540
        %1703 = vmatpush1.msra.mxu0 %v1539
        %1704 = vmatprep.subr.mxu0 %v1524
        %1705 = vmatpush1.msra.mxu0 %v1523
        %1706 = vmatprep.subr.mxu0 0.0
        %1707 = vmatpush2.msra.mxu0 0.0
        %1708 = vmatprep.subr.mxu0 0.0
        %1709 = vmatpush2.msra.mxu0 0.0
        %1710 = vmatprep.subr.mxu0 0.0
        %1711 = vmatpush2.msra.mxu0 0.0
        %1712 = vmatprep.subr.mxu0 0.0
        %1713 = vmatpush2.msra.mxu0 0.0
        %1714 = vmatprep.subr.mxu0 0.0
        %1715 = vmatpush2.msra.mxu0 0.0
        %1716 = vmatprep.subr.mxu0 0.0
        %1717 = vmatpush2.msra.mxu0 0.0
        %1718 = vmatprep.subr.mxu0 0.0
        %1719 = vmatpush2.msra.mxu0 0.0
        %1720 = vmatprep.subr.mxu0 0.0
        %1721 = vmatpush2.msra.mxu0 0.0
        %1722 = vmatprep.subr.mxu0 0.0
        %1723 = vmatpush2.msra.mxu0 0.0
        %1724 = vmatprep.subr.mxu0 0.0
        %1725 = vmatpush2.msra.mxu0 0.0
        %1726 = vmatprep.subr.mxu0 0.0
        %1727 = vmatpush2.msra.mxu0 0.0
        %1728 = vmatprep.subr.mxu0 0.0
        %1729 = vmatpush2.msra.mxu0 0.0
        %1730 = vmatprep.subr.mxu0 0.0
        %1731 = vmatpush2.msra.mxu0 0.0
        %1732 = vmatprep.subr.mxu0 0.0
        %1733 = vmatpush2.msra.mxu0 0.0
        %1734 = vmatprep.subr.mxu0 0.0
        %1735 = vmatpush2.msra.mxu0 0.0
        %1736 = vmatprep.subr.mxu0 0.0
        %1737 = vmatpush2.msra.mxu0 0.0
        %1738 = vmatprep.mubr.f32.mxu0 0.0
        %1739 = vmatmul.mubr.f32.gmra.mxu0 %v1672
        %v1740 = vpop.f32.mrf.mxu0
        %v1741 = vadd.f32 %v1594, %v1740
        %v1742 = vpop.f32.mrf.mxu0
        %v1743 = vadd.f32 %v1598, %v1742
        %1744 = vdwg.mxu0
        %1745 = vmatprep.subr.mxu0 0.0
        %1746 = vmatpush1.msra.mxu0 0.0
        %1747 = vmatprep.subr.mxu0 0.0
        %1748 = vmatpush1.msra.mxu0 0.0
        %1749 = vmatprep.subr.mxu0 0.0
        %1750 = vmatpush1.msra.mxu0 0.0
        %1751 = vmatprep.subr.mxu0 0.0
        %1752 = vmatpush1.msra.mxu0 0.0
        %1753 = vmatprep.subr.mxu0 0.0
        %1754 = vmatpush1.msra.mxu0 0.0
        %1755 = vmatprep.subr.mxu0 0.0
        %1756 = vmatpush1.msra.mxu0 0.0
        %1757 = vmatprep.subr.mxu0 0.0
        %1758 = vmatpush1.msra.mxu0 0.0
        %1759 = vmatprep.subr.mxu0 0.0
        %1760 = vmatpush1.msra.mxu0 0.0
        %1761 = vmatprep.subr.mxu0 0.0
        %1762 = vmatpush1.msra.mxu0 0.0
        %1763 = vmatprep.subr.mxu0 0.0
        %1764 = vmatpush1.msra.mxu0 0.0
        %1765 = vmatprep.subr.mxu0 0.0
        %1766 = vmatpush1.msra.mxu0 0.0
        %1767 = vmatprep.subr.mxu0 0.0
        %1768 = vmatpush1.msra.mxu0 0.0
        %1769 = vmatprep.subr.mxu0 %v1574
        %1770 = vmatpush1.msra.mxu0 %v1573
        %1771 = vmatprep.subr.mxu0 %v1558
        %1772 = vmatpush1.msra.mxu0 %v1557
        %1773 = vmatprep.subr.mxu0 %v1542
        %1774 = vmatpush1.msra.mxu0 %v1541
        %1775 = vmatprep.subr.mxu0 %v1526
        %1776 = vmatpush1.msra.mxu0 %v1525
        %1777 = vmatprep.subr.mxu0 0.0
        %1778 = vmatpush2.msra.mxu0 0.0
        %1779 = vmatprep.subr.mxu0 0.0
        %1780 = vmatpush2.msra.mxu0 0.0
        %1781 = vmatprep.subr.mxu0 0.0
        %1782 = vmatpush2.msra.mxu0 0.0
        %1783 = vmatprep.subr.mxu0 0.0
        %1784 = vmatpush2.msra.mxu0 0.0
        %1785 = vmatprep.subr.mxu0 0.0
        %1786 = vmatpush2.msra.mxu0 0.0
        %1787 = vmatprep.subr.mxu0 0.0
        %1788 = vmatpush2.msra.mxu0 0.0
        %1789 = vmatprep.subr.mxu0 0.0
        %1790 = vmatpush2.msra.mxu0 0.0
        %1791 = vmatprep.subr.mxu0 0.0
        %1792 = vmatpush2.msra.mxu0 0.0
        %1793 = vmatprep.subr.mxu0 0.0
        %1794 = vmatpush2.msra.mxu0 0.0
        %1795 = vmatprep.subr.mxu0 0.0
        %1796 = vmatpush2.msra.mxu0 0.0
        %1797 = vmatprep.subr.mxu0 0.0
        %1798 = vmatpush2.msra.mxu0 0.0
        %1799 = vmatprep.subr.mxu0 0.0
        %1800 = vmatpush2.msra.mxu0 0.0
        %1801 = vmatprep.subr.mxu0 0.0
        %1802 = vmatpush2.msra.mxu0 0.0
        %1803 = vmatprep.subr.mxu0 0.0
        %1804 = vmatpush2.msra.mxu0 0.0
        %1805 = vmatprep.subr.mxu0 0.0
        %1806 = vmatpush2.msra.mxu0 0.0
        %1807 = vmatprep.subr.mxu0 0.0
        %1808 = vmatpush2.msra.mxu0 0.0
        %1809 = vmatprep.mubr.f32.mxu0 0.0
        %1810 = vmatmul.mubr.f32.gmra.mxu0 %v1672
        %v1811 = vpop.f32.mrf.mxu0
        %v1812 = vadd.f32 %v1602, %v1811
        %v1813 = vpop.f32.mrf.mxu0
        %v1814 = vadd.f32 %v1606, %v1813
        %1815 = vdwg.mxu0
        %1816 = vmatprep.subr.mxu0 0.0
        %1817 = vmatpush1.msra.mxu0 0.0
        %1818 = vmatprep.subr.mxu0 0.0
        %1819 = vmatpush1.msra.mxu0 0.0
        %1820 = vmatprep.subr.mxu0 0.0
        %1821 = vmatpush1.msra.mxu0 0.0
        %1822 = vmatprep.subr.mxu0 0.0
        %1823 = vmatpush1.msra.mxu0 0.0
        %1824 = vmatprep.subr.mxu0 0.0
        %1825 = vmatpush1.msra.mxu0 0.0
        %1826 = vmatprep.subr.mxu0 0.0
        %1827 = vmatpush1.msra.mxu0 0.0
        %1828 = vmatprep.subr.mxu0 0.0
        %1829 = vmatpush1.msra.mxu0 0.0
        %1830 = vmatprep.subr.mxu0 0.0
        %1831 = vmatpush1.msra.mxu0 0.0
        %1832 = vmatprep.subr.mxu0 0.0
        %1833 = vmatpush1.msra.mxu0 0.0
        %1834 = vmatprep.subr.mxu0 0.0
        %1835 = vmatpush1.msra.mxu0 0.0
        %1836 = vmatprep.subr.mxu0 0.0
        %1837 = vmatpush1.msra.mxu0 0.0
        %1838 = vmatprep.subr.mxu0 0.0
        %1839 = vmatpush1.msra.mxu0 0.0
        %1840 = vmatprep.subr.mxu0 %v1576
        %1841 = vmatpush1.msra.mxu0 %v1575
        %1842 = vmatprep.subr.mxu0 %v1560
        %1843 = vmatpush1.msra.mxu0 %v1559
        %1844 = vmatprep.subr.mxu0 %v1544
        %1845 = vmatpush1.msra.mxu0 %v1543
        %1846 = vmatprep.subr.mxu0 %v1528
        %1847 = vmatpush1.msra.mxu0 %v1527
        %1848 = vmatprep.subr.mxu0 0.0
        %1849 = vmatpush2.msra.mxu0 0.0
        %1850 = vmatprep.subr.mxu0 0.0
        %1851 = vmatpush2.msra.mxu0 0.0
        %1852 = vmatprep.subr.mxu0 0.0
        %1853 = vmatpush2.msra.mxu0 0.0
        %1854 = vmatprep.subr.mxu0 0.0
        %1855 = vmatpush2.msra.mxu0 0.0
        %1856 = vmatprep.subr.mxu0 0.0
        %1857 = vmatpush2.msra.mxu0 0.0
        %1858 = vmatprep.subr.mxu0 0.0
        %1859 = vmatpush2.msra.mxu0 0.0
        %1860 = vmatprep.subr.mxu0 0.0
        %1861 = vmatpush2.msra.mxu0 0.0
        %1862 = vmatprep.subr.mxu0 0.0
        %1863 = vmatpush2.msra.mxu0 0.0
        %1864 = vmatprep.subr.mxu0 0.0
        %1865 = vmatpush2.msra.mxu0 0.0
        %1866 = vmatprep.subr.mxu0 0.0
        %1867 = vmatpush2.msra.mxu0 0.0
        %1868 = vmatprep.subr.mxu0 0.0
        %1869 = vmatpush2.msra.mxu0 0.0
        %1870 = vmatprep.subr.mxu0 0.0
        %1871 = vmatpush2.msra.mxu0 0.0
        %1872 = vmatprep.subr.mxu0 0.0
        %1873 = vmatpush2.msra.mxu0 0.0
        %1874 = vmatprep.subr.mxu0 0.0
        %1875 = vmatpush2.msra.mxu0 0.0
        %1876 = vmatprep.subr.mxu0 0.0
        %1877 = vmatpush2.msra.mxu0 0.0
        %1878 = vmatprep.subr.mxu0 0.0
        %1879 = vmatpush2.msra.mxu0 0.0
        %1880 = vmatprep.mubr.f32.mxu0 0.0
        %1881 = vmatmul.mubr.f32.gmra.mxu0 %v1672
        %v1882 = vpop.f32.mrf.mxu0
        %v1883 = vadd.f32 %v1610, %v1882
        %v1884 = vpop.f32.mrf.mxu0
        %v1885 = vadd.f32 %v1614, %v1884
        %1886 = vdwg.mxu0
        %1887 = vmatprep.subr.mxu0 0.0
        %1888 = vmatpush1.msra.mxu0 0.0
        %1889 = vmatprep.subr.mxu0 0.0
        %1890 = vmatpush1.msra.mxu0 0.0
        %1891 = vmatprep.subr.mxu0 0.0
        %1892 = vmatpush1.msra.mxu0 0.0
        %1893 = vmatprep.subr.mxu0 0.0
        %1894 = vmatpush1.msra.mxu0 0.0
        %1895 = vmatprep.subr.mxu0 0.0
        %1896 = vmatpush1.msra.mxu0 0.0
        %1897 = vmatprep.subr.mxu0 0.0
        %1898 = vmatpush1.msra.mxu0 0.0
        %1899 = vmatprep.subr.mxu0 0.0
        %1900 = vmatpush1.msra.mxu0 0.0
        %1901 = vmatprep.subr.mxu0 0.0
        %1902 = vmatpush1.msra.mxu0 0.0
        %1903 = vmatprep.subr.mxu0 0.0
        %1904 = vmatpush1.msra.mxu0 0.0
        %1905 = vmatprep.subr.mxu0 0.0
        %1906 = vmatpush1.msra.mxu0 0.0
        %1907 = vmatprep.subr.mxu0 0.0
        %1908 = vmatpush1.msra.mxu0 0.0
        %1909 = vmatprep.subr.mxu0 0.0
        %1910 = vmatpush1.msra.mxu0 0.0
        %1911 = vmatprep.subr.mxu0 %v1578
        %1912 = vmatpush1.msra.mxu0 %v1577
        %1913 = vmatprep.subr.mxu0 %v1562
        %1914 = vmatpush1.msra.mxu0 %v1561
        %1915 = vmatprep.subr.mxu0 %v1546
        %1916 = vmatpush1.msra.mxu0 %v1545
        %1917 = vmatprep.subr.mxu0 %v1530
        %1918 = vmatpush1.msra.mxu0 %v1529
        %1919 = vmatprep.subr.mxu0 0.0
        %1920 = vmatpush2.msra.mxu0 0.0
        %1921 = vmatprep.subr.mxu0 0.0
        %1922 = vmatpush2.msra.mxu0 0.0
        %1923 = vmatprep.subr.mxu0 0.0
        %1924 = vmatpush2.msra.mxu0 0.0
        %1925 = vmatprep.subr.mxu0 0.0
        %1926 = vmatpush2.msra.mxu0 0.0
        %1927 = vmatprep.subr.mxu0 0.0
        %1928 = vmatpush2.msra.mxu0 0.0
        %1929 = vmatprep.subr.mxu0 0.0
        %1930 = vmatpush2.msra.mxu0 0.0
        %1931 = vmatprep.subr.mxu0 0.0
        %1932 = vmatpush2.msra.mxu0 0.0
        %1933 = vmatprep.subr.mxu0 0.0
        %1934 = vmatpush2.msra.mxu0 0.0
        %1935 = vmatprep.subr.mxu0 0.0
        %1936 = vmatpush2.msra.mxu0 0.0
        %1937 = vmatprep.subr.mxu0 0.0
        %1938 = vmatpush2.msra.mxu0 0.0
        %1939 = vmatprep.subr.mxu0 0.0
        %1940 = vmatpush2.msra.mxu0 0.0
        %1941 = vmatprep.subr.mxu0 0.0
        %1942 = vmatpush2.msra.mxu0 0.0
        %1943 = vmatprep.subr.mxu0 0.0
        %1944 = vmatpush2.msra.mxu0 0.0
        %1945 = vmatprep.subr.mxu0 0.0
        %1946 = vmatpush2.msra.mxu0 0.0
        %1947 = vmatprep.subr.mxu0 0.0
        %1948 = vmatpush2.msra.mxu0 0.0
        %1949 = vmatprep.subr.mxu0 0.0
        %1950 = vmatpush2.msra.mxu0 0.0
        %1951 = vmatprep.mubr.f32.mxu0 0.0
        %1952 = vmatmul.mubr.f32.gmra.mxu0 %v1672
        %v1953 = vpop.f32.mrf.mxu0
        %v1954 = vadd.f32 %v1618, %v1953
        %v1955 = vpop.f32.mrf.mxu0
        %v1956 = vadd.f32 %v1622, %v1955
        %1957 = vdwg.mxu0
        %1958 = vmatprep.subr.mxu0 0.0
        %1959 = vmatpush1.msra.mxu0 0.0
        %1960 = vmatprep.subr.mxu0 0.0
        %1961 = vmatpush1.msra.mxu0 0.0
        %1962 = vmatprep.subr.mxu0 0.0
        %1963 = vmatpush1.msra.mxu0 0.0
        %1964 = vmatprep.subr.mxu0 0.0
        %1965 = vmatpush1.msra.mxu0 0.0
        %1966 = vmatprep.subr.mxu0 0.0
        %1967 = vmatpush1.msra.mxu0 0.0
        %1968 = vmatprep.subr.mxu0 0.0
        %1969 = vmatpush1.msra.mxu0 0.0
        %1970 = vmatprep.subr.mxu0 0.0
        %1971 = vmatpush1.msra.mxu0 0.0
        %1972 = vmatprep.subr.mxu0 0.0
        %1973 = vmatpush1.msra.mxu0 0.0
        %1974 = vmatprep.subr.mxu0 0.0
        %1975 = vmatpush1.msra.mxu0 0.0
        %1976 = vmatprep.subr.mxu0 0.0
        %1977 = vmatpush1.msra.mxu0 0.0
        %1978 = vmatprep.subr.mxu0 0.0
        %1979 = vmatpush1.msra.mxu0 0.0
        %1980 = vmatprep.subr.mxu0 0.0
        %1981 = vmatpush1.msra.mxu0 0.0
        %1982 = vmatprep.subr.mxu0 %v1580
        %1983 = vmatpush1.msra.mxu0 %v1579
        %1984 = vmatprep.subr.mxu0 %v1564
        %1985 = vmatpush1.msra.mxu0 %v1563
        %1986 = vmatprep.subr.mxu0 %v1548
        %1987 = vmatpush1.msra.mxu0 %v1547
        %1988 = vmatprep.subr.mxu0 %v1532
        %1989 = vmatpush1.msra.mxu0 %v1531
        %1990 = vmatprep.subr.mxu0 0.0
        %1991 = vmatpush2.msra.mxu0 0.0
        %1992 = vmatprep.subr.mxu0 0.0
        %1993 = vmatpush2.msra.mxu0 0.0
        %1994 = vmatprep.subr.mxu0 0.0
        %1995 = vmatpush2.msra.mxu0 0.0
        %1996 = vmatprep.subr.mxu0 0.0
        %1997 = vmatpush2.msra.mxu0 0.0
        %1998 = vmatprep.subr.mxu0 0.0
        %1999 = vmatpush2.msra.mxu0 0.0
        %2000 = vmatprep.subr.mxu0 0.0
        %2001 = vmatpush2.msra.mxu0 0.0
        %2002 = vmatprep.subr.mxu0 0.0
        %2003 = vmatpush2.msra.mxu0 0.0
        %2004 = vmatprep.subr.mxu0 0.0
        %2005 = vmatpush2.msra.mxu0 0.0
        %2006 = vmatprep.subr.mxu0 0.0
        %2007 = vmatpush2.msra.mxu0 0.0
        %2008 = vmatprep.subr.mxu0 0.0
        %2009 = vmatpush2.msra.mxu0 0.0
        %2010 = vmatprep.subr.mxu0 0.0
        %2011 = vmatpush2.msra.mxu0 0.0
        %2012 = vmatprep.subr.mxu0 0.0
        %2013 = vmatpush2.msra.mxu0 0.0
        %2014 = vmatprep.subr.mxu0 0.0
        %2015 = vmatpush2.msra.mxu0 0.0
        %2016 = vmatprep.subr.mxu0 0.0
        %2017 = vmatpush2.msra.mxu0 0.0
        %2018 = vmatprep.subr.mxu0 0.0
        %2019 = vmatpush2.msra.mxu0 0.0
        %2020 = vmatprep.subr.mxu0 0.0
        %2021 = vmatpush2.msra.mxu0 0.0
        %2022 = vmatprep.mubr.f32.mxu0 0.0
        %2023 = vmatmul.mubr.f32.gmra.mxu0 %v1672
        %v2024 = vpop.f32.mrf.mxu0
        %v2025 = vadd.f32 %v1626, %v2024
        %v2026 = vpop.f32.mrf.mxu0
        %v2027 = vadd.f32 %v1630, %v2026
        %2028 = vdwg.mxu0
        %2029 = vmatprep.subr.mxu0 0.0
        %2030 = vmatpush1.msra.mxu0 0.0
        %2031 = vmatprep.subr.mxu0 0.0
        %2032 = vmatpush1.msra.mxu0 0.0
        %2033 = vmatprep.subr.mxu0 0.0
        %2034 = vmatpush1.msra.mxu0 0.0
        %2035 = vmatprep.subr.mxu0 0.0
        %2036 = vmatpush1.msra.mxu0 0.0
        %2037 = vmatprep.subr.mxu0 0.0
        %2038 = vmatpush1.msra.mxu0 0.0
        %2039 = vmatprep.subr.mxu0 0.0
        %2040 = vmatpush1.msra.mxu0 0.0
        %2041 = vmatprep.subr.mxu0 0.0
        %2042 = vmatpush1.msra.mxu0 0.0
        %2043 = vmatprep.subr.mxu0 0.0
        %2044 = vmatpush1.msra.mxu0 0.0
        %2045 = vmatprep.subr.mxu0 0.0
        %2046 = vmatpush1.msra.mxu0 0.0
        %2047 = vmatprep.subr.mxu0 0.0
        %2048 = vmatpush1.msra.mxu0 0.0
        %2049 = vmatprep.subr.mxu0 0.0
        %2050 = vmatpush1.msra.mxu0 0.0
        %2051 = vmatprep.subr.mxu0 0.0
        %2052 = vmatpush1.msra.mxu0 0.0
        %2053 = vmatprep.subr.mxu0 %v1582
        %2054 = vmatpush1.msra.mxu0 %v1581
        %2055 = vmatprep.subr.mxu0 %v1566
        %2056 = vmatpush1.msra.mxu0 %v1565
        %2057 = vmatprep.subr.mxu0 %v1550
        %2058 = vmatpush1.msra.mxu0 %v1549
        %2059 = vmatprep.subr.mxu0 %v1534
        %2060 = vmatpush1.msra.mxu0 %v1533
        %2061 = vmatprep.subr.mxu0 0.0
        %2062 = vmatpush2.msra.mxu0 0.0
        %2063 = vmatprep.subr.mxu0 0.0
        %2064 = vmatpush2.msra.mxu0 0.0
        %2065 = vmatprep.subr.mxu0 0.0
        %2066 = vmatpush2.msra.mxu0 0.0
        %2067 = vmatprep.subr.mxu0 0.0
        %2068 = vmatpush2.msra.mxu0 0.0
        %2069 = vmatprep.subr.mxu0 0.0
        %2070 = vmatpush2.msra.mxu0 0.0
        %2071 = vmatprep.subr.mxu0 0.0
        %2072 = vmatpush2.msra.mxu0 0.0
        %2073 = vmatprep.subr.mxu0 0.0
        %2074 = vmatpush2.msra.mxu0 0.0
        %2075 = vmatprep.subr.mxu0 0.0
        %2076 = vmatpush2.msra.mxu0 0.0
        %2077 = vmatprep.subr.mxu0 0.0
        %2078 = vmatpush2.msra.mxu0 0.0
        %2079 = vmatprep.subr.mxu0 0.0
        %2080 = vmatpush2.msra.mxu0 0.0
        %2081 = vmatprep.subr.mxu0 0.0
        %2082 = vmatpush2.msra.mxu0 0.0
        %2083 = vmatprep.subr.mxu0 0.0
        %2084 = vmatpush2.msra.mxu0 0.0
        %2085 = vmatprep.subr.mxu0 0.0
        %2086 = vmatpush2.msra.mxu0 0.0
        %2087 = vmatprep.subr.mxu0 0.0
        %2088 = vmatpush2.msra.mxu0 0.0
        %2089 = vmatprep.subr.mxu0 0.0
        %2090 = vmatpush2.msra.mxu0 0.0
        %2091 = vmatprep.subr.mxu0 0.0
        %2092 = vmatpush2.msra.mxu0 0.0
        %2093 = vmatprep.mubr.f32.mxu0 0.0
        %2094 = vmatmul.mubr.f32.gmra.mxu0 %v1672
        %v2095 = vpop.f32.mrf.mxu0
        %v2096 = vadd.f32 %v1634, %v2095
        %v2097 = vpop.f32.mrf.mxu0
        %v2098 = vadd.f32 %v1638, %v2097
        %2099 = vdwg.mxu0
        %2100 = vmatprep.subr.mxu0 0.0
        %2101 = vmatpush1.msra.mxu0 0.0
        %2102 = vmatprep.subr.mxu0 0.0
        %2103 = vmatpush1.msra.mxu0 0.0
        %2104 = vmatprep.subr.mxu0 0.0
        %2105 = vmatpush1.msra.mxu0 0.0
        %2106 = vmatprep.subr.mxu0 0.0
        %2107 = vmatpush1.msra.mxu0 0.0
        %2108 = vmatprep.subr.mxu0 0.0
        %2109 = vmatpush1.msra.mxu0 0.0
        %2110 = vmatprep.subr.mxu0 0.0
        %2111 = vmatpush1.msra.mxu0 0.0
        %2112 = vmatprep.subr.mxu0 0.0
        %2113 = vmatpush1.msra.mxu0 0.0
        %2114 = vmatprep.subr.mxu0 0.0
        %2115 = vmatpush1.msra.mxu0 0.0
        %2116 = vmatprep.subr.mxu0 0.0
        %2117 = vmatpush1.msra.mxu0 0.0
        %2118 = vmatprep.subr.mxu0 0.0
        %2119 = vmatpush1.msra.mxu0 0.0
        %2120 = vmatprep.subr.mxu0 0.0
        %2121 = vmatpush1.msra.mxu0 0.0
        %2122 = vmatprep.subr.mxu0 0.0
        %2123 = vmatpush1.msra.mxu0 0.0
        %2124 = vmatprep.subr.mxu0 %v1584
        %2125 = vmatpush1.msra.mxu0 %v1583
        %2126 = vmatprep.subr.mxu0 %v1568
        %2127 = vmatpush1.msra.mxu0 %v1567
        %2128 = vmatprep.subr.mxu0 %v1552
        %2129 = vmatpush1.msra.mxu0 %v1551
        %2130 = vmatprep.subr.mxu0 %v1536
        %2131 = vmatpush1.msra.mxu0 %v1535
        %2132 = vmatprep.subr.mxu0 0.0
        %2133 = vmatpush2.msra.mxu0 0.0
        %2134 = vmatprep.subr.mxu0 0.0
        %2135 = vmatpush2.msra.mxu0 0.0
        %2136 = vmatprep.subr.mxu0 0.0
        %2137 = vmatpush2.msra.mxu0 0.0
        %2138 = vmatprep.subr.mxu0 0.0
        %2139 = vmatpush2.msra.mxu0 0.0
        %2140 = vmatprep.subr.mxu0 0.0
        %2141 = vmatpush2.msra.mxu0 0.0
        %2142 = vmatprep.subr.mxu0 0.0
        %2143 = vmatpush2.msra.mxu0 0.0
        %2144 = vmatprep.subr.mxu0 0.0
        %2145 = vmatpush2.msra.mxu0 0.0
        %2146 = vmatprep.subr.mxu0 0.0
        %2147 = vmatpush2.msra.mxu0 0.0
        %2148 = vmatprep.subr.mxu0 0.0
        %2149 = vmatpush2.msra.mxu0 0.0
        %2150 = vmatprep.subr.mxu0 0.0
        %2151 = vmatpush2.msra.mxu0 0.0
        %2152 = vmatprep.subr.mxu0 0.0
        %2153 = vmatpush2.msra.mxu0 0.0
        %2154 = vmatprep.subr.mxu0 0.0
        %2155 = vmatpush2.msra.mxu0 0.0
        %2156 = vmatprep.subr.mxu0 0.0
        %2157 = vmatpush2.msra.mxu0 0.0
        %2158 = vmatprep.subr.mxu0 0.0
        %2159 = vmatpush2.msra.mxu0 0.0
        %2160 = vmatprep.subr.mxu0 0.0
        %2161 = vmatpush2.msra.mxu0 0.0
        %2162 = vmatprep.subr.mxu0 0.0
        %2163 = vmatpush2.msra.mxu0 0.0
        %2164 = vmatprep.mubr.f32.mxu0 0.0
        %2165 = vmatmul.mubr.f32.gmra.mxu0 %v1672
        %v2166 = vpop.f32.mrf.mxu0
        %v2167 = vadd.f32 %v1642, %v2166
        %v2168 = vpop.f32.mrf.mxu0
        %v2169 = vadd.f32 %v1646, %v2168
        %2170 = vdwg.mxu0
        %2171 = vmatprep.subr.mxu0 0.0
        %2172 = vmatpush1.msra.mxu0 0.0
        %2173 = vmatprep.subr.mxu0 0.0
        %2174 = vmatpush1.msra.mxu0 0.0
        %2175 = vmatprep.subr.mxu0 0.0
        %2176 = vmatpush1.msra.mxu0 0.0
        %2177 = vmatprep.subr.mxu0 0.0
        %2178 = vmatpush1.msra.mxu0 0.0
        %2179 = vmatprep.subr.mxu0 0.0
        %2180 = vmatpush1.msra.mxu0 0.0
        %2181 = vmatprep.subr.mxu0 0.0
        %2182 = vmatpush1.msra.mxu0 0.0
        %2183 = vmatprep.subr.mxu0 0.0
        %2184 = vmatpush1.msra.mxu0 0.0
        %2185 = vmatprep.subr.mxu0 0.0
        %2186 = vmatpush1.msra.mxu0 0.0
        %2187 = vmatprep.subr.mxu0 0.0
        %2188 = vmatpush1.msra.mxu0 0.0
        %2189 = vmatprep.subr.mxu0 0.0
        %2190 = vmatpush1.msra.mxu0 0.0
        %2191 = vmatprep.subr.mxu0 0.0
        %2192 = vmatpush1.msra.mxu0 0.0
        %2193 = vmatprep.subr.mxu0 0.0
        %2194 = vmatpush1.msra.mxu0 0.0
        %2195 = vmatprep.subr.mxu0 %v1586
        %2196 = vmatpush1.msra.mxu0 %v1585
        %2197 = vmatprep.subr.mxu0 %v1570
        %2198 = vmatpush1.msra.mxu0 %v1569
        %2199 = vmatprep.subr.mxu0 %v1554
        %2200 = vmatpush1.msra.mxu0 %v1553
        %2201 = vmatprep.subr.mxu0 %v1538
        %2202 = vmatpush1.msra.mxu0 %v1537
        %2203 = vmatprep.subr.mxu0 0.0
        %2204 = vmatpush2.msra.mxu0 0.0
        %2205 = vmatprep.subr.mxu0 0.0
        %2206 = vmatpush2.msra.mxu0 0.0
        %2207 = vmatprep.subr.mxu0 0.0
        %2208 = vmatpush2.msra.mxu0 0.0
        %2209 = vmatprep.subr.mxu0 0.0
        %2210 = vmatpush2.msra.mxu0 0.0
        %2211 = vmatprep.subr.mxu0 0.0
        %2212 = vmatpush2.msra.mxu0 0.0
        %2213 = vmatprep.subr.mxu0 0.0
        %2214 = vmatpush2.msra.mxu0 0.0
        %2215 = vmatprep.subr.mxu0 0.0
        %2216 = vmatpush2.msra.mxu0 0.0
        %2217 = vmatprep.subr.mxu0 0.0
        %2218 = vmatpush2.msra.mxu0 0.0
        %2219 = vmatprep.subr.mxu0 0.0
        %2220 = vmatpush2.msra.mxu0 0.0
        %2221 = vmatprep.subr.mxu0 0.0
        %2222 = vmatpush2.msra.mxu0 0.0
        %2223 = vmatprep.subr.mxu0 0.0
        %2224 = vmatpush2.msra.mxu0 0.0
        %2225 = vmatprep.subr.mxu0 0.0
        %2226 = vmatpush2.msra.mxu0 0.0
        %2227 = vmatprep.subr.mxu0 0.0
        %2228 = vmatpush2.msra.mxu0 0.0
        %2229 = vmatprep.subr.mxu0 0.0
        %2230 = vmatpush2.msra.mxu0 0.0
        %2231 = vmatprep.subr.mxu0 0.0
        %2232 = vmatpush2.msra.mxu0 0.0
        %2233 = vmatprep.subr.mxu0 0.0
        %2234 = vmatpush2.msra.mxu0 0.0
        %2235 = vmatprep.mubr.f32.mxu0 0.0
        %2236 = vmatmul.mubr.f32.gmra.mxu0 %v1672
        %v2237 = vpop.f32.mrf.mxu0
        %v2238 = vadd.f32 %v1650, %v2237
        %v2239 = vpop.f32.mrf.mxu0
        %v2240 = vadd.f32 %v1654, %v2239
        %2241 = vdwg.mxu0
        %v2242 = vmax.f32 %v1741, 0.0
        %v2243 = vmax.f32 %v1743, 0.0
        %v2244 = vmax.f32 %v1812, 0.0
        %v2245 = vmax.f32 %v1814, 0.0
        %v2246 = vmax.f32 %v1883, 0.0
        %v2247 = vmax.f32 %v1885, 0.0
        %v2248 = vmax.f32 %v1954, 0.0
        %v2249 = vmax.f32 %v1956, 0.0
        %v2250 = vmax.f32 %v2025, 0.0
        %v2251 = vmax.f32 %v2027, 0.0
        %v2252 = vmax.f32 %v2096, 0.0
        %v2253 = vmax.f32 %v2098, 0.0
        %v2254 = vmax.f32 %v2167, 0.0
        %v2255 = vmax.f32 %v2169, 0.0
        %v2256 = vmax.f32 %v2238, 0.0
        %v2257 = vmax.f32 %v2240, 0.0
        %v2258 = vld [vmem:[%s9] sm:$0xff]
        %v2259 = vld [vmem:[%s9 + $0x8] sm:$0xff]
        %v2260 = vld [vmem:[%s9 + $0x10] sm:$0xff]
        %v2261 = vld [vmem:[%s9 + $0x18] sm:$0xff]
        %v2262 = vld [vmem:[%s9 + $0x20] sm:$0xff]
        %v2263 = vld [vmem:[%s9 + $0x28] sm:$0xff]
        %v2264 = vld [vmem:[%s9 + $0x30] sm:$0xff]
        %v2265 = vld [vmem:[%s9 + $0x38] sm:$0xff]
        %v2266 = vld [vmem:[%s9 + $0x40] sm:$0xff]
        %v2267 = vld [vmem:[%s9 + $0x48] sm:$0xff]
        %v2268 = vld [vmem:[%s9 + $0x50] sm:$0xff]
        %v2269 = vld [vmem:[%s9 + $0x58] sm:$0xff]
        %v2270 = vld [vmem:[%s9 + $0x60] sm:$0xff]
        %v2271 = vld [vmem:[%s9 + $0x68] sm:$0xff]
        %v2272 = vld [vmem:[%s9 + $0x70] sm:$0xff]
        %v2273 = vld [vmem:[%s9 + $0x78] sm:$0xff]
        %v2274 = vld [vmem:[%s9 + $0x80] sm:$0xff]
        %v2275 = vld [vmem:[%s9 + $0x88] sm:$0xff]
        %v2276 = vld [vmem:[%s9 + $0x90] sm:$0xff]
        %v2277 = vld [vmem:[%s9 + $0x98] sm:$0xff]
        %v2278 = vld [vmem:[%s9 + $0xa0] sm:$0xff]
        %v2279 = vld [vmem:[%s9 + $0xa8] sm:$0xff]
        %v2280 = vld [vmem:[%s9 + $0xb0] sm:$0xff]
        %v2281 = vld [vmem:[%s9 + $0xb8] sm:$0xff]
        %v2282 = vld [vmem:[%s9 + $0xc0] sm:$0xff]
        %v2283 = vld [vmem:[%s9 + $0xc8] sm:$0xff]
        %v2284 = vld [vmem:[%s9 + $0xd0] sm:$0xff]
        %v2285 = vld [vmem:[%s9 + $0xd8] sm:$0xff]
        %v2286 = vld [vmem:[%s9 + $0xe0] sm:$0xff]
        %v2287 = vld [vmem:[%s9 + $0xe8] sm:$0xff]
        %v2288 = vld [vmem:[%s9 + $0xf0] sm:$0xff]
        %v2289 = vld [vmem:[%s9 + $0xf8] sm:$0xff]
        %v2290 = vld [vmem:[%s9 + $0x100] sm:$0xff]
        %v2291 = vld [vmem:[%s9 + $0x108] sm:$0xff]
        %v2292 = vld [vmem:[%s9 + $0x110] sm:$0xff]
        %v2293 = vld [vmem:[%s9 + $0x118] sm:$0xff]
        %v2294 = vld [vmem:[%s9 + $0x120] sm:$0xff]
        %v2295 = vld [vmem:[%s9 + $0x128] sm:$0xff]
        %v2296 = vld [vmem:[%s9 + $0x130] sm:$0xff]
        %v2297 = vld [vmem:[%s9 + $0x138] sm:$0xff]
        %v2298 = vld [vmem:[%s9 + $0x140] sm:$0xff]
        %v2299 = vld [vmem:[%s9 + $0x148] sm:$0xff]
        %v2300 = vld [vmem:[%s9 + $0x150] sm:$0xff]
        %v2301 = vld [vmem:[%s9 + $0x158] sm:$0xff]
        %v2302 = vld [vmem:[%s9 + $0x160] sm:$0xff]
        %v2303 = vld [vmem:[%s9 + $0x168] sm:$0xff]
        %v2304 = vld [vmem:[%s9 + $0x170] sm:$0xff]
        %v2305 = vld [vmem:[%s9 + $0x178] sm:$0xff]
        %v2306 = vld [vmem:[%s9 + $0x180] sm:$0xff]
        %v2307 = vld [vmem:[%s9 + $0x188] sm:$0xff]
        %v2308 = vld [vmem:[%s9 + $0x190] sm:$0xff]
        %v2309 = vld [vmem:[%s9 + $0x198] sm:$0xff]
        %v2310 = vld [vmem:[%s9 + $0x1a0] sm:$0xff]
        %v2311 = vld [vmem:[%s9 + $0x1a8] sm:$0xff]
        %v2312 = vld [vmem:[%s9 + $0x1b0] sm:$0xff]
        %v2313 = vld [vmem:[%s9 + $0x1b8] sm:$0xff]
        %v2314 = vld [vmem:[%s9 + $0x1c0] sm:$0xff]
        %v2315 = vld [vmem:[%s9 + $0x1c8] sm:$0xff]
        %v2316 = vld [vmem:[%s9 + $0x1d0] sm:$0xff]
        %v2317 = vld [vmem:[%s9 + $0x1d8] sm:$0xff]
        %v2318 = vld [vmem:[%s9 + $0x1e0] sm:$0xff]
        %v2319 = vld [vmem:[%s9 + $0x1e8] sm:$0xff]
        %v2320 = vld [vmem:[%s9 + $0x1f0] sm:$0xff]
        %v2321 = vld [vmem:[%s9 + $0x1f8] sm:$0xff]
        %v2322 = vld [vmem:[%s9 + $0x200] sm:$0xff]
        %v2323 = vld [vmem:[%s9 + $0x208] sm:$0xff]
        %v2324 = vld [vmem:[%s9 + $0x210] sm:$0xff]
        %v2325 = vld [vmem:[%s9 + $0x218] sm:$0xff]
        %v2326 = vld [vmem:[%s9 + $0x220] sm:$0xff]
        %v2327 = vld [vmem:[%s9 + $0x228] sm:$0xff]
        %v2328 = vld [vmem:[%s9 + $0x230] sm:$0xff]
        %v2329 = vld [vmem:[%s9 + $0x238] sm:$0xff]
        %v2330 = vld [vmem:[%s9 + $0x240] sm:$0xff]
        %v2331 = vld [vmem:[%s9 + $0x248] sm:$0xff]
        %v2332 = vld [vmem:[%s9 + $0x250] sm:$0xff]
        %v2333 = vld [vmem:[%s9 + $0x258] sm:$0xff]
        %v2334 = vld [vmem:[%s9 + $0x260] sm:$0xff]
        %v2335 = vld [vmem:[%s9 + $0x268] sm:$0xff]
        %v2336 = vld [vmem:[%s9 + $0x270] sm:$0xff]
        %v2337 = vld [vmem:[%s9 + $0x278] sm:$0xff]
        %v2338 = vld [vmem:[%s9 + $0x280] sm:$0xff]
        %v2339 = vld [vmem:[%s9 + $0x288] sm:$0xff]
        %v2340 = vld [vmem:[%s9 + $0x290] sm:$0xff]
        %v2341 = vld [vmem:[%s9 + $0x298] sm:$0xff]
        %v2342 = vld [vmem:[%s9 + $0x2a0] sm:$0xff]
        %v2343 = vld [vmem:[%s9 + $0x2a8] sm:$0xff]
        %v2344 = vld [vmem:[%s9 + $0x2b0] sm:$0xff]
        %v2345 = vld [vmem:[%s9 + $0x2b8] sm:$0xff]
        %v2346 = vld [vmem:[%s9 + $0x2c0] sm:$0xff]
        %v2347 = vld [vmem:[%s9 + $0x2c8] sm:$0xff]
        %v2348 = vld [vmem:[%s9 + $0x2d0] sm:$0xff]
        %v2349 = vld [vmem:[%s9 + $0x2d8] sm:$0xff]
        %v2350 = vld [vmem:[%s9 + $0x2e0] sm:$0xff]
        %v2351 = vld [vmem:[%s9 + $0x2e8] sm:$0xff]
        %v2352 = vld [vmem:[%s9 + $0x2f0] sm:$0xff]
        %v2353 = vld [vmem:[%s9 + $0x2f8] sm:$0xff]
        %v2354 = vld [vmem:[%s9 + $0x300] sm:$0xff]
        %v2355 = vld [vmem:[%s9 + $0x308] sm:$0xff]
        %v2356 = vld [vmem:[%s9 + $0x310] sm:$0xff]
        %v2357 = vld [vmem:[%s9 + $0x318] sm:$0xff]
        %v2358 = vld [vmem:[%s9 + $0x320] sm:$0xff]
        %v2359 = vld [vmem:[%s9 + $0x328] sm:$0xff]
        %v2360 = vld [vmem:[%s9 + $0x330] sm:$0xff]
        %v2361 = vld [vmem:[%s9 + $0x338] sm:$0xff]
        %v2362 = vld [vmem:[%s9 + $0x340] sm:$0xff]
        %v2363 = vld [vmem:[%s9 + $0x348] sm:$0xff]
        %v2364 = vld [vmem:[%s9 + $0x350] sm:$0xff]
        %v2365 = vld [vmem:[%s9 + $0x358] sm:$0xff]
        %v2366 = vld [vmem:[%s9 + $0x360] sm:$0xff]
        %v2367 = vld [vmem:[%s9 + $0x368] sm:$0xff]
        %v2368 = vld [vmem:[%s9 + $0x370] sm:$0xff]
        %v2369 = vld [vmem:[%s9 + $0x378] sm:$0xff]
        %v2370 = vld [vmem:[%s9 + $0x380] sm:$0xff]
        %v2371 = vld [vmem:[%s9 + $0x388] sm:$0xff]
        %v2372 = vld [vmem:[%s9 + $0x390] sm:$0xff]
        %v2373 = vld [vmem:[%s9 + $0x398] sm:$0xff]
        %v2374 = vld [vmem:[%s9 + $0x3a0] sm:$0xff]
        %v2375 = vld [vmem:[%s9 + $0x3a8] sm:$0xff]
        %v2376 = vld [vmem:[%s9 + $0x3b0] sm:$0xff]
        %v2377 = vld [vmem:[%s9 + $0x3b8] sm:$0xff]
        %v2378 = vld [vmem:[%s9 + $0x3c0] sm:$0xff]
        %v2379 = vld [vmem:[%s9 + $0x3c8] sm:$0xff]
        %v2380 = vld [vmem:[%s9 + $0x3d0] sm:$0xff]
        %v2381 = vld [vmem:[%s9 + $0x3d8] sm:$0xff]
        %v2382 = vld [vmem:[%s9 + $0x3e0] sm:$0xff]
        %v2383 = vld [vmem:[%s9 + $0x3e8] sm:$0xff]
        %v2384 = vld [vmem:[%s9 + $0x3f0] sm:$0xff]
        %v2385 = vld [vmem:[%s9 + $0x3f8] sm:$0xff]
        %v2386 = vld [vmem:[%s9 + $0x400] sm:$0xff]
        %v2387 = vld [vmem:[%s9 + $0x408] sm:$0xff]
        %v2388 = vld [vmem:[%s9 + $0x410] sm:$0xff]
        %v2389 = vld [vmem:[%s9 + $0x418] sm:$0xff]
        %v2390 = vld [vmem:[%s9 + $0x420] sm:$0xff]
        %v2391 = vld [vmem:[%s9 + $0x428] sm:$0xff]
        %v2392 = vld [vmem:[%s9 + $0x430] sm:$0xff]
        %v2393 = vld [vmem:[%s9 + $0x438] sm:$0xff]
        %v2394 = vld [vmem:[%s9 + $0x440] sm:$0xff]
        %v2395 = vld [vmem:[%s9 + $0x448] sm:$0xff]
        %v2396 = vld [vmem:[%s9 + $0x450] sm:$0xff]
        %v2397 = vld [vmem:[%s9 + $0x458] sm:$0xff]
        %v2398 = vld [vmem:[%s9 + $0x460] sm:$0xff]
        %v2399 = vld [vmem:[%s9 + $0x468] sm:$0xff]
        %v2400 = vld [vmem:[%s9 + $0x470] sm:$0xff]
        %v2401 = vld [vmem:[%s9 + $0x478] sm:$0xff]
        %v2402 = vld [vmem:[%s9 + $0x480] sm:$0xff]
        %v2403 = vld [vmem:[%s9 + $0x488] sm:$0xff]
        %v2404 = vld [vmem:[%s9 + $0x490] sm:$0xff]
        %v2405 = vld [vmem:[%s9 + $0x498] sm:$0xff]
        %v2406 = vld [vmem:[%s9 + $0x4a0] sm:$0xff]
        %v2407 = vld [vmem:[%s9 + $0x4a8] sm:$0xff]
        %v2408 = vld [vmem:[%s9 + $0x4b0] sm:$0xff]
        %v2409 = vld [vmem:[%s9 + $0x4b8] sm:$0xff]
        %v2410 = vld [vmem:[%s9 + $0x4c0] sm:$0xff]
        %v2411 = vld [vmem:[%s9 + $0x4c8] sm:$0xff]
        %v2412 = vld [vmem:[%s9 + $0x4d0] sm:$0xff]
        %v2413 = vld [vmem:[%s9 + $0x4d8] sm:$0xff]
        %v2414 = vld [vmem:[%s9 + $0x4e0] sm:$0xff]
        %v2415 = vld [vmem:[%s9 + $0x4e8] sm:$0xff]
        %v2416 = vld [vmem:[%s9 + $0x4f0] sm:$0xff]
        %v2417 = vld [vmem:[%s9 + $0x4f8] sm:$0xff]
        %v2418 = vld [vmem:[%s9 + $0x500] sm:$0xff]
        %v2419 = vld [vmem:[%s9 + $0x508] sm:$0xff]
        %v2420 = vld [vmem:[%s9 + $0x510] sm:$0xff]
        %v2421 = vld [vmem:[%s9 + $0x518] sm:$0xff]
        %v2422 = vld [vmem:[%s9 + $0x520] sm:$0xff]
        %v2423 = vld [vmem:[%s9 + $0x528] sm:$0xff]
        %v2424 = vld [vmem:[%s9 + $0x530] sm:$0xff]
        %v2425 = vld [vmem:[%s9 + $0x538] sm:$0xff]
        %v2426 = vld [vmem:[%s9 + $0x540] sm:$0xff]
        %v2427 = vld [vmem:[%s9 + $0x548] sm:$0xff]
        %v2428 = vld [vmem:[%s9 + $0x550] sm:$0xff]
        %v2429 = vld [vmem:[%s9 + $0x558] sm:$0xff]
        %v2430 = vld [vmem:[%s9 + $0x560] sm:$0xff]
        %v2431 = vld [vmem:[%s9 + $0x568] sm:$0xff]
        %v2432 = vld [vmem:[%s9 + $0x570] sm:$0xff]
        %v2433 = vld [vmem:[%s9 + $0x578] sm:$0xff]
        %v2434 = vld [vmem:[%s9 + $0x580] sm:$0xff]
        %v2435 = vld [vmem:[%s9 + $0x588] sm:$0xff]
        %v2436 = vld [vmem:[%s9 + $0x590] sm:$0xff]
        %v2437 = vld [vmem:[%s9 + $0x598] sm:$0xff]
        %v2438 = vld [vmem:[%s9 + $0x5a0] sm:$0xff]
        %v2439 = vld [vmem:[%s9 + $0x5a8] sm:$0xff]
        %v2440 = vld [vmem:[%s9 + $0x5b0] sm:$0xff]
        %v2441 = vld [vmem:[%s9 + $0x5b8] sm:$0xff]
        %v2442 = vld [vmem:[%s9 + $0x5c0] sm:$0xff]
        %v2443 = vld [vmem:[%s9 + $0x5c8] sm:$0xff]
        %v2444 = vld [vmem:[%s9 + $0x5d0] sm:$0xff]
        %v2445 = vld [vmem:[%s9 + $0x5d8] sm:$0xff]
        %v2446 = vld [vmem:[%s9 + $0x5e0] sm:$0xff]
        %v2447 = vld [vmem:[%s9 + $0x5e8] sm:$0xff]
        %v2448 = vld [vmem:[%s9 + $0x5f0] sm:$0xff]
        %v2449 = vld [vmem:[%s9 + $0x5f8] sm:$0xff]
        %v2450 = vld [vmem:[%s9 + $0x600] sm:$0xff]
        %v2451 = vld [vmem:[%s9 + $0x608] sm:$0xff]
        %v2452 = vld [vmem:[%s9 + $0x610] sm:$0xff]
        %v2453 = vld [vmem:[%s9 + $0x618] sm:$0xff]
        %v2454 = vld [vmem:[%s9 + $0x620] sm:$0xff]
        %v2455 = vld [vmem:[%s9 + $0x628] sm:$0xff]
        %v2456 = vld [vmem:[%s9 + $0x630] sm:$0xff]
        %v2457 = vld [vmem:[%s9 + $0x638] sm:$0xff]
        %v2458 = vld [vmem:[%s9 + $0x640] sm:$0xff]
        %v2459 = vld [vmem:[%s9 + $0x648] sm:$0xff]
        %v2460 = vld [vmem:[%s9 + $0x650] sm:$0xff]
        %v2461 = vld [vmem:[%s9 + $0x658] sm:$0xff]
        %v2462 = vld [vmem:[%s9 + $0x660] sm:$0xff]
        %v2463 = vld [vmem:[%s9 + $0x668] sm:$0xff]
        %v2464 = vld [vmem:[%s9 + $0x670] sm:$0xff]
        %v2465 = vld [vmem:[%s9 + $0x678] sm:$0xff]
        %v2466 = vld [vmem:[%s9 + $0x680] sm:$0xff]
        %v2467 = vld [vmem:[%s9 + $0x688] sm:$0xff]
        %v2468 = vld [vmem:[%s9 + $0x690] sm:$0xff]
        %v2469 = vld [vmem:[%s9 + $0x698] sm:$0xff]
        %v2470 = vld [vmem:[%s9 + $0x6a0] sm:$0xff]
        %v2471 = vld [vmem:[%s9 + $0x6a8] sm:$0xff]
        %v2472 = vld [vmem:[%s9 + $0x6b0] sm:$0xff]
        %v2473 = vld [vmem:[%s9 + $0x6b8] sm:$0xff]
        %v2474 = vld [vmem:[%s9 + $0x6c0] sm:$0xff]
        %v2475 = vld [vmem:[%s9 + $0x6c8] sm:$0xff]
        %v2476 = vld [vmem:[%s9 + $0x6d0] sm:$0xff]
        %v2477 = vld [vmem:[%s9 + $0x6d8] sm:$0xff]
        %v2478 = vld [vmem:[%s9 + $0x6e0] sm:$0xff]
        %v2479 = vld [vmem:[%s9 + $0x6e8] sm:$0xff]
        %v2480 = vld [vmem:[%s9 + $0x6f0] sm:$0xff]
        %v2481 = vld [vmem:[%s9 + $0x6f8] sm:$0xff]
        %v2482 = vld [vmem:[%s9 + $0x700] sm:$0xff]
        %v2483 = vld [vmem:[%s9 + $0x708] sm:$0xff]
        %v2484 = vld [vmem:[%s9 + $0x710] sm:$0xff]
        %v2485 = vld [vmem:[%s9 + $0x718] sm:$0xff]
        %v2486 = vld [vmem:[%s9 + $0x720] sm:$0xff]
        %v2487 = vld [vmem:[%s9 + $0x728] sm:$0xff]
        %v2488 = vld [vmem:[%s9 + $0x730] sm:$0xff]
        %v2489 = vld [vmem:[%s9 + $0x738] sm:$0xff]
        %v2490 = vld [vmem:[%s9 + $0x740] sm:$0xff]
        %v2491 = vld [vmem:[%s9 + $0x748] sm:$0xff]
        %v2492 = vld [vmem:[%s9 + $0x750] sm:$0xff]
        %v2493 = vld [vmem:[%s9 + $0x758] sm:$0xff]
        %v2494 = vld [vmem:[%s9 + $0x760] sm:$0xff]
        %v2495 = vld [vmem:[%s9 + $0x768] sm:$0xff]
        %v2496 = vld [vmem:[%s9 + $0x770] sm:$0xff]
        %v2497 = vld [vmem:[%s9 + $0x778] sm:$0xff]
        %v2498 = vld [vmem:[%s9 + $0x780] sm:$0xff]
        %v2499 = vld [vmem:[%s9 + $0x788] sm:$0xff]
        %v2500 = vld [vmem:[%s9 + $0x790] sm:$0xff]
        %v2501 = vld [vmem:[%s9 + $0x798] sm:$0xff]
        %v2502 = vld [vmem:[%s9 + $0x7a0] sm:$0xff]
        %v2503 = vld [vmem:[%s9 + $0x7a8] sm:$0xff]
        %v2504 = vld [vmem:[%s9 + $0x7b0] sm:$0xff]
        %v2505 = vld [vmem:[%s9 + $0x7b8] sm:$0xff]
        %v2506 = vld [vmem:[%s9 + $0x7c0] sm:$0xff]
        %v2507 = vld [vmem:[%s9 + $0x7c8] sm:$0xff]
        %v2508 = vld [vmem:[%s9 + $0x7d0] sm:$0xff]
        %v2509 = vld [vmem:[%s9 + $0x7d8] sm:$0xff]
        %v2510 = vld [vmem:[%s9 + $0x7e0] sm:$0xff]
        %v2511 = vld [vmem:[%s9 + $0x7e8] sm:$0xff]
        %v2512 = vld [vmem:[%s9 + $0x7f0] sm:$0xff]
        %v2513 = vld [vmem:[%s9 + $0x7f8] sm:$0xff]
        %v2514 = vld [vmem:[%s10] sm:$0x1]
        %v2516 = vlaneseq
        %v2517 = vshrl.u32 %v2516, 7
        %v2518 = vsub.s32 0, %v2517
        %v2519 = vrot.slane %v2514, %v2518
        %2521 = vmatprep.subr.mxu0 0.0
        %2522 = vmatpush1.msra.mxu0 %v2273
        %2523 = vmatprep.subr.mxu0 0.0
        %2524 = vmatpush1.msra.mxu0 %v2272
        %2525 = vmatprep.subr.mxu0 0.0
        %2526 = vmatpush1.msra.mxu0 %v2271
        %2527 = vmatprep.subr.mxu0 0.0
        %2528 = vmatpush1.msra.mxu0 %v2270
        %2529 = vmatprep.subr.mxu0 0.0
        %2530 = vmatpush1.msra.mxu0 %v2269
        %2531 = vmatprep.subr.mxu0 0.0
        %2532 = vmatpush1.msra.mxu0 %v2268
        %2533 = vmatprep.subr.mxu0 0.0
        %2534 = vmatpush1.msra.mxu0 %v2267
        %2535 = vmatprep.subr.mxu0 0.0
        %2536 = vmatpush1.msra.mxu0 %v2266
        %2537 = vmatprep.subr.mxu0 0.0
        %2538 = vmatpush1.msra.mxu0 %v2265
        %2539 = vmatprep.subr.mxu0 0.0
        %2540 = vmatpush1.msra.mxu0 %v2264
        %2541 = vmatprep.subr.mxu0 0.0
        %2542 = vmatpush1.msra.mxu0 %v2263
        %2543 = vmatprep.subr.mxu0 0.0
        %2544 = vmatpush1.msra.mxu0 %v2262
        %2545 = vmatprep.subr.mxu0 0.0
        %2546 = vmatpush1.msra.mxu0 %v2261
        %2547 = vmatprep.subr.mxu0 0.0
        %2548 = vmatpush1.msra.mxu0 %v2260
        %2549 = vmatprep.subr.mxu0 0.0
        %2550 = vmatpush1.msra.mxu0 %v2259
        %2551 = vmatprep.subr.mxu0 0.0
        %2552 = vmatpush1.msra.mxu0 %v2258
        %2553 = vmatprep.subr.mxu0 0.0
        %2554 = vmatpush2.msra.mxu0 %v2289
        %2555 = vmatprep.subr.mxu0 0.0
        %2556 = vmatpush2.msra.mxu0 %v2288
        %2557 = vmatprep.subr.mxu0 0.0
        %2558 = vmatpush2.msra.mxu0 %v2287
        %2559 = vmatprep.subr.mxu0 0.0
        %2560 = vmatpush2.msra.mxu0 %v2286
        %2561 = vmatprep.subr.mxu0 0.0
        %2562 = vmatpush2.msra.mxu0 %v2285
        %2563 = vmatprep.subr.mxu0 0.0
        %2564 = vmatpush2.msra.mxu0 %v2284
        %2565 = vmatprep.subr.mxu0 0.0
        %2566 = vmatpush2.msra.mxu0 %v2283
        %2567 = vmatprep.subr.mxu0 0.0
        %2568 = vmatpush2.msra.mxu0 %v2282
        %2569 = vmatprep.subr.mxu0 0.0
        %2570 = vmatpush2.msra.mxu0 %v2281
        %2571 = vmatprep.subr.mxu0 0.0
        %2572 = vmatpush2.msra.mxu0 %v2280
        %2573 = vmatprep.subr.mxu0 0.0
        %2574 = vmatpush2.msra.mxu0 %v2279
        %2575 = vmatprep.subr.mxu0 0.0
        %2576 = vmatpush2.msra.mxu0 %v2278
        %2577 = vmatprep.subr.mxu0 0.0
        %2578 = vmatpush2.msra.mxu0 %v2277
        %2579 = vmatprep.subr.mxu0 0.0
        %2580 = vmatpush2.msra.mxu0 %v2276
        %2581 = vmatprep.subr.mxu0 0.0
        %2582 = vmatpush2.msra.mxu0 %v2275
        %2583 = vmatprep.subr.mxu0 0.0
        %2584 = vmatpush2.msra.mxu0 %v2274
        %2585 = vmatprep.mubr.f32.mxu0 %v2243
        %2586 = vmatmul.mubr.f32.gmra.mxu0 %v2242
        %v2587 = vpop.f32.mrf.mxu0
        %v2588 = vadd.f32 %v2519, %v2587
        %v2589 = vpop.f32.mrf.mxu0
        %2590 = vdwg.mxu0
        %2591 = vmatprep.subr.mxu0 0.0
        %2592 = vmatpush1.msra.mxu0 %v2305
        %2593 = vmatprep.subr.mxu0 0.0
        %2594 = vmatpush1.msra.mxu0 %v2304
        %2595 = vmatprep.subr.mxu0 0.0
        %2596 = vmatpush1.msra.mxu0 %v2303
        %2597 = vmatprep.subr.mxu0 0.0
        %2598 = vmatpush1.msra.mxu0 %v2302
        %2599 = vmatprep.subr.mxu0 0.0
        %2600 = vmatpush1.msra.mxu0 %v2301
        %2601 = vmatprep.subr.mxu0 0.0
        %2602 = vmatpush1.msra.mxu0 %v2300
        %2603 = vmatprep.subr.mxu0 0.0
        %2604 = vmatpush1.msra.mxu0 %v2299
        %2605 = vmatprep.subr.mxu0 0.0
        %2606 = vmatpush1.msra.mxu0 %v2298
        %2607 = vmatprep.subr.mxu0 0.0
        %2608 = vmatpush1.msra.mxu0 %v2297
        %2609 = vmatprep.subr.mxu0 0.0
        %2610 = vmatpush1.msra.mxu0 %v2296
        %2611 = vmatprep.subr.mxu0 0.0
        %2612 = vmatpush1.msra.mxu0 %v2295
        %2613 = vmatprep.subr.mxu0 0.0
        %2614 = vmatpush1.msra.mxu0 %v2294
        %2615 = vmatprep.subr.mxu0 0.0
        %2616 = vmatpush1.msra.mxu0 %v2293
        %2617 = vmatprep.subr.mxu0 0.0
        %2618 = vmatpush1.msra.mxu0 %v2292
        %2619 = vmatprep.subr.mxu0 0.0
        %2620 = vmatpush1.msra.mxu0 %v2291
        %2621 = vmatprep.subr.mxu0 0.0
        %2622 = vmatpush1.msra.mxu0 %v2290
        %2623 = vmatprep.subr.mxu0 0.0
        %2624 = vmatpush2.msra.mxu0 %v2321
        %2625 = vmatprep.subr.mxu0 0.0
        %2626 = vmatpush2.msra.mxu0 %v2320
        %2627 = vmatprep.subr.mxu0 0.0
        %2628 = vmatpush2.msra.mxu0 %v2319
        %2629 = vmatprep.subr.mxu0 0.0
        %2630 = vmatpush2.msra.mxu0 %v2318
        %2631 = vmatprep.subr.mxu0 0.0
        %2632 = vmatpush2.msra.mxu0 %v2317
        %2633 = vmatprep.subr.mxu0 0.0
        %2634 = vmatpush2.msra.mxu0 %v2316
        %2635 = vmatprep.subr.mxu0 0.0
        %2636 = vmatpush2.msra.mxu0 %v2315
        %2637 = vmatprep.subr.mxu0 0.0
        %2638 = vmatpush2.msra.mxu0 %v2314
        %2639 = vmatprep.subr.mxu0 0.0
        %2640 = vmatpush2.msra.mxu0 %v2313
        %2641 = vmatprep.subr.mxu0 0.0
        %2642 = vmatpush2.msra.mxu0 %v2312
        %2643 = vmatprep.subr.mxu0 0.0
        %2644 = vmatpush2.msra.mxu0 %v2311
        %2645 = vmatprep.subr.mxu0 0.0
        %2646 = vmatpush2.msra.mxu0 %v2310
        %2647 = vmatprep.subr.mxu0 0.0
        %2648 = vmatpush2.msra.mxu0 %v2309
        %2649 = vmatprep.subr.mxu0 0.0
        %2650 = vmatpush2.msra.mxu0 %v2308
        %2651 = vmatprep.subr.mxu0 0.0
        %2652 = vmatpush2.msra.mxu0 %v2307
        %2653 = vmatprep.subr.mxu0 0.0
        %2654 = vmatpush2.msra.mxu0 %v2306
        %2655 = vmatprep.mubr.f32.mxu0 %v2245
        %2656 = vmatmul.mubr.f32.gmra.mxu0 %v2244
        %v2657 = vpop.f32.mrf.mxu0
        %v2658 = vadd.f32 %v2588, %v2657
        %v2659 = vpop.f32.mrf.mxu0
        %2660 = vdwg.mxu0
        %2661 = vmatprep.subr.mxu0 0.0
        %2662 = vmatpush1.msra.mxu0 %v2337
        %2663 = vmatprep.subr.mxu0 0.0
        %2664 = vmatpush1.msra.mxu0 %v2336
        %2665 = vmatprep.subr.mxu0 0.0
        %2666 = vmatpush1.msra.mxu0 %v2335
        %2667 = vmatprep.subr.mxu0 0.0
        %2668 = vmatpush1.msra.mxu0 %v2334
        %2669 = vmatprep.subr.mxu0 0.0
        %2670 = vmatpush1.msra.mxu0 %v2333
        %2671 = vmatprep.subr.mxu0 0.0
        %2672 = vmatpush1.msra.mxu0 %v2332
        %2673 = vmatprep.subr.mxu0 0.0
        %2674 = vmatpush1.msra.mxu0 %v2331
        %2675 = vmatprep.subr.mxu0 0.0
        %2676 = vmatpush1.msra.mxu0 %v2330
        %2677 = vmatprep.subr.mxu0 0.0
        %2678 = vmatpush1.msra.mxu0 %v2329
        %2679 = vmatprep.subr.mxu0 0.0
        %2680 = vmatpush1.msra.mxu0 %v2328
        %2681 = vmatprep.subr.mxu0 0.0
        %2682 = vmatpush1.msra.mxu0 %v2327
        %2683 = vmatprep.subr.mxu0 0.0
        %2684 = vmatpush1.msra.mxu0 %v2326
        %2685 = vmatprep.subr.mxu0 0.0
        %2686 = vmatpush1.msra.mxu0 %v2325
        %2687 = vmatprep.subr.mxu0 0.0
        %2688 = vmatpush1.msra.mxu0 %v2324
        %2689 = vmatprep.subr.mxu0 0.0
        %2690 = vmatpush1.msra.mxu0 %v2323
        %2691 = vmatprep.subr.mxu0 0.0
        %2692 = vmatpush1.msra.mxu0 %v2322
        %2693 = vmatprep.subr.mxu0 0.0
        %2694 = vmatpush2.msra.mxu0 %v2353
        %2695 = vmatprep.subr.mxu0 0.0
        %2696 = vmatpush2.msra.mxu0 %v2352
        %2697 = vmatprep.subr.mxu0 0.0
        %2698 = vmatpush2.msra.mxu0 %v2351
        %2699 = vmatprep.subr.mxu0 0.0
        %2700 = vmatpush2.msra.mxu0 %v2350
        %2701 = vmatprep.subr.mxu0 0.0
        %2702 = vmatpush2.msra.mxu0 %v2349
        %2703 = vmatprep.subr.mxu0 0.0
        %2704 = vmatpush2.msra.mxu0 %v2348
        %2705 = vmatprep.subr.mxu0 0.0
        %2706 = vmatpush2.msra.mxu0 %v2347
        %2707 = vmatprep.subr.mxu0 0.0
        %2708 = vmatpush2.msra.mxu0 %v2346
        %2709 = vmatprep.subr.mxu0 0.0
        %2710 = vmatpush2.msra.mxu0 %v2345
        %2711 = vmatprep.subr.mxu0 0.0
        %2712 = vmatpush2.msra.mxu0 %v2344
        %2713 = vmatprep.subr.mxu0 0.0
        %2714 = vmatpush2.msra.mxu0 %v2343
        %2715 = vmatprep.subr.mxu0 0.0
        %2716 = vmatpush2.msra.mxu0 %v2342
        %2717 = vmatprep.subr.mxu0 0.0
        %2718 = vmatpush2.msra.mxu0 %v2341
        %2719 = vmatprep.subr.mxu0 0.0
        %2720 = vmatpush2.msra.mxu0 %v2340
        %2721 = vmatprep.subr.mxu0 0.0
        %2722 = vmatpush2.msra.mxu0 %v2339
        %2723 = vmatprep.subr.mxu0 0.0
        %2724 = vmatpush2.msra.mxu0 %v2338
        %2725 = vmatprep.mubr.f32.mxu0 %v2247
        %2726 = vmatmul.mubr.f32.gmra.mxu0 %v2246
        %v2727 = vpop.f32.mrf.mxu0
        %v2728 = vadd.f32 %v2658, %v2727
        %v2729 = vpop.f32.mrf.mxu0
        %2730 = vdwg.mxu0
        %2731 = vmatprep.subr.mxu0 0.0
        %2732 = vmatpush1.msra.mxu0 %v2369
        %2733 = vmatprep.subr.mxu0 0.0
        %2734 = vmatpush1.msra.mxu0 %v2368
        %2735 = vmatprep.subr.mxu0 0.0
        %2736 = vmatpush1.msra.mxu0 %v2367
        %2737 = vmatprep.subr.mxu0 0.0
        %2738 = vmatpush1.msra.mxu0 %v2366
        %2739 = vmatprep.subr.mxu0 0.0
        %2740 = vmatpush1.msra.mxu0 %v2365
        %2741 = vmatprep.subr.mxu0 0.0
        %2742 = vmatpush1.msra.mxu0 %v2364
        %2743 = vmatprep.subr.mxu0 0.0
        %2744 = vmatpush1.msra.mxu0 %v2363
        %2745 = vmatprep.subr.mxu0 0.0
        %2746 = vmatpush1.msra.mxu0 %v2362
        %2747 = vmatprep.subr.mxu0 0.0
        %2748 = vmatpush1.msra.mxu0 %v2361
        %2749 = vmatprep.subr.mxu0 0.0
        %2750 = vmatpush1.msra.mxu0 %v2360
        %2751 = vmatprep.subr.mxu0 0.0
        %2752 = vmatpush1.msra.mxu0 %v2359
        %2753 = vmatprep.subr.mxu0 0.0
        %2754 = vmatpush1.msra.mxu0 %v2358
        %2755 = vmatprep.subr.mxu0 0.0
        %2756 = vmatpush1.msra.mxu0 %v2357
        %2757 = vmatprep.subr.mxu0 0.0
        %2758 = vmatpush1.msra.mxu0 %v2356
        %2759 = vmatprep.subr.mxu0 0.0
        %2760 = vmatpush1.msra.mxu0 %v2355
        %2761 = vmatprep.subr.mxu0 0.0
        %2762 = vmatpush1.msra.mxu0 %v2354
        %2763 = vmatprep.subr.mxu0 0.0
        %2764 = vmatpush2.msra.mxu0 %v2385
        %2765 = vmatprep.subr.mxu0 0.0
        %2766 = vmatpush2.msra.mxu0 %v2384
        %2767 = vmatprep.subr.mxu0 0.0
        %2768 = vmatpush2.msra.mxu0 %v2383
        %2769 = vmatprep.subr.mxu0 0.0
        %2770 = vmatpush2.msra.mxu0 %v2382
        %2771 = vmatprep.subr.mxu0 0.0
        %2772 = vmatpush2.msra.mxu0 %v2381
        %2773 = vmatprep.subr.mxu0 0.0
        %2774 = vmatpush2.msra.mxu0 %v2380
        %2775 = vmatprep.subr.mxu0 0.0
        %2776 = vmatpush2.msra.mxu0 %v2379
        %2777 = vmatprep.subr.mxu0 0.0
        %2778 = vmatpush2.msra.mxu0 %v2378
        %2779 = vmatprep.subr.mxu0 0.0
        %2780 = vmatpush2.msra.mxu0 %v2377
        %2781 = vmatprep.subr.mxu0 0.0
        %2782 = vmatpush2.msra.mxu0 %v2376
        %2783 = vmatprep.subr.mxu0 0.0
        %2784 = vmatpush2.msra.mxu0 %v2375
        %2785 = vmatprep.subr.mxu0 0.0
        %2786 = vmatpush2.msra.mxu0 %v2374
        %2787 = vmatprep.subr.mxu0 0.0
        %2788 = vmatpush2.msra.mxu0 %v2373
        %2789 = vmatprep.subr.mxu0 0.0
        %2790 = vmatpush2.msra.mxu0 %v2372
        %2791 = vmatprep.subr.mxu0 0.0
        %2792 = vmatpush2.msra.mxu0 %v2371
        %2793 = vmatprep.subr.mxu0 0.0
        %2794 = vmatpush2.msra.mxu0 %v2370
        %2795 = vmatprep.mubr.f32.mxu0 %v2249
        %2796 = vmatmul.mubr.f32.gmra.mxu0 %v2248
        %v2797 = vpop.f32.mrf.mxu0
        %v2798 = vadd.f32 %v2728, %v2797
        %v2799 = vpop.f32.mrf.mxu0
        %2800 = vdwg.mxu0
        %2801 = vmatprep.subr.mxu0 0.0
        %2802 = vmatpush1.msra.mxu0 %v2401
        %2803 = vmatprep.subr.mxu0 0.0
        %2804 = vmatpush1.msra.mxu0 %v2400
        %2805 = vmatprep.subr.mxu0 0.0
        %2806 = vmatpush1.msra.mxu0 %v2399
        %2807 = vmatprep.subr.mxu0 0.0
        %2808 = vmatpush1.msra.mxu0 %v2398
        %2809 = vmatprep.subr.mxu0 0.0
        %2810 = vmatpush1.msra.mxu0 %v2397
        %2811 = vmatprep.subr.mxu0 0.0
        %2812 = vmatpush1.msra.mxu0 %v2396
        %2813 = vmatprep.subr.mxu0 0.0
        %2814 = vmatpush1.msra.mxu0 %v2395
        %2815 = vmatprep.subr.mxu0 0.0
        %2816 = vmatpush1.msra.mxu0 %v2394
        %2817 = vmatprep.subr.mxu0 0.0
        %2818 = vmatpush1.msra.mxu0 %v2393
        %2819 = vmatprep.subr.mxu0 0.0
        %2820 = vmatpush1.msra.mxu0 %v2392
        %2821 = vmatprep.subr.mxu0 0.0
        %2822 = vmatpush1.msra.mxu0 %v2391
        %2823 = vmatprep.subr.mxu0 0.0
        %2824 = vmatpush1.msra.mxu0 %v2390
        %2825 = vmatprep.subr.mxu0 0.0
        %2826 = vmatpush1.msra.mxu0 %v2389
        %2827 = vmatprep.subr.mxu0 0.0
        %2828 = vmatpush1.msra.mxu0 %v2388
        %2829 = vmatprep.subr.mxu0 0.0
        %2830 = vmatpush1.msra.mxu0 %v2387
        %2831 = vmatprep.subr.mxu0 0.0
        %2832 = vmatpush1.msra.mxu0 %v2386
        %2833 = vmatprep.subr.mxu0 0.0
        %2834 = vmatpush2.msra.mxu0 %v2417
        %2835 = vmatprep.subr.mxu0 0.0
        %2836 = vmatpush2.msra.mxu0 %v2416
        %2837 = vmatprep.subr.mxu0 0.0
        %2838 = vmatpush2.msra.mxu0 %v2415
        %2839 = vmatprep.subr.mxu0 0.0
        %2840 = vmatpush2.msra.mxu0 %v2414
        %2841 = vmatprep.subr.mxu0 0.0
        %2842 = vmatpush2.msra.mxu0 %v2413
        %2843 = vmatprep.subr.mxu0 0.0
        %2844 = vmatpush2.msra.mxu0 %v2412
        %2845 = vmatprep.subr.mxu0 0.0
        %2846 = vmatpush2.msra.mxu0 %v2411
        %2847 = vmatprep.subr.mxu0 0.0
        %2848 = vmatpush2.msra.mxu0 %v2410
        %2849 = vmatprep.subr.mxu0 0.0
        %2850 = vmatpush2.msra.mxu0 %v2409
        %2851 = vmatprep.subr.mxu0 0.0
        %2852 = vmatpush2.msra.mxu0 %v2408
        %2853 = vmatprep.subr.mxu0 0.0
        %2854 = vmatpush2.msra.mxu0 %v2407
        %2855 = vmatprep.subr.mxu0 0.0
        %2856 = vmatpush2.msra.mxu0 %v2406
        %2857 = vmatprep.subr.mxu0 0.0
        %2858 = vmatpush2.msra.mxu0 %v2405
        %2859 = vmatprep.subr.mxu0 0.0
        %2860 = vmatpush2.msra.mxu0 %v2404
        %2861 = vmatprep.subr.mxu0 0.0
        %2862 = vmatpush2.msra.mxu0 %v2403
        %2863 = vmatprep.subr.mxu0 0.0
        %2864 = vmatpush2.msra.mxu0 %v2402
        %2865 = vmatprep.mubr.f32.mxu0 %v2251
        %2866 = vmatmul.mubr.f32.gmra.mxu0 %v2250
        %v2867 = vpop.f32.mrf.mxu0
        %v2868 = vadd.f32 %v2798, %v2867
        %v2869 = vpop.f32.mrf.mxu0
        %2870 = vdwg.mxu0
        %2871 = vmatprep.subr.mxu0 0.0
        %2872 = vmatpush1.msra.mxu0 %v2433
        %2873 = vmatprep.subr.mxu0 0.0
        %2874 = vmatpush1.msra.mxu0 %v2432
        %2875 = vmatprep.subr.mxu0 0.0
        %2876 = vmatpush1.msra.mxu0 %v2431
        %2877 = vmatprep.subr.mxu0 0.0
        %2878 = vmatpush1.msra.mxu0 %v2430
        %2879 = vmatprep.subr.mxu0 0.0
        %2880 = vmatpush1.msra.mxu0 %v2429
        %2881 = vmatprep.subr.mxu0 0.0
        %2882 = vmatpush1.msra.mxu0 %v2428
        %2883 = vmatprep.subr.mxu0 0.0
        %2884 = vmatpush1.msra.mxu0 %v2427
        %2885 = vmatprep.subr.mxu0 0.0
        %2886 = vmatpush1.msra.mxu0 %v2426
        %2887 = vmatprep.subr.mxu0 0.0
        %2888 = vmatpush1.msra.mxu0 %v2425
        %2889 = vmatprep.subr.mxu0 0.0
        %2890 = vmatpush1.msra.mxu0 %v2424
        %2891 = vmatprep.subr.mxu0 0.0
        %2892 = vmatpush1.msra.mxu0 %v2423
        %2893 = vmatprep.subr.mxu0 0.0
        %2894 = vmatpush1.msra.mxu0 %v2422
        %2895 = vmatprep.subr.mxu0 0.0
        %2896 = vmatpush1.msra.mxu0 %v2421
        %2897 = vmatprep.subr.mxu0 0.0
        %2898 = vmatpush1.msra.mxu0 %v2420
        %2899 = vmatprep.subr.mxu0 0.0
        %2900 = vmatpush1.msra.mxu0 %v2419
        %2901 = vmatprep.subr.mxu0 0.0
        %2902 = vmatpush1.msra.mxu0 %v2418
        %2903 = vmatprep.subr.mxu0 0.0
        %2904 = vmatpush2.msra.mxu0 %v2449
        %2905 = vmatprep.subr.mxu0 0.0
        %2906 = vmatpush2.msra.mxu0 %v2448
        %2907 = vmatprep.subr.mxu0 0.0
        %2908 = vmatpush2.msra.mxu0 %v2447
        %2909 = vmatprep.subr.mxu0 0.0
        %2910 = vmatpush2.msra.mxu0 %v2446
        %2911 = vmatprep.subr.mxu0 0.0
        %2912 = vmatpush2.msra.mxu0 %v2445
        %2913 = vmatprep.subr.mxu0 0.0
        %2914 = vmatpush2.msra.mxu0 %v2444
        %2915 = vmatprep.subr.mxu0 0.0
        %2916 = vmatpush2.msra.mxu0 %v2443
        %2917 = vmatprep.subr.mxu0 0.0
        %2918 = vmatpush2.msra.mxu0 %v2442
        %2919 = vmatprep.subr.mxu0 0.0
        %2920 = vmatpush2.msra.mxu0 %v2441
        %2921 = vmatprep.subr.mxu0 0.0
        %2922 = vmatpush2.msra.mxu0 %v2440
        %2923 = vmatprep.subr.mxu0 0.0
        %2924 = vmatpush2.msra.mxu0 %v2439
        %2925 = vmatprep.subr.mxu0 0.0
        %2926 = vmatpush2.msra.mxu0 %v2438
        %2927 = vmatprep.subr.mxu0 0.0
        %2928 = vmatpush2.msra.mxu0 %v2437
        %2929 = vmatprep.subr.mxu0 0.0
        %2930 = vmatpush2.msra.mxu0 %v2436
        %2931 = vmatprep.subr.mxu0 0.0
        %2932 = vmatpush2.msra.mxu0 %v2435
        %2933 = vmatprep.subr.mxu0 0.0
        %2934 = vmatpush2.msra.mxu0 %v2434
        %2935 = vmatprep.mubr.f32.mxu0 %v2253
        %2936 = vmatmul.mubr.f32.gmra.mxu0 %v2252
        %v2937 = vpop.f32.mrf.mxu0
        %v2938 = vadd.f32 %v2868, %v2937
        %v2939 = vpop.f32.mrf.mxu0
        %2940 = vdwg.mxu0
        %2941 = vmatprep.subr.mxu0 0.0
        %2942 = vmatpush1.msra.mxu0 %v2465
        %2943 = vmatprep.subr.mxu0 0.0
        %2944 = vmatpush1.msra.mxu0 %v2464
        %2945 = vmatprep.subr.mxu0 0.0
        %2946 = vmatpush1.msra.mxu0 %v2463
        %2947 = vmatprep.subr.mxu0 0.0
        %2948 = vmatpush1.msra.mxu0 %v2462
        %2949 = vmatprep.subr.mxu0 0.0
        %2950 = vmatpush1.msra.mxu0 %v2461
        %2951 = vmatprep.subr.mxu0 0.0
        %2952 = vmatpush1.msra.mxu0 %v2460
        %2953 = vmatprep.subr.mxu0 0.0
        %2954 = vmatpush1.msra.mxu0 %v2459
        %2955 = vmatprep.subr.mxu0 0.0
        %2956 = vmatpush1.msra.mxu0 %v2458
        %2957 = vmatprep.subr.mxu0 0.0
        %2958 = vmatpush1.msra.mxu0 %v2457
        %2959 = vmatprep.subr.mxu0 0.0
        %2960 = vmatpush1.msra.mxu0 %v2456
        %2961 = vmatprep.subr.mxu0 0.0
        %2962 = vmatpush1.msra.mxu0 %v2455
        %2963 = vmatprep.subr.mxu0 0.0
        %2964 = vmatpush1.msra.mxu0 %v2454
        %2965 = vmatprep.subr.mxu0 0.0
        %2966 = vmatpush1.msra.mxu0 %v2453
        %2967 = vmatprep.subr.mxu0 0.0
        %2968 = vmatpush1.msra.mxu0 %v2452
        %2969 = vmatprep.subr.mxu0 0.0
        %2970 = vmatpush1.msra.mxu0 %v2451
        %2971 = vmatprep.subr.mxu0 0.0
        %2972 = vmatpush1.msra.mxu0 %v2450
        %2973 = vmatprep.subr.mxu0 0.0
        %2974 = vmatpush2.msra.mxu0 %v2481
        %2975 = vmatprep.subr.mxu0 0.0
        %2976 = vmatpush2.msra.mxu0 %v2480
        %2977 = vmatprep.subr.mxu0 0.0
        %2978 = vmatpush2.msra.mxu0 %v2479
        %2979 = vmatprep.subr.mxu0 0.0
        %2980 = vmatpush2.msra.mxu0 %v2478
        %2981 = vmatprep.subr.mxu0 0.0
        %2982 = vmatpush2.msra.mxu0 %v2477
        %2983 = vmatprep.subr.mxu0 0.0
        %2984 = vmatpush2.msra.mxu0 %v2476
        %2985 = vmatprep.subr.mxu0 0.0
        %2986 = vmatpush2.msra.mxu0 %v2475
        %2987 = vmatprep.subr.mxu0 0.0
        %2988 = vmatpush2.msra.mxu0 %v2474
        %2989 = vmatprep.subr.mxu0 0.0
        %2990 = vmatpush2.msra.mxu0 %v2473
        %2991 = vmatprep.subr.mxu0 0.0
        %2992 = vmatpush2.msra.mxu0 %v2472
        %2993 = vmatprep.subr.mxu0 0.0
        %2994 = vmatpush2.msra.mxu0 %v2471
        %2995 = vmatprep.subr.mxu0 0.0
        %2996 = vmatpush2.msra.mxu0 %v2470
        %2997 = vmatprep.subr.mxu0 0.0
        %2998 = vmatpush2.msra.mxu0 %v2469
        %2999 = vmatprep.subr.mxu0 0.0
        %3000 = vmatpush2.msra.mxu0 %v2468
        %3001 = vmatprep.subr.mxu0 0.0
        %3002 = vmatpush2.msra.mxu0 %v2467
        %3003 = vmatprep.subr.mxu0 0.0
        %3004 = vmatpush2.msra.mxu0 %v2466
        %3005 = vmatprep.mubr.f32.mxu0 %v2255
        %3006 = vmatmul.mubr.f32.gmra.mxu0 %v2254
        %v3007 = vpop.f32.mrf.mxu0
        %v3008 = vadd.f32 %v2938, %v3007
        %v3009 = vpop.f32.mrf.mxu0
        %3010 = vdwg.mxu0
        %3011 = vmatprep.subr.mxu0 0.0
        %3012 = vmatpush1.msra.mxu0 %v2497
        %3013 = vmatprep.subr.mxu0 0.0
        %3014 = vmatpush1.msra.mxu0 %v2496
        %3015 = vmatprep.subr.mxu0 0.0
        %3016 = vmatpush1.msra.mxu0 %v2495
        %3017 = vmatprep.subr.mxu0 0.0
        %3018 = vmatpush1.msra.mxu0 %v2494
        %3019 = vmatprep.subr.mxu0 0.0
        %3020 = vmatpush1.msra.mxu0 %v2493
        %3021 = vmatprep.subr.mxu0 0.0
        %3022 = vmatpush1.msra.mxu0 %v2492
        %3023 = vmatprep.subr.mxu0 0.0
        %3024 = vmatpush1.msra.mxu0 %v2491
        %3025 = vmatprep.subr.mxu0 0.0
        %3026 = vmatpush1.msra.mxu0 %v2490
        %3027 = vmatprep.subr.mxu0 0.0
        %3028 = vmatpush1.msra.mxu0 %v2489
        %3029 = vmatprep.subr.mxu0 0.0
        %3030 = vmatpush1.msra.mxu0 %v2488
        %3031 = vmatprep.subr.mxu0 0.0
        %3032 = vmatpush1.msra.mxu0 %v2487
        %3033 = vmatprep.subr.mxu0 0.0
        %3034 = vmatpush1.msra.mxu0 %v2486
        %3035 = vmatprep.subr.mxu0 0.0
        %3036 = vmatpush1.msra.mxu0 %v2485
        %3037 = vmatprep.subr.mxu0 0.0
        %3038 = vmatpush1.msra.mxu0 %v2484
        %3039 = vmatprep.subr.mxu0 0.0
        %3040 = vmatpush1.msra.mxu0 %v2483
        %3041 = vmatprep.subr.mxu0 0.0
        %3042 = vmatpush1.msra.mxu0 %v2482
        %3043 = vmatprep.subr.mxu0 0.0
        %3044 = vmatpush2.msra.mxu0 %v2513
        %3045 = vmatprep.subr.mxu0 0.0
        %3046 = vmatpush2.msra.mxu0 %v2512
        %3047 = vmatprep.subr.mxu0 0.0
        %3048 = vmatpush2.msra.mxu0 %v2511
        %3049 = vmatprep.subr.mxu0 0.0
        %3050 = vmatpush2.msra.mxu0 %v2510
        %3051 = vmatprep.subr.mxu0 0.0
        %3052 = vmatpush2.msra.mxu0 %v2509
        %3053 = vmatprep.subr.mxu0 0.0
        %3054 = vmatpush2.msra.mxu0 %v2508
        %3055 = vmatprep.subr.mxu0 0.0
        %3056 = vmatpush2.msra.mxu0 %v2507
        %3057 = vmatprep.subr.mxu0 0.0
        %3058 = vmatpush2.msra.mxu0 %v2506
        %3059 = vmatprep.subr.mxu0 0.0
        %3060 = vmatpush2.msra.mxu0 %v2505
        %3061 = vmatprep.subr.mxu0 0.0
        %3062 = vmatpush2.msra.mxu0 %v2504
        %3063 = vmatprep.subr.mxu0 0.0
        %3064 = vmatpush2.msra.mxu0 %v2503
        %3065 = vmatprep.subr.mxu0 0.0
        %3066 = vmatpush2.msra.mxu0 %v2502
        %3067 = vmatprep.subr.mxu0 0.0
        %3068 = vmatpush2.msra.mxu0 %v2501
        %3069 = vmatprep.subr.mxu0 0.0
        %3070 = vmatpush2.msra.mxu0 %v2500
        %3071 = vmatprep.subr.mxu0 0.0
        %3072 = vmatpush2.msra.mxu0 %v2499
        %3073 = vmatprep.subr.mxu0 0.0
        %3074 = vmatpush2.msra.mxu0 %v2498
        %3075 = vmatprep.mubr.f32.mxu0 %v2257
        %3076 = vmatmul.mubr.f32.gmra.mxu0 %v2256
        %v3077 = vpop.f32.mrf.mxu0
        %v3078 = vadd.f32 %v3008, %v3077
        %v3079 = vpop.f32.mrf.mxu0
        %3080 = vdwg.mxu0
        %v3081 = vadd.f32 %v3078, %v1522
        %v3082 = vld [vmem:[%s11] sm:$0x1]
        %v3083 = vld [vmem:[%s12] sm:$0x1]
        %v3084 = vsel %vm448, %v3081, 0.0
        %3085 = vadd.xlane.f32.xlu0 %v3084
        %v3086 = vpop.xlane.xlu0 %3085
        %v3087 = vmul.f32 %v3086, %v1498
        %v3088 = vsub.f32 %v3081, %v3087
        %v3089 = vmul.f32 %v3088, %v3088
        %v3090 = vsel %vm448, %v3089, 0.0
        %3091 = vadd.xlane.f32.xlu0 %v3090
        %v3092 = vpop.xlane.xlu0 %3091
        %v3093 = vmul.f32 %v3092, %v1498
        %v3094 = vadd.f32 %v3093, 1e-05
        %v3095 = vrsqrt.pop %v3094
        %v3096 = vmul.f32 %v3088, %v3095
        %v3098 = vlaneseq
        %v3099 = vshrl.u32 %v3098, 7
        %v3100 = vsub.s32 0, %v3099
        %v3101 = vrot.slane %v3082, %v3100
        %v3103 = vmul.f32 %v3096, %v3101
        %v3105 = vlaneseq
        %v3106 = vshrl.u32 %v3105, 7
        %v3107 = vsub.s32 0, %v3106
        %v3108 = vrot.slane %v3083, %v3107
        %v3110 = vadd.f32 %v3103, %v3108
        %3111 = vst.msk [vmem:[%s431] sm:$0xff] %vm448, %v3110
        %s3112 = sand.u32 %s313, 1
        %s3113 = scalar_lea.sflag [#allocation3], %s3112
        %s3114 = sand.u32 %s313, 1
        %s3115 = smul.addr %s3114, 8
        %s3116 = scalar_lea.vmem [#allocation2], %s3115
        // Predicated region
        $region73: #{tpu_custom_call.1} parent=71 // pred_check
          %p3117 = pneg %p323
        $region74: #{tpu_custom_call.1} parent=71 // pred_check_branch
          %3119 = sbr.rel (%p3117) target = $region76
        $region75: #{tpu_custom_call.1} parent=71 // pred_region
          %s3121 = ssub.s32 128, 128
          %3122 = vsyncadd %s3113, %s3121
          %s3123 = smul.addr %s27, 128
          %s3124 = scalar_lea.hbm %s13, %s3123
          %s3126 = sshll.u32 %s3116, 4
          %s3127 = int_to_ptr.vmem [resolvable:$true] %s3126
          %3129 = dma.vmem_to_hbm [thread:$0]  %s3127, 128, %s3124, %s3113
        $region76: #{tpu_custom_call.1} parent=71 // pred_fallthru
          _
      $region72: #{tpu_custom_call.1} parent=5 // pred_fallthru
        _
      %p3130 = scmp.le.s32.totalorder 2, %s22
      // Predicated region
      $region77: #{tpu_custom_call.1} parent=5 // pred_check
        %p3131 = pneg %p3130
      $region78: #{tpu_custom_call.1} parent=5 // pred_check_branch
        %3133 = sbr.rel (%p3131) target = $region80
      $region79: #{tpu_custom_call.1} parent=5 // pred_region
        %s3134 = ssub.s32 %s22, 2
        // Predicated region
        $region81: #{tpu_custom_call.1} parent=79 // pred_check
          %p3135 = pneg %p329
        $region82: #{tpu_custom_call.1} parent=79 // pred_check_branch
          %3137 = sbr.rel (%p3135) target = $region84
        $region83: #{tpu_custom_call.1} parent=79 // pred_region
          %s3138 = sand.u32 %s314, 1
          %s3139 = scalar_lea.sflag [#allocation3], %s3138
          %s3140 = sand.u32 %s314, 1
          %s3141 = smul.addr %s3140, 8
          %s3142 = scalar_lea.vmem [#allocation2], %s3141
          %3143 = dma.done %s3139, 128
        $region84: #{tpu_custom_call.1} parent=79 // pred_fallthru
          _
      $region80: #{tpu_custom_call.1} parent=5 // pred_fallthru
        _
    $region6: #{tpu_custom_call.1} parent=1 // loop_footer
      %s26 = sadd.s32 1, %s22
    $region7: #{tpu_custom_call.1} parent=1 // loop_footer_branch
      %21 = sbr.rel target = $region3
    $region8: #{tpu_custom_call.1} parent=1 // loop_exit
      _
    %3144 = vsyncpa [#allocation3], 1
    %s3145 = scalar_lea.sflag [#allocation3], 1
    %3146 = vsyncpa %s3145, 1

</llo_original>
